<compile_context>
chip_gen: v7x
topology: tpu7x:2x2x1
jax: 0.10.0
libtpu: 0.0.40
codegen_flags: <defaults>
</compile_context>

<pallas_src>
import functools
import math

import jax
import jax.numpy as jnp
from jax import lax
from jax.experimental import pallas as pl
from jax.experimental.pallas import tpu as pltpu


def _mxu_width():
    """256-wide contraction on v6e/v7x, 128 otherwise (best effort)."""
    try:
        kind = jax.devices()[0].device_kind.lower()
        return 256 if ("v6" in kind or "v7" in kind) else 128
    except Exception:
        return 128


def _vmem_capacity_bytes():
    try:
        return int(pltpu.get_tpu_info().vmem_capacity_bytes)
    except Exception:
        return 64 * 2 ** 20  # conservative default: v7x per-core VMEM


def _wmha_kernel(q_ref, k_ref, v_ref, w2_ref, bias_ref,
                 wq_ref, bq_ref, wk_ref, bk_ref, wv_ref, bv_ref, wo_ref, bo_ref,
                 out_ref,
                 kpack_ref, vpack_ref, p_ref, hout_ref,
                 *, num_heads, d_k, heads_per_group, seq_len,
                 approx_recip, exp_dtype):
    """One (batch, query-tile) grid step."""
    qi = pl.program_id(1)
    cdt = q_ref.dtype                      # MXU operand dtype (bf16 or f32)
    f32 = jnp.float32
    gh = heads_per_group
    T = seq_len
    gd = gh * d_k
    n_groups = num_heads // gh

    # ---- K/V projections once per batch element, stored block-diagonally ----
    @pl.when(qi == 0)
    def _():
        k = k_ref[0]                                                    # (T, D)
        v = v_ref[0]
        w2 = w2_ref[0].astype(f32)                                      # (T, 1), weights**2 from wrapper
        kp = (jnp.dot(k, wk_ref[...], preferred_element_type=f32)
              + bk_ref[...]) * w2                                       # fold w**2 into K rows
        vp = jnp.dot(v, wv_ref[...], preferred_element_type=f32) + bv_ref[...]
        kp = kp.astype(cdt)
        vp = vp.astype(cdt)
        if gh > 1:
            # Off-diagonal blocks of the packed layout must be zero.  Re-zeroed
            # per batch element so a megacore split of the batch axis stays
            # correct (each core's first q-tile for a batch zeroes its scratch).
            kpack_ref[...] = jnp.zeros_like(kpack_ref)
            vpack_ref[...] = jnp.zeros_like(vpack_ref)
        for g in range(n_groups):
            for i in range(gh):
                h = g * gh + i
                col = slice(h * d_k, (h + 1) * d_k)
                rows = slice(i * T, (i + 1) * T)
                cols = slice(i * d_k, (i + 1) * d_k)
                kpack_ref[g, rows, cols] = kp[:, col]
                vpack_ref[g, rows, cols] = vp[:, col]

    # ---- Q projection for this tile (1/sqrt(d_k) folded into Wq / bq) ----
    q = q_ref[0]                                                        # (TQ, D)
    qp = (jnp.dot(q, wq_ref[...], preferred_element_type=f32)
          + bq_ref[...]).astype(cdt)

    bias = bias_ref[0]                                                  # (1, T) f32; -1e30 on masked keys

    # ---- grouped attention: one full-contraction QK^T and one packed PV per group ----
    for g in range(n_groups):
        base = g * gd
        # (TQ, gd) x (gh*T, gd)^T -> (TQ, gh*T); contraction = gh*d_k (full MXU fill).
        e = lax.dot_general(qp[:, base:base + gd], kpack_ref[g],
                            (((1,), (1,)), ((), ())),
                            preferred_element_type=f32)
        recips = []
        for i in range(gh):
            sl = slice(i * T, (i + 1) * T)
            eh = e[:, sl] + bias                                        # masked_fill as additive bias
            m = jnp.max(eh, axis=-1, keepdims=True)
            ph = jnp.exp((eh - m).astype(exp_dtype))                    # bf16 exp on v6e/v7x bf16 path
            l = jnp.sum(ph.astype(f32), axis=-1, keepdims=True)
            if approx_recip:
                recips.append(pl.reciprocal(l, approx=True))
            else:
                recips.append(1.0 / l)                                  # exact on the f32 path
            # Unnormalized probabilities; normalization folded into the PV output.
            p_ref[:, sl] = ph.astype(cdt)
        # Packed PV: (TQ, gh*T) x (gh*T, gd) -> per-head outputs land in their
        # own lane slice (block-diagonal V kills cross-head terms).
        ho = jnp.dot(p_ref[...], vpack_ref[g], preferred_element_type=f32)
        for i in range(gh):
            cols = slice(i * d_k, (i + 1) * d_k)
            hout_ref[:, base + i * d_k: base + (i + 1) * d_k] = (
                ho[:, cols] * recips[i]).astype(cdt)

    # ---- single output projection over all heads ----
    out = jnp.dot(hout_ref[...], wo_ref[...],
                  preferred_element_type=f32) + bo_ref[...]
    out_ref[0] = out.astype(out_ref.dtype)


def weighted_multihead_attention(q, k, v, weights, params, num_heads,
                                 *, compute_dtype=None, tq=None):
    b, t, d = q.shape
    assert d % num_heads == 0
    d_k = d // num_heads
    scale = float(d_k) ** -0.5
    if compute_dtype is None:
        compute_dtype = q.dtype
    cdt = jnp.dtype(compute_dtype)
    cd_sz = cdt.itemsize
    out_sz = jnp.dtype(q.dtype).itemsize
    f32 = jnp.float32

    # ---- chip-dependent tiling / packing parameters ----
    mxu = _mxu_width()
    gh = max(1, math.gcd(num_heads, max(1, mxu // d_k)))   # heads packed per MXU call
    gd = gh * d_k
    n_groups = num_heads // gh
    vmem_cap = int(0.80 * _vmem_capacity_bytes())          # headroom for Mosaic internal scratch

    def _vmem_need(tq_):
        io = (2 * tq_ * d * cd_sz            # q tile (double-buffered)
              + 2 * 2 * t * d * cd_sz        # k, v (double-buffered)
              + 2 * (t * 4 + t * 4)          # w**2 column + mask bias (f32)
              + 2 * tq_ * d * out_sz)        # output tile
        consts = 4 * d * d * cd_sz + 4 * d * 4        # single-buffered weights/biases
        scratch = (2 * gh * t * d * cd_sz             # packed K / V
                   + tq_ * gh * t * cd_sz             # packed probabilities
                   + tq_ * d * cd_sz)                 # head outputs
        transient = tq_ * gh * t * 4                  # f32 packed-energy value
        return io + consts + scratch + transient

    if tq is None:
        if t <= 512 or t % 128 != 0:
            tq = t
        else:
            candidates = (512, 256, 128) if mxu == 256 else (256, 128)
            tq = 128
            for cand in candidates:
                if t % cand == 0 and _vmem_need(cand) <= int(0.85 * vmem_cap):
                    tq = cand
                    break
    assert t % tq == 0, "query tile must divide the sequence length"
    if tq < t:
        sub = 16 if cd_sz == 2 else 8   # bf16 packs 2 rows per sublane
        assert tq % sub == 0 and d % 128 == 0, "sub-sequence tiles must be tile-aligned"
    nq = t // tq
    vmem_limit = int(min(max(int(1.25 * _vmem_need(tq)), 8 * 2 ** 20), vmem_cap))

    # ---- parameter prep: pre-transpose, fold softmax scale, precompute w**2 ----
    wq, bq, wk, bk, wv, bv, wo, bo = params
    wq_t = (wq.T * scale).astype(compute_dtype)
    wk_t = wk.T.astype(compute_dtype)
    wv_t = wv.T.astype(compute_dtype)
    wo_t = wo.T.astype(compute_dtype)
    bq_s = (bq * scale).reshape(1, d).astype(f32)
    bk_r = bk.reshape(1, d).astype(f32)
    bv_r = bv.reshape(1, d).astype(f32)
    bo_r = bo.reshape(1, d).astype(f32)

    qc = q.astype(compute_dtype)
    kc = k.astype(compute_dtype)
    vc = v.astype(compute_dtype)
    w2_col = (weights.astype(f32) ** 2).reshape(b, t, 1)            # w**2 precomputed in wrapper
    # masked_fill(weights < 1e-5, -inf) as an additive bias; finite -1e30 so a
    # fully-masked query row degrades to uniform attention instead of NaN.
    mask_bias = jnp.where(weights < 1e-5, -1e30, 0.0).astype(f32).reshape(b, 1, t)

    # bf16 exp only on 256-wide-MXU chips (v6e/v7x have a bf16 EUP; v5e does not).
    exp_dtype = compute_dtype if (cd_sz == 2 and mxu == 256) else jnp.float32

    kernel = functools.partial(_wmha_kernel, num_heads=num_heads, d_k=d_k,
                               heads_per_group=gh, seq_len=t,
                               approx_recip=(cd_sz == 2), exp_dtype=exp_dtype)

    cost = pl.CostEstimate(
        flops=int(8 * b * t * d * d + 4 * b * t * t * d),
        transcendentals=int(b * num_heads * t * t),
        bytes_accessed=int(b * t * d * (3 * cd_sz + out_sz)
                           + 4 * d * d * cd_sz + 4 * d * 4 + 2 * b * t * 4),
    )

    def build(single_buffer_consts):
        def const_spec(shape):
            if single_buffer_consts:
                # Block index never changes -> single-buffer to halve VMEM footprint.
                return pl.BlockSpec(shape, lambda i, qi: (0, 0),
                                    pipeline_mode=pl.Buffered(1))
            return pl.BlockSpec(shape, lambda i, qi: (0, 0))

        grid_spec = pltpu.PrefetchScalarGridSpec(
            num_scalar_prefetch=0,
            grid=(b, nq),
            in_specs=[
                pl.BlockSpec((1, tq, d), lambda i, qi: (i, qi, 0)),   # q tile
                pl.BlockSpec((1, t, d), lambda i, qi: (i, 0, 0)),     # k (full seq per batch)
                pl.BlockSpec((1, t, d), lambda i, qi: (i, 0, 0)),     # v (full seq per batch)
                pl.BlockSpec((1, t, 1), lambda i, qi: (i, 0, 0)),     # per-key weight**2 column
                pl.BlockSpec((1, 1, t), lambda i, qi: (i, 0, 0)),     # additive mask bias row
                const_spec((d, d)), const_spec((1, d)),               # Wq^T * scale, bq * scale
                const_spec((d, d)), const_spec((1, d)),               # Wk^T, bk
                const_spec((d, d)), const_spec((1, d)),               # Wv^T, bv
                const_spec((d, d)), const_spec((1, d)),               # Wo^T, bo
            ],
            out_specs=pl.BlockSpec((1, tq, d), lambda i, qi: (i, qi, 0)),
            scratch_shapes=[
                pltpu.VMEM((n_groups, gh * t, gd), compute_dtype),    # block-diagonal packed K
                pltpu.VMEM((n_groups, gh * t, gd), compute_dtype),    # block-diagonal packed V
                pltpu.VMEM((tq, gh * t), compute_dtype),              # packed probabilities
                pltpu.VMEM((tq, d), compute_dtype),                   # per-head outputs (pre-Wo)
            ],
        )
        return pl.pallas_call(
            kernel,
            out_shape=jax.ShapeDtypeStruct((b, t, d), q.dtype),
            grid_spec=grid_spec,
            compiler_params=pltpu.CompilerParams(
                # q-tile axis carries the packed K/V scratch across steps -> "arbitrary".
                dimension_semantics=("parallel", "arbitrary"),
                vmem_limit_bytes=vmem_limit,
            ),
            cost_estimate=cost,
        )

    args = (qc, kc, vc, w2_col, mask_bias,
            wq_t, bq_s, wk_t, bk_r, wv_t, bv_r, wo_t, bo_r)
    try:
        return jax.block_until_ready(build(True)(*args))
    except Exception:
        # pl.Buffered(1) single-buffering unsupported on this jax/Mosaic build:
        # fall back to default double-buffered constant blocks.
        return jax.block_until_ready(build(False)(*args))


def _reference(q, k, v, weights, params, num_heads):
    # Pure-JAX reference replicating the PyTorch forward (eval mode).
    b, t, d = q.shape
    d_k = d // num_heads
    scale = d_k ** (-0.5)
    wq, bq, wk, bk, wv, bv, wo, bo = params
    qp = (q @ wq.T + bq).reshape(b, t, num_heads, d_k).transpose(0, 2, 1, 3)
    kp = (k @ wk.T + bk).reshape(b, t, num_heads, d_k).transpose(0, 2, 3, 1)
    vp = (v @ wv.T + bv).reshape(b, t, num_heads, d_k).transpose(0, 2, 1, 3)
    energy = jnp.matmul(qp, kp) * scale                      # (b, h, t, t)
    w = weights[:, None, None, :]
    energy = energy * w ** 2
    energy = jnp.where(w < 1e-5, -jnp.inf, energy)
    attn = jax.nn.softmax(energy, axis=-1)
    out = jnp.matmul(attn, vp).transpose(0, 2, 1, 3).reshape(b, t, d)
    return out @ wo.T + bo


if __name__ == "__main__":
    B, T, D, H = 2, 8, 32, 4
    key = jax.random.PRNGKey(0)
    ks = jax.random.split(key, 13)

    bound = 1.0 / (D ** 0.5)

    def lin(kw, kb):
        w = jax.random.uniform(kw, (D, D), jnp.float32, -bound, bound)
        bvec = jax.random.uniform(kb, (D,), jnp.float32, -bound, bound)
        return w, bvec

    wq, bq = lin(ks[0], ks[1])
    wk, bk = lin(ks[2], ks[3])
    wv, bv = lin(ks[4], ks[5])
    wo, bo = lin(ks[6], ks[7])
    params = (wq, bq, wk, bk, wv, bv, wo, bo)

    q = jax.random.normal(ks[8], (B, T, D), jnp.float32)
    k = jax.random.normal(ks[9], (B, T, D), jnp.float32)
    v = jax.random.normal(ks[10], (B, T, D), jnp.float32)
    weights = jax.random.uniform(ks[11], (B, T), jnp.float32, 0.2, 1.0)
    # exercise the mask path (some, but not all, keys masked in batch 0)
    weights = weights.at[0, :2].set(0.0)

    ref = _reference(q, k, v, weights, params, H)

    # f32 compute path (exact softmax reciprocal)
    out = weighted_multihead_attention(q, k, v, weights, params, H)
    out = jax.block_until_ready(out)
    assert out.shape == (B, T, D)
    assert jnp.allclose(out, ref, atol=1e-2, rtol=1e-2), "f32 path mismatch vs reference"

    # bf16 MXU operands / f32 accumulation path (softmax stats stay f32 in-kernel)
    out_bf16 = weighted_multihead_attention(q, k, v, weights, params, H,
                                            compute_dtype=jnp.bfloat16)
    out_bf16 = jax.block_until_ready(out_bf16)
    assert jnp.allclose(out_bf16, ref, atol=1e-1, rtol=1e-1), "bf16 path mismatch vs reference"

    print("KERNEL_OK")
</pallas_src>

<mosaic_0001>
module attributes {stable_mosaic.version = 11 : i64} {
  func.func @_wmha_kernel(%arg0: i32, %arg1: i32, %arg2: memref<1x8x32xf32, #tpu.memory_space<vmem>>, %arg3: memref<1x8x32xf32, #tpu.memory_space<vmem>>, %arg4: memref<1x8x32xf32, #tpu.memory_space<vmem>>, %arg5: memref<1x8x1xf32, #tpu.memory_space<vmem>>, %arg6: memref<1x1x8xf32, #tpu.memory_space<vmem>>, %arg7: memref<32x32xf32, #tpu.memory_space<vmem>>, %arg8: memref<1x32xf32, #tpu.memory_space<vmem>>, %arg9: memref<32x32xf32, #tpu.memory_space<vmem>>, %arg10: memref<1x32xf32, #tpu.memory_space<vmem>>, %arg11: memref<32x32xf32, #tpu.memory_space<vmem>>, %arg12: memref<1x32xf32, #tpu.memory_space<vmem>>, %arg13: memref<32x32xf32, #tpu.memory_space<vmem>>, %arg14: memref<1x32xf32, #tpu.memory_space<vmem>>, %arg15: memref<1x8x32xf32, #tpu.memory_space<vmem>>, %arg16: memref<1x32x32xf32, #tpu.memory_space<vmem>>, %arg17: memref<1x32x32xf32, #tpu.memory_space<vmem>>, %arg18: memref<8x32xf32, #tpu.memory_space<vmem>>, %arg19: memref<8x32xf32, #tpu.memory_space<vmem>>) attributes {dimension_semantics = [#tpu.dimension_semantics<parallel>, #tpu.dimension_semantics<arbitrary>], iteration_bounds = array<i64: 2, 1>, scalar_prefetch = 0 : i64, scratch_operands = 4 : i64, tpu.core_type = #tpu.core_type<tc>, window_params = [{transform_indices = @transform_0, window_bounds = array<i64: 1, 8, 32>}, {transform_indices = @transform_1, window_bounds = array<i64: 1, 8, 32>}, {transform_indices = @transform_2, window_bounds = array<i64: 1, 8, 32>}, {transform_indices = @transform_3, window_bounds = array<i64: 1, 8, 1>}, {transform_indices = @transform_4, window_bounds = array<i64: 1, 1, 8>}, {pipeline_mode = #tpu.pipeline_mode<synchronous>, transform_indices = @transform_5, window_bounds = array<i64: 32, 32>}, {pipeline_mode = #tpu.pipeline_mode<synchronous>, transform_indices = @transform_6, window_bounds = array<i64: 1, 32>}, {pipeline_mode = #tpu.pipeline_mode<synchronous>, transform_indices = @transform_7, window_bounds = array<i64: 32, 32>}, {pipeline_mode = #tpu.pipeline_mode<synchronous>, transform_indices = @transform_8, window_bounds = array<i64: 1, 32>}, {pipeline_mode = #tpu.pipeline_mode<synchronous>, transform_indices = @transform_9, window_bounds = array<i64: 32, 32>}, {pipeline_mode = #tpu.pipeline_mode<synchronous>, transform_indices = @transform_10, window_bounds = array<i64: 1, 32>}, {pipeline_mode = #tpu.pipeline_mode<synchronous>, transform_indices = @transform_11, window_bounds = array<i64: 32, 32>}, {pipeline_mode = #tpu.pipeline_mode<synchronous>, transform_indices = @transform_12, window_bounds = array<i64: 1, 32>}, {transform_indices = @transform_13, window_bounds = array<i64: 1, 8, 32>}]} {
    %c0_i32 = arith.constant 0 : i32
    %0 = arith.cmpi eq, %arg1, %c0_i32 : i32
    %1 = arith.extui %0 : i1 to i32
    %c0_i32_0 = arith.constant 0 : i32
    %2 = arith.cmpi ne, %1, %c0_i32_0 : i32
    scf.if %2 {
      %c0_55 = arith.constant 0 : index
      %c0_56 = arith.constant 0 : index
      %c0_57 = arith.constant 0 : index
      %96 = vector.load %arg3[%c0_55, %c0_56, %c0_57] : memref<1x8x32xf32, #tpu.memory_space<vmem>>, vector<1x8x32xf32>
      %97 = vector.shape_cast %96 : vector<1x8x32xf32> to vector<8x32xf32>
      %c0_58 = arith.constant 0 : index
      %c0_59 = arith.constant 0 : index
      %c0_60 = arith.constant 0 : index
      %98 = vector.load %arg4[%c0_58, %c0_59, %c0_60] : memref<1x8x32xf32, #tpu.memory_space<vmem>>, vector<1x8x32xf32>
      %99 = vector.shape_cast %98 : vector<1x8x32xf32> to vector<8x32xf32>
      %c0_61 = arith.constant 0 : index
      %c0_62 = arith.constant 0 : index
      %c0_63 = arith.constant 0 : index
      %100 = vector.load %arg5[%c0_61, %c0_62, %c0_63] : memref<1x8x1xf32, #tpu.memory_space<vmem>>, vector<1x8x1xf32>
      %101 = vector.shape_cast %100 : vector<1x8x1xf32> to vector<8x1xf32>
      %c0_64 = arith.constant 0 : index
      %c0_65 = arith.constant 0 : index
      %102 = vector.load %arg9[%c0_64, %c0_65] : memref<32x32xf32, #tpu.memory_space<vmem>>, vector<32x32xf32>
      %cst_66 = arith.constant dense<0.000000e+00> : vector<8x32xf32>
      %103 = tpu.matmul %97, %102, %cst_66 {dimension_numbers = #tpu.dot_dimension_numbers<[1], [0], [0], [1], [0, 0, 1, 1], [], []>} : vector<8x32xf32>, vector<32x32xf32>, vector<8x32xf32> -> vector<8x32xf32>
      %c0_67 = arith.constant 0 : index
      %c0_68 = arith.constant 0 : index
      %104 = vector.load %arg10[%c0_67, %c0_68] : memref<1x32xf32, #tpu.memory_space<vmem>>, vector<1x32xf32>
      %105 = vector.broadcast %104 : vector<1x32xf32> to vector<8x32xf32>
      %106 = arith.addf %103, %105 : vector<8x32xf32>
      %107 = vector.broadcast %101 : vector<8x1xf32> to vector<8x32xf32>
      %108 = arith.mulf %106, %107 : vector<8x32xf32>
      %c0_69 = arith.constant 0 : index
      %c0_70 = arith.constant 0 : index
      %109 = vector.load %arg11[%c0_69, %c0_70] : memref<32x32xf32, #tpu.memory_space<vmem>>, vector<32x32xf32>
      %cst_71 = arith.constant dense<0.000000e+00> : vector<8x32xf32>
      %110 = tpu.matmul %99, %109, %cst_71 {dimension_numbers = #tpu.dot_dimension_numbers<[1], [0], [0], [1], [0, 0, 1, 1], [], []>} : vector<8x32xf32>, vector<32x32xf32>, vector<8x32xf32> -> vector<8x32xf32>
      %c0_72 = arith.constant 0 : index
      %c0_73 = arith.constant 0 : index
      %111 = vector.load %arg12[%c0_72, %c0_73] : memref<1x32xf32, #tpu.memory_space<vmem>>, vector<1x32xf32>
      %112 = vector.broadcast %111 : vector<1x32xf32> to vector<8x32xf32>
      %113 = arith.addf %110, %112 : vector<8x32xf32>
      %cst_74 = arith.constant 0.000000e+00 : f32
      %114 = vector.broadcast %cst_74 : f32 to vector<1x32x32xf32>
      %c0_75 = arith.constant 0 : index
      %c0_76 = arith.constant 0 : index
      %c0_77 = arith.constant 0 : index
      %115 = vector.load %arg16[%c0_75, %c0_76, %c0_77] : memref<1x32x32xf32, #tpu.memory_space<vmem>>, vector<1x32x32xf32>
      tpu.vector_store %arg16[%c0_75, %c0_76, %c0_77], %114 {strides = array<i32>} : memref<1x32x32xf32, #tpu.memory_space<vmem>>, vector<1x32x32xf32>,
      %cst_78 = arith.constant 0.000000e+00 : f32
      %116 = vector.broadcast %cst_78 : f32 to vector<1x32x32xf32>
      %c0_79 = arith.constant 0 : index
      %c0_80 = arith.constant 0 : index
      %c0_81 = arith.constant 0 : index
      %117 = vector.load %arg17[%c0_79, %c0_80, %c0_81] : memref<1x32x32xf32, #tpu.memory_space<vmem>>, vector<1x32x32xf32>
      tpu.vector_store %arg17[%c0_79, %c0_80, %c0_81], %116 {strides = array<i32>} : memref<1x32x32xf32, #tpu.memory_space<vmem>>, vector<1x32x32xf32>,
      %118 = vector.extract_strided_slice %108 {offsets = [0, 0], sizes = [8, 8], strides = [1, 1]} : vector<8x32xf32> to vector<8x8xf32>
      %c0_82 = arith.constant 0 : index
      %c0_83 = arith.constant 0 : index
      %c0_84 = arith.constant 0 : index
      %119 = vector.load %arg16[%c0_82, %c0_83, %c0_84] : memref<1x32x32xf32, #tpu.memory_space<vmem>>, vector<1x8x8xf32>
      %120 = vector.shape_cast %119 : vector<1x8x8xf32> to vector<8x8xf32>
      %121 = vector.shape_cast %118 : vector<8x8xf32> to vector<1x8x8xf32>
      tpu.vector_store %arg16[%c0_82, %c0_83, %c0_84], %121 {strides = array<i32>} : memref<1x32x32xf32, #tpu.memory_space<vmem>>, vector<1x8x8xf32>,
      %122 = vector.extract_strided_slice %113 {offsets = [0, 0], sizes = [8, 8], strides = [1, 1]} : vector<8x32xf32> to vector<8x8xf32>
      %c0_85 = arith.constant 0 : index
      %c0_86 = arith.constant 0 : index
      %c0_87 = arith.constant 0 : index
      %123 = vector.load %arg17[%c0_85, %c0_86, %c0_87] : memref<1x32x32xf32, #tpu.memory_space<vmem>>, vector<1x8x8xf32>
      %124 = vector.shape_cast %123 : vector<1x8x8xf32> to vector<8x8xf32>
      %125 = vector.shape_cast %122 : vector<8x8xf32> to vector<1x8x8xf32>
      tpu.vector_store %arg17[%c0_85, %c0_86, %c0_87], %125 {strides = array<i32>} : memref<1x32x32xf32, #tpu.memory_space<vmem>>, vector<1x8x8xf32>,
      %126 = vector.extract_strided_slice %108 {offsets = [0, 8], sizes = [8, 8], strides = [1, 1]} : vector<8x32xf32> to vector<8x8xf32>
      %c0_88 = arith.constant 0 : index
      %c8_89 = arith.constant 8 : index
      %c8_90 = arith.constant 8 : index
      %127 = vector.load %arg16[%c0_88, %c8_89, %c8_90] : memref<1x32x32xf32, #tpu.memory_space<vmem>>, vector<1x8x8xf32>
      %128 = vector.shape_cast %127 : vector<1x8x8xf32> to vector<8x8xf32>
      %129 = vector.shape_cast %126 : vector<8x8xf32> to vector<1x8x8xf32>
      tpu.vector_store %arg16[%c0_88, %c8_89, %c8_90], %129 {strides = array<i32>} : memref<1x32x32xf32, #tpu.memory_space<vmem>>, vector<1x8x8xf32>,
      %130 = vector.extract_strided_slice %113 {offsets = [0, 8], sizes = [8, 8], strides = [1, 1]} : vector<8x32xf32> to vector<8x8xf32>
      %c0_91 = arith.constant 0 : index
      %c8_92 = arith.constant 8 : index
      %c8_93 = arith.constant 8 : index
      %131 = vector.load %arg17[%c0_91, %c8_92, %c8_93] : memref<1x32x32xf32, #tpu.memory_space<vmem>>, vector<1x8x8xf32>
      %132 = vector.shape_cast %131 : vector<1x8x8xf32> to vector<8x8xf32>
      %133 = vector.shape_cast %130 : vector<8x8xf32> to vector<1x8x8xf32>
      tpu.vector_store %arg17[%c0_91, %c8_92, %c8_93], %133 {strides = array<i32>} : memref<1x32x32xf32, #tpu.memory_space<vmem>>, vector<1x8x8xf32>,
      %134 = vector.extract_strided_slice %108 {offsets = [0, 16], sizes = [8, 8], strides = [1, 1]} : vector<8x32xf32> to vector<8x8xf32>
      %c0_94 = arith.constant 0 : index
      %c16_95 = arith.constant 16 : index
      %c16_96 = arith.constant 16 : index
      %135 = vector.load %arg16[%c0_94, %c16_95, %c16_96] : memref<1x32x32xf32, #tpu.memory_space<vmem>>, vector<1x8x8xf32>
      %136 = vector.shape_cast %135 : vector<1x8x8xf32> to vector<8x8xf32>
      %137 = vector.shape_cast %134 : vector<8x8xf32> to vector<1x8x8xf32>
      tpu.vector_store %arg16[%c0_94, %c16_95, %c16_96], %137 {strides = array<i32>} : memref<1x32x32xf32, #tpu.memory_space<vmem>>, vector<1x8x8xf32>,
      %138 = vector.extract_strided_slice %113 {offsets = [0, 16], sizes = [8, 8], strides = [1, 1]} : vector<8x32xf32> to vector<8x8xf32>
      %c0_97 = arith.constant 0 : index
      %c16_98 = arith.constant 16 : index
      %c16_99 = arith.constant 16 : index
      %139 = vector.load %arg17[%c0_97, %c16_98, %c16_99] : memref<1x32x32xf32, #tpu.memory_space<vmem>>, vector<1x8x8xf32>
      %140 = vector.shape_cast %139 : vector<1x8x8xf32> to vector<8x8xf32>
      %141 = vector.shape_cast %138 : vector<8x8xf32> to vector<1x8x8xf32>
      tpu.vector_store %arg17[%c0_97, %c16_98, %c16_99], %141 {strides = array<i32>} : memref<1x32x32xf32, #tpu.memory_space<vmem>>, vector<1x8x8xf32>,
      %142 = vector.extract_strided_slice %108 {offsets = [0, 24], sizes = [8, 8], strides = [1, 1]} : vector<8x32xf32> to vector<8x8xf32>
      %c0_100 = arith.constant 0 : index
      %c24_101 = arith.constant 24 : index
      %c24_102 = arith.constant 24 : index
      %143 = vector.load %arg16[%c0_100, %c24_101, %c24_102] : memref<1x32x32xf32, #tpu.memory_space<vmem>>, vector<1x8x8xf32>
      %144 = vector.shape_cast %143 : vector<1x8x8xf32> to vector<8x8xf32>
      %145 = vector.shape_cast %142 : vector<8x8xf32> to vector<1x8x8xf32>
      tpu.vector_store %arg16[%c0_100, %c24_101, %c24_102], %145 {strides = array<i32>} : memref<1x32x32xf32, #tpu.memory_space<vmem>>, vector<1x8x8xf32>,
      %146 = vector.extract_strided_slice %113 {offsets = [0, 24], sizes = [8, 8], strides = [1, 1]} : vector<8x32xf32> to vector<8x8xf32>
      %c0_103 = arith.constant 0 : index
      %c24_104 = arith.constant 24 : index
      %c24_105 = arith.constant 24 : index
      %147 = vector.load %arg17[%c0_103, %c24_104, %c24_105] : memref<1x32x32xf32, #tpu.memory_space<vmem>>, vector<1x8x8xf32>
      %148 = vector.shape_cast %147 : vector<1x8x8xf32> to vector<8x8xf32>
      %149 = vector.shape_cast %146 : vector<8x8xf32> to vector<1x8x8xf32>
      tpu.vector_store %arg17[%c0_103, %c24_104, %c24_105], %149 {strides = array<i32>} : memref<1x32x32xf32, #tpu.memory_space<vmem>>, vector<1x8x8xf32>,
    } else {
    }
    %c0 = arith.constant 0 : index
    %c0_1 = arith.constant 0 : index
    %c0_2 = arith.constant 0 : index
    %3 = vector.load %arg2[%c0, %c0_1, %c0_2] : memref<1x8x32xf32, #tpu.memory_space<vmem>>, vector<1x8x32xf32>
    %4 = vector.shape_cast %3 : vector<1x8x32xf32> to vector<8x32xf32>
    %c0_3 = arith.constant 0 : index
    %c0_4 = arith.constant 0 : index
    %5 = vector.load %arg7[%c0_3, %c0_4] : memref<32x32xf32, #tpu.memory_space<vmem>>, vector<32x32xf32>
    %cst = arith.constant dense<0.000000e+00> : vector<8x32xf32>
    %6 = tpu.matmul %4, %5, %cst {dimension_numbers = #tpu.dot_dimension_numbers<[1], [0], [0], [1], [0, 0, 1, 1], [], []>} : vector<8x32xf32>, vector<32x32xf32>, vector<8x32xf32> -> vector<8x32xf32>
    %c0_5 = arith.constant 0 : index
    %c0_6 = arith.constant 0 : index
    %7 = vector.load %arg8[%c0_5, %c0_6] : memref<1x32xf32, #tpu.memory_space<vmem>>, vector<1x32xf32>
    %8 = vector.broadcast %7 : vector<1x32xf32> to vector<8x32xf32>
    %9 = arith.addf %6, %8 : vector<8x32xf32>
    %c0_7 = arith.constant 0 : index
    %c0_8 = arith.constant 0 : index
    %c0_9 = arith.constant 0 : index
    %10 = vector.load %arg6[%c0_7, %c0_8, %c0_9] : memref<1x1x8xf32, #tpu.memory_space<vmem>>, vector<1x1x8xf32>
    %11 = vector.shape_cast %10 : vector<1x1x8xf32> to vector<1x8xf32>
    %c0_10 = arith.constant 0 : index
    %c0_11 = arith.constant 0 : index
    %c0_12 = arith.constant 0 : index
    %12 = vector.load %arg16[%c0_10, %c0_11, %c0_12] : memref<1x32x32xf32, #tpu.memory_space<vmem>>, vector<1x32x32xf32>
    %13 = vector.shape_cast %12 : vector<1x32x32xf32> to vector<32x32xf32>
    %cst_13 = arith.constant dense<0.000000e+00> : vector<8x32xf32>
    %14 = tpu.matmul %9, %13, %cst_13 {dimension_numbers = #tpu.dot_dimension_numbers<[1], [1], [0], [0], [0, 0, 1, 0], [], []>} : vector<8x32xf32>, vector<32x32xf32>, vector<8x32xf32> -> vector<8x32xf32>
    %15 = vector.extract_strided_slice %14 {offsets = [0, 0], sizes = [8, 8], strides = [1, 1]} : vector<8x32xf32> to vector<8x8xf32>
    %16 = vector.broadcast %11 : vector<1x8xf32> to vector<8x8xf32>
    %17 = arith.addf %15, %16 : vector<8x8xf32>
    %cst_14 = arith.constant dense<0xFF800000> : vector<8xf32>
    %18 = vector.multi_reduction <maximumf>, %17, %cst_14 [1] : vector<8x8xf32> to vector<8xf32>
    %19 = vector.shape_cast %18 : vector<8xf32> to vector<8x1xf32>
    %20 = vector.broadcast %19 : vector<8x1xf32> to vector<8x8xf32>
    %21 = arith.subf %17, %20 : vector<8x8xf32>
    %22 = math.exp %21 : vector<8x8xf32>
    %cst_15 = arith.constant dense<0.000000e+00> : vector<8xf32>
    %23 = vector.multi_reduction <add>, %22, %cst_15 [1] : vector<8x8xf32> to vector<8xf32>
    %24 = vector.shape_cast %23 : vector<8xf32> to vector<8x1xf32>
    %cst_16 = arith.constant 1.000000e+00 : f32
    %25 = vector.broadcast %cst_16 : f32 to vector<8x1xf32>
    %26 = arith.divf %25, %24 : vector<8x1xf32>
    %c0_17 = arith.constant 0 : index
    %c0_18 = arith.constant 0 : index
    %27 = vector.load %arg18[%c0_17, %c0_18] : memref<8x32xf32, #tpu.memory_space<vmem>>, vector<8x8xf32>
    tpu.vector_store %arg18[%c0_17, %c0_18], %22 {strides = array<i32>} : memref<8x32xf32, #tpu.memory_space<vmem>>, vector<8x8xf32>,
    %28 = vector.extract_strided_slice %14 {offsets = [0, 8], sizes = [8, 8], strides = [1, 1]} : vector<8x32xf32> to vector<8x8xf32>
    %29 = vector.broadcast %11 : vector<1x8xf32> to vector<8x8xf32>
    %30 = arith.addf %28, %29 : vector<8x8xf32>
    %cst_19 = arith.constant dense<0xFF800000> : vector<8xf32>
    %31 = vector.multi_reduction <maximumf>, %30, %cst_19 [1] : vector<8x8xf32> to vector<8xf32>
    %32 = vector.shape_cast %31 : vector<8xf32> to vector<8x1xf32>
    %33 = vector.broadcast %32 : vector<8x1xf32> to vector<8x8xf32>
    %34 = arith.subf %30, %33 : vector<8x8xf32>
    %35 = math.exp %34 : vector<8x8xf32>
    %cst_20 = arith.constant dense<0.000000e+00> : vector<8xf32>
    %36 = vector.multi_reduction <add>, %35, %cst_20 [1] : vector<8x8xf32> to vector<8xf32>
    %37 = vector.shape_cast %36 : vector<8xf32> to vector<8x1xf32>
    %cst_21 = arith.constant 1.000000e+00 : f32
    %38 = vector.broadcast %cst_21 : f32 to vector<8x1xf32>
    %39 = arith.divf %38, %37 : vector<8x1xf32>
    %c0_22 = arith.constant 0 : index
    %c8 = arith.constant 8 : index
    %40 = vector.load %arg18[%c0_22, %c8] : memref<8x32xf32, #tpu.memory_space<vmem>>, vector<8x8xf32>
    tpu.vector_store %arg18[%c0_22, %c8], %35 {strides = array<i32>} : memref<8x32xf32, #tpu.memory_space<vmem>>, vector<8x8xf32>,
    %41 = vector.extract_strided_slice %14 {offsets = [0, 16], sizes = [8, 8], strides = [1, 1]} : vector<8x32xf32> to vector<8x8xf32>
    %42 = vector.broadcast %11 : vector<1x8xf32> to vector<8x8xf32>
    %43 = arith.addf %41, %42 : vector<8x8xf32>
    %cst_23 = arith.constant dense<0xFF800000> : vector<8xf32>
    %44 = vector.multi_reduction <maximumf>, %43, %cst_23 [1] : vector<8x8xf32> to vector<8xf32>
    %45 = vector.shape_cast %44 : vector<8xf32> to vector<8x1xf32>
    %46 = vector.broadcast %45 : vector<8x1xf32> to vector<8x8xf32>
    %47 = arith.subf %43, %46 : vector<8x8xf32>
    %48 = math.exp %47 : vector<8x8xf32>
    %cst_24 = arith.constant dense<0.000000e+00> : vector<8xf32>
    %49 = vector.multi_reduction <add>, %48, %cst_24 [1] : vector<8x8xf32> to vector<8xf32>
    %50 = vector.shape_cast %49 : vector<8xf32> to vector<8x1xf32>
    %cst_25 = arith.constant 1.000000e+00 : f32
    %51 = vector.broadcast %cst_25 : f32 to vector<8x1xf32>
    %52 = arith.divf %51, %50 : vector<8x1xf32>
    %c0_26 = arith.constant 0 : index
    %c16 = arith.constant 16 : index
    %53 = vector.load %arg18[%c0_26, %c16] : memref<8x32xf32, #tpu.memory_space<vmem>>, vector<8x8xf32>
    tpu.vector_store %arg18[%c0_26, %c16], %48 {strides = array<i32>} : memref<8x32xf32, #tpu.memory_space<vmem>>, vector<8x8xf32>,
    %54 = vector.extract_strided_slice %14 {offsets = [0, 24], sizes = [8, 8], strides = [1, 1]} : vector<8x32xf32> to vector<8x8xf32>
    %55 = vector.broadcast %11 : vector<1x8xf32> to vector<8x8xf32>
    %56 = arith.addf %54, %55 : vector<8x8xf32>
    %cst_27 = arith.constant dense<0xFF800000> : vector<8xf32>
    %57 = vector.multi_reduction <maximumf>, %56, %cst_27 [1] : vector<8x8xf32> to vector<8xf32>
    %58 = vector.shape_cast %57 : vector<8xf32> to vector<8x1xf32>
    %59 = vector.broadcast %58 : vector<8x1xf32> to vector<8x8xf32>
    %60 = arith.subf %56, %59 : vector<8x8xf32>
    %61 = math.exp %60 : vector<8x8xf32>
    %cst_28 = arith.constant dense<0.000000e+00> : vector<8xf32>
    %62 = vector.multi_reduction <add>, %61, %cst_28 [1] : vector<8x8xf32> to vector<8xf32>
    %63 = vector.shape_cast %62 : vector<8xf32> to vector<8x1xf32>
    %cst_29 = arith.constant 1.000000e+00 : f32
    %64 = vector.broadcast %cst_29 : f32 to vector<8x1xf32>
    %65 = arith.divf %64, %63 : vector<8x1xf32>
    %c0_30 = arith.constant 0 : index
    %c24 = arith.constant 24 : index
    %66 = vector.load %arg18[%c0_30, %c24] : memref<8x32xf32, #tpu.memory_space<vmem>>, vector<8x8xf32>
    tpu.vector_store %arg18[%c0_30, %c24], %61 {strides = array<i32>} : memref<8x32xf32, #tpu.memory_space<vmem>>, vector<8x8xf32>,
    %c0_31 = arith.constant 0 : index
    %c0_32 = arith.constant 0 : index
    %67 = vector.load %arg18[%c0_31, %c0_32] : memref<8x32xf32, #tpu.memory_space<vmem>>, vector<8x32xf32>
    %c0_33 = arith.constant 0 : index
    %c0_34 = arith.constant 0 : index
    %c0_35 = arith.constant 0 : index
    %68 = vector.load %arg17[%c0_33, %c0_34, %c0_35] : memref<1x32x32xf32, #tpu.memory_space<vmem>>, vector<1x32x32xf32>
    %69 = vector.shape_cast %68 : vector<1x32x32xf32> to vector<32x32xf32>
    %cst_36 = arith.constant dense<0.000000e+00> : vector<8x32xf32>
    %70 = tpu.matmul %67, %69, %cst_36 {dimension_numbers = #tpu.dot_dimension_numbers<[1], [0], [0], [1], [0, 0, 1, 1], [], []>} : vector<8x32xf32>, vector<32x32xf32>, vector<8x32xf32> -> vector<8x32xf32>
    %71 = vector.extract_strided_slice %70 {offsets = [0, 0], sizes = [8, 8], strides = [1, 1]} : vector<8x32xf32> to vector<8x8xf32>
    %72 = vector.broadcast %26 : vector<8x1xf32> to vector<8x8xf32>
    %73 = arith.mulf %71, %72 : vector<8x8xf32>
    %c0_37 = arith.constant 0 : index
    %c0_38 = arith.constant 0 : index
    %74 = vector.load %arg19[%c0_37, %c0_38] : memref<8x32xf32, #tpu.memory_space<vmem>>, vector<8x8xf32>
    tpu.vector_store %arg19[%c0_37, %c0_38], %73 {strides = array<i32>} : memref<8x32xf32, #tpu.memory_space<vmem>>, vector<8x8xf32>,
    %75 = vector.extract_strided_slice %70 {offsets = [0, 8], sizes = [8, 8], strides = [1, 1]} : vector<8x32xf32> to vector<8x8xf32>
    %76 = vector.broadcast %39 : vector<8x1xf32> to vector<8x8xf32>
    %77 = arith.mulf %75, %76 : vector<8x8xf32>
    %c0_39 = arith.constant 0 : index
    %c8_40 = arith.constant 8 : index
    %78 = vector.load %arg19[%c0_39, %c8_40] : memref<8x32xf32, #tpu.memory_space<vmem>>, vector<8x8xf32>
    tpu.vector_store %arg19[%c0_39, %c8_40], %77 {strides = array<i32>} : memref<8x32xf32, #tpu.memory_space<vmem>>, vector<8x8xf32>,
    %79 = vector.extract_strided_slice %70 {offsets = [0, 16], sizes = [8, 8], strides = [1, 1]} : vector<8x32xf32> to vector<8x8xf32>
    %80 = vector.broadcast %52 : vector<8x1xf32> to vector<8x8xf32>
    %81 = arith.mulf %79, %80 : vector<8x8xf32>
    %c0_41 = arith.constant 0 : index
    %c16_42 = arith.constant 16 : index
    %82 = vector.load %arg19[%c0_41, %c16_42] : memref<8x32xf32, #tpu.memory_space<vmem>>, vector<8x8xf32>
    tpu.vector_store %arg19[%c0_41, %c16_42], %81 {strides = array<i32>} : memref<8x32xf32, #tpu.memory_space<vmem>>, vector<8x8xf32>,
    %83 = vector.extract_strided_slice %70 {offsets = [0, 24], sizes = [8, 8], strides = [1, 1]} : vector<8x32xf32> to vector<8x8xf32>
    %84 = vector.broadcast %65 : vector<8x1xf32> to vector<8x8xf32>
    %85 = arith.mulf %83, %84 : vector<8x8xf32>
    %c0_43 = arith.constant 0 : index
    %c24_44 = arith.constant 24 : index
    %86 = vector.load %arg19[%c0_43, %c24_44] : memref<8x32xf32, #tpu.memory_space<vmem>>, vector<8x8xf32>
    tpu.vector_store %arg19[%c0_43, %c24_44], %85 {strides = array<i32>} : memref<8x32xf32, #tpu.memory_space<vmem>>, vector<8x8xf32>,
    %c0_45 = arith.constant 0 : index
    %c0_46 = arith.constant 0 : index
    %87 = vector.load %arg19[%c0_45, %c0_46] : memref<8x32xf32, #tpu.memory_space<vmem>>, vector<8x32xf32>
    %c0_47 = arith.constant 0 : index
    %c0_48 = arith.constant 0 : index
    %88 = vector.load %arg13[%c0_47, %c0_48] : memref<32x32xf32, #tpu.memory_space<vmem>>, vector<32x32xf32>
    %cst_49 = arith.constant dense<0.000000e+00> : vector<8x32xf32>
    %89 = tpu.matmul %87, %88, %cst_49 {dimension_numbers = #tpu.dot_dimension_numbers<[1], [0], [0], [1], [0, 0, 1, 1], [], []>} : vector<8x32xf32>, vector<32x32xf32>, vector<8x32xf32> -> vector<8x32xf32>
    %c0_50 = arith.constant 0 : index
    %c0_51 = arith.constant 0 : index
    %90 = vector.load %arg14[%c0_50, %c0_51] : memref<1x32xf32, #tpu.memory_space<vmem>>, vector<1x32xf32>
    %91 = vector.broadcast %90 : vector<1x32xf32> to vector<8x32xf32>
    %92 = arith.addf %89, %91 : vector<8x32xf32>
    %c0_52 = arith.constant 0 : index
    %c0_53 = arith.constant 0 : index
    %c0_54 = arith.constant 0 : index
    %93 = vector.load %arg15[%c0_52, %c0_53, %c0_54] : memref<1x8x32xf32, #tpu.memory_space<vmem>>, vector<1x8x32xf32>
    %94 = vector.shape_cast %93 : vector<1x8x32xf32> to vector<8x32xf32>
    %95 = vector.shape_cast %92 : vector<8x32xf32> to vector<1x8x32xf32>
    tpu.vector_store %arg15[%c0_52, %c0_53, %c0_54], %95 {strides = array<i32>} : memref<1x8x32xf32, #tpu.memory_space<vmem>>, vector<1x8x32xf32>,
    return
  }
  func.func @transform_0(%arg0: i32, %arg1: i32) -> (i32, i32, i32) {
    %c0_i32 = arith.constant 0 : i32
    %c0_i32_0 = arith.constant 0 : i32
    return %arg0, %arg1, %c0_i32 : i32, i32, i32
  }
  func.func @transform_1(%arg0: i32, %arg1: i32) -> (i32, i32, i32) {
    %c0_i32 = arith.constant 0 : i32
    %c0_i32_0 = arith.constant 0 : i32
    %c0_i32_1 = arith.constant 0 : i32
    return %arg0, %c0_i32, %c0_i32_0 : i32, i32, i32
  }
  func.func @transform_2(%arg0: i32, %arg1: i32) -> (i32, i32, i32) {
    %c0_i32 = arith.constant 0 : i32
    %c0_i32_0 = arith.constant 0 : i32
    %c0_i32_1 = arith.constant 0 : i32
    return %arg0, %c0_i32, %c0_i32_0 : i32, i32, i32
  }
  func.func @transform_3(%arg0: i32, %arg1: i32) -> (i32, i32, i32) {
    %c0_i32 = arith.constant 0 : i32
    %c0_i32_0 = arith.constant 0 : i32
    %c0_i32_1 = arith.constant 0 : i32
    return %arg0, %c0_i32, %c0_i32_0 : i32, i32, i32
  }
  func.func @transform_4(%arg0: i32, %arg1: i32) -> (i32, i32, i32) {
    %c0_i32 = arith.constant 0 : i32
    %c0_i32_0 = arith.constant 0 : i32
    %c0_i32_1 = arith.constant 0 : i32
    return %arg0, %c0_i32, %c0_i32_0 : i32, i32, i32
  }
  func.func @transform_5(%arg0: i32, %arg1: i32) -> (i32, i32) {
    %c0_i32 = arith.constant 0 : i32
    %c0_i32_0 = arith.constant 0 : i32
    %c0_i32_1 = arith.constant 0 : i32
    return %c0_i32, %c0_i32_0 : i32, i32
  }
  func.func @transform_6(%arg0: i32, %arg1: i32) -> (i32, i32) {
    %c0_i32 = arith.constant 0 : i32
    %c0_i32_0 = arith.constant 0 : i32
    %c0_i32_1 = arith.constant 0 : i32
    return %c0_i32, %c0_i32_0 : i32, i32
  }
  func.func @transform_7(%arg0: i32, %arg1: i32) -> (i32, i32) {
    %c0_i32 = arith.constant 0 : i32
    %c0_i32_0 = arith.constant 0 : i32
    %c0_i32_1 = arith.constant 0 : i32
    return %c0_i32, %c0_i32_0 : i32, i32
  }
  func.func @transform_8(%arg0: i32, %arg1: i32) -> (i32, i32) {
    %c0_i32 = arith.constant 0 : i32
    %c0_i32_0 = arith.constant 0 : i32
    %c0_i32_1 = arith.constant 0 : i32
    return %c0_i32, %c0_i32_0 : i32, i32
  }
  func.func @transform_9(%arg0: i32, %arg1: i32) -> (i32, i32) {
    %c0_i32 = arith.constant 0 : i32
    %c0_i32_0 = arith.constant 0 : i32
    %c0_i32_1 = arith.constant 0 : i32
    return %c0_i32, %c0_i32_0 : i32, i32
  }
  func.func @transform_10(%arg0: i32, %arg1: i32) -> (i32, i32) {
    %c0_i32 = arith.constant 0 : i32
    %c0_i32_0 = arith.constant 0 : i32
    %c0_i32_1 = arith.constant 0 : i32
    return %c0_i32, %c0_i32_0 : i32, i32
  }
  func.func @transform_11(%arg0: i32, %arg1: i32) -> (i32, i32) {
    %c0_i32 = arith.constant 0 : i32
    %c0_i32_0 = arith.constant 0 : i32
    %c0_i32_1 = arith.constant 0 : i32
    return %c0_i32, %c0_i32_0 : i32, i32
  }
  func.func @transform_12(%arg0: i32, %arg1: i32) -> (i32, i32) {
    %c0_i32 = arith.constant 0 : i32
    %c0_i32_0 = arith.constant 0 : i32
    %c0_i32_1 = arith.constant 0 : i32
    return %c0_i32, %c0_i32_0 : i32, i32
  }
  func.func @transform_13(%arg0: i32, %arg1: i32) -> (i32, i32, i32) {
    %c0_i32 = arith.constant 0 : i32
    %c0_i32_0 = arith.constant 0 : i32
    return %arg0, %arg1, %c0_i32 : i32, i32, i32
  }
}

module attributes {stable_mosaic.version = 11 : i64} {
  func.func @_wmha_kernel(%arg0: i32, %arg1: i32, %arg2: memref<1x8x32xf32, #tpu.memory_space<vmem>>, %arg3: memref<1x8x32xf32, #tpu.memory_space<vmem>>, %arg4: memref<1x8x32xf32, #tpu.memory_space<vmem>>, %arg5: memref<1x8x1xf32, #tpu.memory_space<vmem>>, %arg6: memref<1x1x8xf32, #tpu.memory_space<vmem>>, %arg7: memref<32x32xf32, #tpu.memory_space<vmem>>, %arg8: memref<1x32xf32, #tpu.memory_space<vmem>>, %arg9: memref<32x32xf32, #tpu.memory_space<vmem>>, %arg10: memref<1x32xf32, #tpu.memory_space<vmem>>, %arg11: memref<32x32xf32, #tpu.memory_space<vmem>>, %arg12: memref<1x32xf32, #tpu.memory_space<vmem>>, %arg13: memref<32x32xf32, #tpu.memory_space<vmem>>, %arg14: memref<1x32xf32, #tpu.memory_space<vmem>>, %arg15: memref<1x8x32xf32, #tpu.memory_space<vmem>>, %arg16: memref<1x32x32xf32, #tpu.memory_space<vmem>>, %arg17: memref<1x32x32xf32, #tpu.memory_space<vmem>>, %arg18: memref<8x32xf32, #tpu.memory_space<vmem>>, %arg19: memref<8x32xf32, #tpu.memory_space<vmem>>) attributes {dimension_semantics = [#tpu.dimension_semantics<parallel>, #tpu.dimension_semantics<arbitrary>], iteration_bounds = array<i64: 2, 1>, scalar_prefetch = 0 : i64, scratch_operands = 4 : i64, tpu.core_type = #tpu.core_type<tc>, window_params = [{transform_indices = @transform_0, window_bounds = array<i64: 1, 8, 32>}, {transform_indices = @transform_1, window_bounds = array<i64: 1, 8, 32>}, {transform_indices = @transform_2, window_bounds = array<i64: 1, 8, 32>}, {transform_indices = @transform_3, window_bounds = array<i64: 1, 8, 1>}, {transform_indices = @transform_4, window_bounds = array<i64: 1, 1, 8>}, {pipeline_mode = #tpu.pipeline_mode<synchronous>, transform_indices = @transform_5, window_bounds = array<i64: 32, 32>}, {pipeline_mode = #tpu.pipeline_mode<synchronous>, transform_indices = @transform_6, window_bounds = array<i64: 1, 32>}, {pipeline_mode = #tpu.pipeline_mode<synchronous>, transform_indices = @transform_7, window_bounds = array<i64: 32, 32>}, {pipeline_mode = #tpu.pipeline_mode<synchronous>, transform_indices = @transform_8, window_bounds = array<i64: 1, 32>}, {pipeline_mode = #tpu.pipeline_mode<synchronous>, transform_indices = @transform_9, window_bounds = array<i64: 32, 32>}, {pipeline_mode = #tpu.pipeline_mode<synchronous>, transform_indices = @transform_10, window_bounds = array<i64: 1, 32>}, {pipeline_mode = #tpu.pipeline_mode<synchronous>, transform_indices = @transform_11, window_bounds = array<i64: 32, 32>}, {pipeline_mode = #tpu.pipeline_mode<synchronous>, transform_indices = @transform_12, window_bounds = array<i64: 1, 32>}, {transform_indices = @transform_13, window_bounds = array<i64: 1, 8, 32>}]} {
    %c0_i32 = arith.constant 0 : i32
    %0 = arith.cmpi eq, %arg1, %c0_i32 : i32
    %1 = arith.extui %0 : i1 to i32
    %c0_i32_0 = arith.constant 0 : i32
    %2 = arith.cmpi ne, %1, %c0_i32_0 : i32
    scf.if %2 {
      %c0_55 = arith.constant 0 : index
      %c0_56 = arith.constant 0 : index
      %c0_57 = arith.constant 0 : index
      %96 = vector.load %arg3[%c0_55, %c0_56, %c0_57] : memref<1x8x32xf32, #tpu.memory_space<vmem>>, vector<1x8x32xf32>
      %97 = vector.shape_cast %96 : vector<1x8x32xf32> to vector<8x32xf32>
      %c0_58 = arith.constant 0 : index
      %c0_59 = arith.constant 0 : index
      %c0_60 = arith.constant 0 : index
      %98 = vector.load %arg4[%c0_58, %c0_59, %c0_60] : memref<1x8x32xf32, #tpu.memory_space<vmem>>, vector<1x8x32xf32>
      %99 = vector.shape_cast %98 : vector<1x8x32xf32> to vector<8x32xf32>
      %c0_61 = arith.constant 0 : index
      %c0_62 = arith.constant 0 : index
      %c0_63 = arith.constant 0 : index
      %100 = vector.load %arg5[%c0_61, %c0_62, %c0_63] : memref<1x8x1xf32, #tpu.memory_space<vmem>>, vector<1x8x1xf32>
      %101 = vector.shape_cast %100 : vector<1x8x1xf32> to vector<8x1xf32>
      %c0_64 = arith.constant 0 : index
      %c0_65 = arith.constant 0 : index
      %102 = vector.load %arg9[%c0_64, %c0_65] : memref<32x32xf32, #tpu.memory_space<vmem>>, vector<32x32xf32>
      %cst_66 = arith.constant dense<0.000000e+00> : vector<8x32xf32>
      %103 = tpu.matmul %97, %102, %cst_66 {dimension_numbers = #tpu.dot_dimension_numbers<[1], [0], [0], [1], [0, 0, 1, 1], [], []>} : vector<8x32xf32>, vector<32x32xf32>, vector<8x32xf32> -> vector<8x32xf32>
      %c0_67 = arith.constant 0 : index
      %c0_68 = arith.constant 0 : index
      %104 = vector.load %arg10[%c0_67, %c0_68] : memref<1x32xf32, #tpu.memory_space<vmem>>, vector<1x32xf32>
      %105 = vector.broadcast %104 : vector<1x32xf32> to vector<8x32xf32>
      %106 = arith.addf %103, %105 : vector<8x32xf32>
      %107 = vector.broadcast %101 : vector<8x1xf32> to vector<8x32xf32>
      %108 = arith.mulf %106, %107 : vector<8x32xf32>
      %c0_69 = arith.constant 0 : index
      %c0_70 = arith.constant 0 : index
      %109 = vector.load %arg11[%c0_69, %c0_70] : memref<32x32xf32, #tpu.memory_space<vmem>>, vector<32x32xf32>
      %cst_71 = arith.constant dense<0.000000e+00> : vector<8x32xf32>
      %110 = tpu.matmul %99, %109, %cst_71 {dimension_numbers = #tpu.dot_dimension_numbers<[1], [0], [0], [1], [0, 0, 1, 1], [], []>} : vector<8x32xf32>, vector<32x32xf32>, vector<8x32xf32> -> vector<8x32xf32>
      %c0_72 = arith.constant 0 : index
      %c0_73 = arith.constant 0 : index
      %111 = vector.load %arg12[%c0_72, %c0_73] : memref<1x32xf32, #tpu.memory_space<vmem>>, vector<1x32xf32>
      %112 = vector.broadcast %111 : vector<1x32xf32> to vector<8x32xf32>
      %113 = arith.addf %110, %112 : vector<8x32xf32>
      %cst_74 = arith.constant 0.000000e+00 : f32
      %114 = vector.broadcast %cst_74 : f32 to vector<1x32x32xf32>
      %c0_75 = arith.constant 0 : index
      %c0_76 = arith.constant 0 : index
      %c0_77 = arith.constant 0 : index
      %115 = vector.load %arg16[%c0_75, %c0_76, %c0_77] : memref<1x32x32xf32, #tpu.memory_space<vmem>>, vector<1x32x32xf32>
      tpu.vector_store %arg16[%c0_75, %c0_76, %c0_77], %114 {strides = array<i32>} : memref<1x32x32xf32, #tpu.memory_space<vmem>>, vector<1x32x32xf32>,
      %cst_78 = arith.constant 0.000000e+00 : f32
      %116 = vector.broadcast %cst_78 : f32 to vector<1x32x32xf32>
      %c0_79 = arith.constant 0 : index
      %c0_80 = arith.constant 0 : index
      %c0_81 = arith.constant 0 : index
      %117 = vector.load %arg17[%c0_79, %c0_80, %c0_81] : memref<1x32x32xf32, #tpu.memory_space<vmem>>, vector<1x32x32xf32>
      tpu.vector_store %arg17[%c0_79, %c0_80, %c0_81], %116 {strides = array<i32>} : memref<1x32x32xf32, #tpu.memory_space<vmem>>, vector<1x32x32xf32>,
      %118 = vector.extract_strided_slice %108 {offsets = [0, 0], sizes = [8, 8], strides = [1, 1]} : vector<8x32xf32> to vector<8x8xf32>
      %c0_82 = arith.constant 0 : index
      %c0_83 = arith.constant 0 : index
      %c0_84 = arith.constant 0 : index
      %119 = vector.load %arg16[%c0_82, %c0_83, %c0_84] : memref<1x32x32xf32, #tpu.memory_space<vmem>>, vector<1x8x8xf32>
      %120 = vector.shape_cast %119 : vector<1x8x8xf32> to vector<8x8xf32>
      %121 = vector.shape_cast %118 : vector<8x8xf32> to vector<1x8x8xf32>
      tpu.vector_store %arg16[%c0_82, %c0_83, %c0_84], %121 {strides = array<i32>} : memref<1x32x32xf32, #tpu.memory_space<vmem>>, vector<1x8x8xf32>,
      %122 = vector.extract_strided_slice %113 {offsets = [0, 0], sizes = [8, 8], strides = [1, 1]} : vector<8x32xf32> to vector<8x8xf32>
      %c0_85 = arith.constant 0 : index
      %c0_86 = arith.constant 0 : index
      %c0_87 = arith.constant 0 : index
      %123 = vector.load %arg17[%c0_85, %c0_86, %c0_87] : memref<1x32x32xf32, #tpu.memory_space<vmem>>, vector<1x8x8xf32>
      %124 = vector.shape_cast %123 : vector<1x8x8xf32> to vector<8x8xf32>
      %125 = vector.shape_cast %122 : vector<8x8xf32> to vector<1x8x8xf32>
      tpu.vector_store %arg17[%c0_85, %c0_86, %c0_87], %125 {strides = array<i32>} : memref<1x32x32xf32, #tpu.memory_space<vmem>>, vector<1x8x8xf32>,
      %126 = vector.extract_strided_slice %108 {offsets = [0, 8], sizes = [8, 8], strides = [1, 1]} : vector<8x32xf32> to vector<8x8xf32>
      %c0_88 = arith.constant 0 : index
      %c8_89 = arith.constant 8 : index
      %c8_90 = arith.constant 8 : index
      %127 = vector.load %arg16[%c0_88, %c8_89, %c8_90] : memref<1x32x32xf32, #tpu.memory_space<vmem>>, vector<1x8x8xf32>
      %128 = vector.shape_cast %127 : vector<1x8x8xf32> to vector<8x8xf32>
      %129 = vector.shape_cast %126 : vector<8x8xf32> to vector<1x8x8xf32>
      tpu.vector_store %arg16[%c0_88, %c8_89, %c8_90], %129 {strides = array<i32>} : memref<1x32x32xf32, #tpu.memory_space<vmem>>, vector<1x8x8xf32>,
      %130 = vector.extract_strided_slice %113 {offsets = [0, 8], sizes = [8, 8], strides = [1, 1]} : vector<8x32xf32> to vector<8x8xf32>
      %c0_91 = arith.constant 0 : index
      %c8_92 = arith.constant 8 : index
      %c8_93 = arith.constant 8 : index
      %131 = vector.load %arg17[%c0_91, %c8_92, %c8_93] : memref<1x32x32xf32, #tpu.memory_space<vmem>>, vector<1x8x8xf32>
      %132 = vector.shape_cast %131 : vector<1x8x8xf32> to vector<8x8xf32>
      %133 = vector.shape_cast %130 : vector<8x8xf32> to vector<1x8x8xf32>
      tpu.vector_store %arg17[%c0_91, %c8_92, %c8_93], %133 {strides = array<i32>} : memref<1x32x32xf32, #tpu.memory_space<vmem>>, vector<1x8x8xf32>,
      %134 = vector.extract_strided_slice %108 {offsets = [0, 16], sizes = [8, 8], strides = [1, 1]} : vector<8x32xf32> to vector<8x8xf32>
      %c0_94 = arith.constant 0 : index
      %c16_95 = arith.constant 16 : index
      %c16_96 = arith.constant 16 : index
      %135 = vector.load %arg16[%c0_94, %c16_95, %c16_96] : memref<1x32x32xf32, #tpu.memory_space<vmem>>, vector<1x8x8xf32>
      %136 = vector.shape_cast %135 : vector<1x8x8xf32> to vector<8x8xf32>
      %137 = vector.shape_cast %134 : vector<8x8xf32> to vector<1x8x8xf32>
      tpu.vector_store %arg16[%c0_94, %c16_95, %c16_96], %137 {strides = array<i32>} : memref<1x32x32xf32, #tpu.memory_space<vmem>>, vector<1x8x8xf32>,
      %138 = vector.extract_strided_slice %113 {offsets = [0, 16], sizes = [8, 8], strides = [1, 1]} : vector<8x32xf32> to vector<8x8xf32>
      %c0_97 = arith.constant 0 : index
      %c16_98 = arith.constant 16 : index
      %c16_99 = arith.constant 16 : index
      %139 = vector.load %arg17[%c0_97, %c16_98, %c16_99] : memref<1x32x32xf32, #tpu.memory_space<vmem>>, vector<1x8x8xf32>
      %140 = vector.shape_cast %139 : vector<1x8x8xf32> to vector<8x8xf32>
      %141 = vector.shape_cast %138 : vector<8x8xf32> to vector<1x8x8xf32>
      tpu.vector_store %arg17[%c0_97, %c16_98, %c16_99], %141 {strides = array<i32>} : memref<1x32x32xf32, #tpu.memory_space<vmem>>, vector<1x8x8xf32>,
      %142 = vector.extract_strided_slice %108 {offsets = [0, 24], sizes = [8, 8], strides = [1, 1]} : vector<8x32xf32> to vector<8x8xf32>
      %c0_100 = arith.constant 0 : index
      %c24_101 = arith.constant 24 : index
      %c24_102 = arith.constant 24 : index
      %143 = vector.load %arg16[%c0_100, %c24_101, %c24_102] : memref<1x32x32xf32, #tpu.memory_space<vmem>>, vector<1x8x8xf32>
      %144 = vector.shape_cast %143 : vector<1x8x8xf32> to vector<8x8xf32>
      %145 = vector.shape_cast %142 : vector<8x8xf32> to vector<1x8x8xf32>
      tpu.vector_store %arg16[%c0_100, %c24_101, %c24_102], %145 {strides = array<i32>} : memref<1x32x32xf32, #tpu.memory_space<vmem>>, vector<1x8x8xf32>,
      %146 = vector.extract_strided_slice %113 {offsets = [0, 24], sizes = [8, 8], strides = [1, 1]} : vector<8x32xf32> to vector<8x8xf32>
      %c0_103 = arith.constant 0 : index
      %c24_104 = arith.constant 24 : index
      %c24_105 = arith.constant 24 : index
      %147 = vector.load %arg17[%c0_103, %c24_104, %c24_105] : memref<1x32x32xf32, #tpu.memory_space<vmem>>, vector<1x8x8xf32>
      %148 = vector.shape_cast %147 : vector<1x8x8xf32> to vector<8x8xf32>
      %149 = vector.shape_cast %146 : vector<8x8xf32> to vector<1x8x8xf32>
      tpu.vector_store %arg17[%c0_103, %c24_104, %c24_105], %149 {strides = array<i32>} : memref<1x32x32xf32, #tpu.memory_space<vmem>>, vector<1x8x8xf32>,
    } else {
    }
    %c0 = arith.constant 0 : index
    %c0_1 = arith.constant 0 : index
    %c0_2 = arith.constant 0 : index
    %3 = vector.load %arg2[%c0, %c0_1, %c0_2] : memref<1x8x32xf32, #tpu.memory_space<vmem>>, vector<1x8x32xf32>
    %4 = vector.shape_cast %3 : vector<1x8x32xf32> to vector<8x32xf32>
    %c0_3 = arith.constant 0 : index
    %c0_4 = arith.constant 0 : index
    %5 = vector.load %arg7[%c0_3, %c0_4] : memref<32x32xf32, #tpu.memory_space<vmem>>, vector<32x32xf32>
    %cst = arith.constant dense<0.000000e+00> : vector<8x32xf32>
    %6 = tpu.matmul %4, %5, %cst {dimension_numbers = #tpu.dot_dimension_numbers<[1], [0], [0], [1], [0, 0, 1, 1], [], []>} : vector<8x32xf32>, vector<32x32xf32>, vector<8x32xf32> -> vector<8x32xf32>
    %c0_5 = arith.constant 0 : index
    %c0_6 = arith.constant 0 : index
    %7 = vector.load %arg8[%c0_5, %c0_6] : memref<1x32xf32, #tpu.memory_space<vmem>>, vector<1x32xf32>
    %8 = vector.broadcast %7 : vector<1x32xf32> to vector<8x32xf32>
    %9 = arith.addf %6, %8 : vector<8x32xf32>
    %c0_7 = arith.constant 0 : index
    %c0_8 = arith.constant 0 : index
    %c0_9 = arith.constant 0 : index
    %10 = vector.load %arg6[%c0_7, %c0_8, %c0_9] : memref<1x1x8xf32, #tpu.memory_space<vmem>>, vector<1x1x8xf32>
    %11 = vector.shape_cast %10 : vector<1x1x8xf32> to vector<1x8xf32>
    %c0_10 = arith.constant 0 : index
    %c0_11 = arith.constant 0 : index
    %c0_12 = arith.constant 0 : index
    %12 = vector.load %arg16[%c0_10, %c0_11, %c0_12] : memref<1x32x32xf32, #tpu.memory_space<vmem>>, vector<1x32x32xf32>
    %13 = vector.shape_cast %12 : vector<1x32x32xf32> to vector<32x32xf32>
    %cst_13 = arith.constant dense<0.000000e+00> : vector<8x32xf32>
    %14 = tpu.matmul %9, %13, %cst_13 {dimension_numbers = #tpu.dot_dimension_numbers<[1], [1], [0], [0], [0, 0, 1, 0], [], []>} : vector<8x32xf32>, vector<32x32xf32>, vector<8x32xf32> -> vector<8x32xf32>
    %15 = vector.extract_strided_slice %14 {offsets = [0, 0], sizes = [8, 8], strides = [1, 1]} : vector<8x32xf32> to vector<8x8xf32>
    %16 = vector.broadcast %11 : vector<1x8xf32> to vector<8x8xf32>
    %17 = arith.addf %15, %16 : vector<8x8xf32>
    %cst_14 = arith.constant dense<0xFF800000> : vector<8xf32>
    %18 = vector.multi_reduction <maximumf>, %17, %cst_14 [1] : vector<8x8xf32> to vector<8xf32>
    %19 = vector.shape_cast %18 : vector<8xf32> to vector<8x1xf32>
    %20 = vector.broadcast %19 : vector<8x1xf32> to vector<8x8xf32>
    %21 = arith.subf %17, %20 : vector<8x8xf32>
    %22 = math.exp %21 : vector<8x8xf32>
    %cst_15 = arith.constant dense<0.000000e+00> : vector<8xf32>
    %23 = vector.multi_reduction <add>, %22, %cst_15 [1] : vector<8x8xf32> to vector<8xf32>
    %24 = vector.shape_cast %23 : vector<8xf32> to vector<8x1xf32>
    %cst_16 = arith.constant 1.000000e+00 : f32
    %25 = vector.broadcast %cst_16 : f32 to vector<8x1xf32>
    %26 = arith.divf %25, %24 : vector<8x1xf32>
    %c0_17 = arith.constant 0 : index
    %c0_18 = arith.constant 0 : index
    %27 = vector.load %arg18[%c0_17, %c0_18] : memref<8x32xf32, #tpu.memory_space<vmem>>, vector<8x8xf32>
    tpu.vector_store %arg18[%c0_17, %c0_18], %22 {strides = array<i32>} : memref<8x32xf32, #tpu.memory_space<vmem>>, vector<8x8xf32>,
    %28 = vector.extract_strided_slice %14 {offsets = [0, 8], sizes = [8, 8], strides = [1, 1]} : vector<8x32xf32> to vector<8x8xf32>
    %29 = vector.broadcast %11 : vector<1x8xf32> to vector<8x8xf32>
    %30 = arith.addf %28, %29 : vector<8x8xf32>
    %cst_19 = arith.constant dense<0xFF800000> : vector<8xf32>
    %31 = vector.multi_reduction <maximumf>, %30, %cst_19 [1] : vector<8x8xf32> to vector<8xf32>
    %32 = vector.shape_cast %31 : vector<8xf32> to vector<8x1xf32>
    %33 = vector.broadcast %32 : vector<8x1xf32> to vector<8x8xf32>
    %34 = arith.subf %30, %33 : vector<8x8xf32>
    %35 = math.exp %34 : vector<8x8xf32>
    %cst_20 = arith.constant dense<0.000000e+00> : vector<8xf32>
    %36 = vector.multi_reduction <add>, %35, %cst_20 [1] : vector<8x8xf32> to vector<8xf32>
    %37 = vector.shape_cast %36 : vector<8xf32> to vector<8x1xf32>
    %cst_21 = arith.constant 1.000000e+00 : f32
    %38 = vector.broadcast %cst_21 : f32 to vector<8x1xf32>
    %39 = arith.divf %38, %37 : vector<8x1xf32>
    %c0_22 = arith.constant 0 : index
    %c8 = arith.constant 8 : index
    %40 = vector.load %arg18[%c0_22, %c8] : memref<8x32xf32, #tpu.memory_space<vmem>>, vector<8x8xf32>
    tpu.vector_store %arg18[%c0_22, %c8], %35 {strides = array<i32>} : memref<8x32xf32, #tpu.memory_space<vmem>>, vector<8x8xf32>,
    %41 = vector.extract_strided_slice %14 {offsets = [0, 16], sizes = [8, 8], strides = [1, 1]} : vector<8x32xf32> to vector<8x8xf32>
    %42 = vector.broadcast %11 : vector<1x8xf32> to vector<8x8xf32>
    %43 = arith.addf %41, %42 : vector<8x8xf32>
    %cst_23 = arith.constant dense<0xFF800000> : vector<8xf32>
    %44 = vector.multi_reduction <maximumf>, %43, %cst_23 [1] : vector<8x8xf32> to vector<8xf32>
    %45 = vector.shape_cast %44 : vector<8xf32> to vector<8x1xf32>
    %46 = vector.broadcast %45 : vector<8x1xf32> to vector<8x8xf32>
    %47 = arith.subf %43, %46 : vector<8x8xf32>
    %48 = math.exp %47 : vector<8x8xf32>
    %cst_24 = arith.constant dense<0.000000e+00> : vector<8xf32>
    %49 = vector.multi_reduction <add>, %48, %cst_24 [1] : vector<8x8xf32> to vector<8xf32>
    %50 = vector.shape_cast %49 : vector<8xf32> to vector<8x1xf32>
    %cst_25 = arith.constant 1.000000e+00 : f32
    %51 = vector.broadcast %cst_25 : f32 to vector<8x1xf32>
    %52 = arith.divf %51, %50 : vector<8x1xf32>
    %c0_26 = arith.constant 0 : index
    %c16 = arith.constant 16 : index
    %53 = vector.load %arg18[%c0_26, %c16] : memref<8x32xf32, #tpu.memory_space<vmem>>, vector<8x8xf32>
    tpu.vector_store %arg18[%c0_26, %c16], %48 {strides = array<i32>} : memref<8x32xf32, #tpu.memory_space<vmem>>, vector<8x8xf32>,
    %54 = vector.extract_strided_slice %14 {offsets = [0, 24], sizes = [8, 8], strides = [1, 1]} : vector<8x32xf32> to vector<8x8xf32>
    %55 = vector.broadcast %11 : vector<1x8xf32> to vector<8x8xf32>
    %56 = arith.addf %54, %55 : vector<8x8xf32>
    %cst_27 = arith.constant dense<0xFF800000> : vector<8xf32>
    %57 = vector.multi_reduction <maximumf>, %56, %cst_27 [1] : vector<8x8xf32> to vector<8xf32>
    %58 = vector.shape_cast %57 : vector<8xf32> to vector<8x1xf32>
    %59 = vector.broadcast %58 : vector<8x1xf32> to vector<8x8xf32>
    %60 = arith.subf %56, %59 : vector<8x8xf32>
    %61 = math.exp %60 : vector<8x8xf32>
    %cst_28 = arith.constant dense<0.000000e+00> : vector<8xf32>
    %62 = vector.multi_reduction <add>, %61, %cst_28 [1] : vector<8x8xf32> to vector<8xf32>
    %63 = vector.shape_cast %62 : vector<8xf32> to vector<8x1xf32>
    %cst_29 = arith.constant 1.000000e+00 : f32
    %64 = vector.broadcast %cst_29 : f32 to vector<8x1xf32>
    %65 = arith.divf %64, %63 : vector<8x1xf32>
    %c0_30 = arith.constant 0 : index
    %c24 = arith.constant 24 : index
    %66 = vector.load %arg18[%c0_30, %c24] : memref<8x32xf32, #tpu.memory_space<vmem>>, vector<8x8xf32>
    tpu.vector_store %arg18[%c0_30, %c24], %61 {strides = array<i32>} : memref<8x32xf32, #tpu.memory_space<vmem>>, vector<8x8xf32>,
    %c0_31 = arith.constant 0 : index
    %c0_32 = arith.constant 0 : index
    %67 = vector.load %arg18[%c0_31, %c0_32] : memref<8x32xf32, #tpu.memory_space<vmem>>, vector<8x32xf32>
    %c0_33 = arith.constant 0 : index
    %c0_34 = arith.constant 0 : index
    %c0_35 = arith.constant 0 : index
    %68 = vector.load %arg17[%c0_33, %c0_34, %c0_35] : memref<1x32x32xf32, #tpu.memory_space<vmem>>, vector<1x32x32xf32>
    %69 = vector.shape_cast %68 : vector<1x32x32xf32> to vector<32x32xf32>
    %cst_36 = arith.constant dense<0.000000e+00> : vector<8x32xf32>
    %70 = tpu.matmul %67, %69, %cst_36 {dimension_numbers = #tpu.dot_dimension_numbers<[1], [0], [0], [1], [0, 0, 1, 1], [], []>} : vector<8x32xf32>, vector<32x32xf32>, vector<8x32xf32> -> vector<8x32xf32>
    %71 = vector.extract_strided_slice %70 {offsets = [0, 0], sizes = [8, 8], strides = [1, 1]} : vector<8x32xf32> to vector<8x8xf32>
    %72 = vector.broadcast %26 : vector<8x1xf32> to vector<8x8xf32>
    %73 = arith.mulf %71, %72 : vector<8x8xf32>
    %c0_37 = arith.constant 0 : index
    %c0_38 = arith.constant 0 : index
    %74 = vector.load %arg19[%c0_37, %c0_38] : memref<8x32xf32, #tpu.memory_space<vmem>>, vector<8x8xf32>
    tpu.vector_store %arg19[%c0_37, %c0_38], %73 {strides = array<i32>} : memref<8x32xf32, #tpu.memory_space<vmem>>, vector<8x8xf32>,
    %75 = vector.extract_strided_slice %70 {offsets = [0, 8], sizes = [8, 8], strides = [1, 1]} : vector<8x32xf32> to vector<8x8xf32>
    %76 = vector.broadcast %39 : vector<8x1xf32> to vector<8x8xf32>
    %77 = arith.mulf %75, %76 : vector<8x8xf32>
    %c0_39 = arith.constant 0 : index
    %c8_40 = arith.constant 8 : index
    %78 = vector.load %arg19[%c0_39, %c8_40] : memref<8x32xf32, #tpu.memory_space<vmem>>, vector<8x8xf32>
    tpu.vector_store %arg19[%c0_39, %c8_40], %77 {strides = array<i32>} : memref<8x32xf32, #tpu.memory_space<vmem>>, vector<8x8xf32>,
    %79 = vector.extract_strided_slice %70 {offsets = [0, 16], sizes = [8, 8], strides = [1, 1]} : vector<8x32xf32> to vector<8x8xf32>
    %80 = vector.broadcast %52 : vector<8x1xf32> to vector<8x8xf32>
    %81 = arith.mulf %79, %80 : vector<8x8xf32>
    %c0_41 = arith.constant 0 : index
    %c16_42 = arith.constant 16 : index
    %82 = vector.load %arg19[%c0_41, %c16_42] : memref<8x32xf32, #tpu.memory_space<vmem>>, vector<8x8xf32>
    tpu.vector_store %arg19[%c0_41, %c16_42], %81 {strides = array<i32>} : memref<8x32xf32, #tpu.memory_space<vmem>>, vector<8x8xf32>,
    %83 = vector.extract_strided_slice %70 {offsets = [0, 24], sizes = [8, 8], strides = [1, 1]} : vector<8x32xf32> to vector<8x8xf32>
    %84 = vector.broadcast %65 : vector<8x1xf32> to vector<8x8xf32>
    %85 = arith.mulf %83, %84 : vector<8x8xf32>
    %c0_43 = arith.constant 0 : index
    %c24_44 = arith.constant 24 : index
    %86 = vector.load %arg19[%c0_43, %c24_44] : memref<8x32xf32, #tpu.memory_space<vmem>>, vector<8x8xf32>
    tpu.vector_store %arg19[%c0_43, %c24_44], %85 {strides = array<i32>} : memref<8x32xf32, #tpu.memory_space<vmem>>, vector<8x8xf32>,
    %c0_45 = arith.constant 0 : index
    %c0_46 = arith.constant 0 : index
    %87 = vector.load %arg19[%c0_45, %c0_46] : memref<8x32xf32, #tpu.memory_space<vmem>>, vector<8x32xf32>
    %c0_47 = arith.constant 0 : index
    %c0_48 = arith.constant 0 : index
    %88 = vector.load %arg13[%c0_47, %c0_48] : memref<32x32xf32, #tpu.memory_space<vmem>>, vector<32x32xf32>
    %cst_49 = arith.constant dense<0.000000e+00> : vector<8x32xf32>
    %89 = tpu.matmul %87, %88, %cst_49 {dimension_numbers = #tpu.dot_dimension_numbers<[1], [0], [0], [1], [0, 0, 1, 1], [], []>} : vector<8x32xf32>, vector<32x32xf32>, vector<8x32xf32> -> vector<8x32xf32>
    %c0_50 = arith.constant 0 : index
    %c0_51 = arith.constant 0 : index
    %90 = vector.load %arg14[%c0_50, %c0_51] : memref<1x32xf32, #tpu.memory_space<vmem>>, vector<1x32xf32>
    %91 = vector.broadcast %90 : vector<1x32xf32> to vector<8x32xf32>
    %92 = arith.addf %89, %91 : vector<8x32xf32>
    %c0_52 = arith.constant 0 : index
    %c0_53 = arith.constant 0 : index
    %c0_54 = arith.constant 0 : index
    %93 = vector.load %arg15[%c0_52, %c0_53, %c0_54] : memref<1x8x32xf32, #tpu.memory_space<vmem>>, vector<1x8x32xf32>
    %94 = vector.shape_cast %93 : vector<1x8x32xf32> to vector<8x32xf32>
    %95 = vector.shape_cast %92 : vector<8x32xf32> to vector<1x8x32xf32>
    tpu.vector_store %arg15[%c0_52, %c0_53, %c0_54], %95 {strides = array<i32>} : memref<1x8x32xf32, #tpu.memory_space<vmem>>, vector<1x8x32xf32>,
    return
  }
  func.func @transform_0(%arg0: i32, %arg1: i32) -> (i32, i32, i32) {
    %c0_i32 = arith.constant 0 : i32
    %c0_i32_0 = arith.constant 0 : i32
    return %arg0, %arg1, %c0_i32 : i32, i32, i32
  }
  func.func @transform_1(%arg0: i32, %arg1: i32) -> (i32, i32, i32) {
    %c0_i32 = arith.constant 0 : i32
    %c0_i32_0 = arith.constant 0 : i32
    %c0_i32_1 = arith.constant 0 : i32
    return %arg0, %c0_i32, %c0_i32_0 : i32, i32, i32
  }
  func.func @transform_2(%arg0: i32, %arg1: i32) -> (i32, i32, i32) {
    %c0_i32 = arith.constant 0 : i32
    %c0_i32_0 = arith.constant 0 : i32
    %c0_i32_1 = arith.constant 0 : i32
    return %arg0, %c0_i32, %c0_i32_0 : i32, i32, i32
  }
  func.func @transform_3(%arg0: i32, %arg1: i32) -> (i32, i32, i32) {
    %c0_i32 = arith.constant 0 : i32
    %c0_i32_0 = arith.constant 0 : i32
    %c0_i32_1 = arith.constant 0 : i32
    return %arg0, %c0_i32, %c0_i32_0 : i32, i32, i32
  }
  func.func @transform_4(%arg0: i32, %arg1: i32) -> (i32, i32, i32) {
    %c0_i32 = arith.constant 0 : i32
    %c0_i32_0 = arith.constant 0 : i32
    %c0_i32_1 = arith.constant 0 : i32
    return %arg0, %c0_i32, %c0_i32_0 : i32, i32, i32
  }
  func.func @transform_5(%arg0: i32, %arg1: i32) -> (i32, i32) {
    %c0_i32 = arith.constant 0 : i32
    %c0_i32_0 = arith.constant 0 : i32
    %c0_i32_1 = arith.constant 0 : i32
    return %c0_i32, %c0_i32_0 : i32, i32
  }
  func.func @transform_6(%arg0: i32, %arg1: i32) -> (i32, i32) {
    %c0_i32 = arith.constant 0 : i32
    %c0_i32_0 = arith.constant 0 : i32
    %c0_i32_1 = arith.constant 0 : i32
    return %c0_i32, %c0_i32_0 : i32, i32
  }
  func.func @transform_7(%arg0: i32, %arg1: i32) -> (i32, i32) {
    %c0_i32 = arith.constant 0 : i32
    %c0_i32_0 = arith.constant 0 : i32
    %c0_i32_1 = arith.constant 0 : i32
    return %c0_i32, %c0_i32_0 : i32, i32
  }
  func.func @transform_8(%arg0: i32, %arg1: i32) -> (i32, i32) {
    %c0_i32 = arith.constant 0 : i32
    %c0_i32_0 = arith.constant 0 : i32
    %c0_i32_1 = arith.constant 0 : i32
    return %c0_i32, %c0_i32_0 : i32, i32
  }
  func.func @transform_9(%arg0: i32, %arg1: i32) -> (i32, i32) {
    %c0_i32 = arith.constant 0 : i32
    %c0_i32_0 = arith.constant 0 : i32
    %c0_i32_1 = arith.constant 0 : i32
    return %c0_i32, %c0_i32_0 : i32, i32
  }
  func.func @transform_10(%arg0: i32, %arg1: i32) -> (i32, i32) {
    %c0_i32 = arith.constant 0 : i32
    %c0_i32_0 = arith.constant 0 : i32
    %c0_i32_1 = arith.constant 0 : i32
    return %c0_i32, %c0_i32_0 : i32, i32
  }
  func.func @transform_11(%arg0: i32, %arg1: i32) -> (i32, i32) {
    %c0_i32 = arith.constant 0 : i32
    %c0_i32_0 = arith.constant 0 : i32
    %c0_i32_1 = arith.constant 0 : i32
    return %c0_i32, %c0_i32_0 : i32, i32
  }
  func.func @transform_12(%arg0: i32, %arg1: i32) -> (i32, i32) {
    %c0_i32 = arith.constant 0 : i32
    %c0_i32_0 = arith.constant 0 : i32
    %c0_i32_1 = arith.constant 0 : i32
    return %c0_i32, %c0_i32_0 : i32, i32
  }
  func.func @transform_13(%arg0: i32, %arg1: i32) -> (i32, i32, i32) {
    %c0_i32 = arith.constant 0 : i32
    %c0_i32_0 = arith.constant 0 : i32
    return %arg0, %arg1, %c0_i32 : i32, i32, i32
  }
}

</mosaic_0001>

<llo_original>
// kernel: tpu_custom_call.1
$region0: #{tpu_custom_call.1}
  #allocation0 [shape = 'u32[]', space=smem, size = 0x4, offset = 0x4, fixed_abs, tag = 'smem constant byte address 0x4 - core index']
  #allocation1 [shape = 'u32[144,128]{1,0:T(1,128)}', space=vmem, size = 0x12000, scoped, tag = 'internal scratch']
  #allocation2 [shape = 'f32[1,32,32]{2,1,0:T(8,128)}', space=vmem, size = 0x4000, scoped, tag = 'scratch operand']
  #allocation3 [shape = 'f32[1,32,32]{2,1,0:T(8,128)}', space=vmem, size = 0x4000, scoped, tag = 'scratch operand']
  #allocation4 [shape = 'f32[8,32]{1,0:T(8,128)}', space=vmem, size = 0x1000, scoped, tag = 'scratch operand']
  #allocation5 [shape = 'f32[8,32]{1,0:T(8,128)}', space=vmem, size = 0x1000, scoped, tag = 'scratch operand']
  %s0 = inlined_call_operand.hbm [shape: f32[2,8,32], index: 0, kind: input, shape index: {}]
  %s1 = inlined_call_operand.hbm [shape: f32[2,8,32], index: 1, kind: input, shape index: {}]
  %s2 = inlined_call_operand.hbm [shape: f32[2,8,32], index: 2, kind: input, shape index: {}]
  %s3 = inlined_call_operand.vmem [shape: f32[2,8,1], index: 3, kind: input, shape index: {}]
  %s4 = inlined_call_operand.vmem [shape: f32[2,1,8], index: 4, kind: input, shape index: {}]
  %s5 = inlined_call_operand.vmem [shape: f32[32,32], index: 5, kind: input, shape index: {}]
  %s6 = inlined_call_operand.vmem [shape: f32[1,32], index: 6, kind: input, shape index: {}]
  %s7 = inlined_call_operand.hbm [shape: f32[32,32], index: 7, kind: input, shape index: {}]
  %s8 = inlined_call_operand.vmem [shape: f32[1,32], index: 8, kind: input, shape index: {}]
  %s9 = inlined_call_operand.hbm [shape: f32[32,32], index: 9, kind: input, shape index: {}]
  %s10 = inlined_call_operand.vmem [shape: f32[1,32], index: 10, kind: input, shape index: {}]
  %s11 = inlined_call_operand.hbm [shape: f32[32,32], index: 11, kind: input, shape index: {}]
  %s12 = inlined_call_operand.vmem [shape: f32[1,32], index: 12, kind: input, shape index: {}]
  %s13 = inlined_call_operand.hbm [shape: f32[2,8,32], index: 13, kind: output, shape index: {}]
  %s14 = sld [smem:[#allocation0]]
  $region113: #{tpu_custom_call.1} parent=0
    _
  %s16 = ssub.s32 1, %s14
  %s17 = scalar_select 0, %s16, %s14
  $region1: #{tpu_custom_call.1} parent=0
    #allocation6 [shape = 'u8[8192]{0}', space=vmem, size = 0x2000, scoped, tag = 'input window, operand 0']
    #allocation7 [shape = 's32[2]{0}', space=sflag, size = 0x8, scoped, tag = 'scoped memory for tpu_custom_call.1']
    #allocation8 [shape = 's32[2]{0}', space=sflag, size = 0x8, scoped, tag = 'scoped memory for tpu_custom_call.1']
    #allocation9 [shape = 'u8[8192]{0}', space=vmem, size = 0x2000, scoped, tag = 'input window, operand 1']
    #allocation10 [shape = 's32[2]{0}', space=sflag, size = 0x8, scoped, tag = 'scoped memory for tpu_custom_call.1']
    #allocation11 [shape = 'u8[8192]{0}', space=vmem, size = 0x2000, scoped, tag = 'input window, operand 2']
    #allocation12 [shape = 'u8[16384]{0}', space=vmem, size = 0x4000, scoped, tag = 'input window, operand 7, single buffered']
    #allocation13 [shape = 's32[1]{0}', space=sflag, size = 0x4, scoped, tag = 'scoped memory for tpu_custom_call.1']
    #allocation14 [shape = 'u8[16384]{0}', space=vmem, size = 0x4000, scoped, tag = 'input window, operand 9, single buffered']
    #allocation15 [shape = 'u8[16384]{0}', space=vmem, size = 0x4000, scoped, tag = 'input window, operand 11, single buffered']
    #allocation16 [shape = 's32[1]{0}', space=sflag, size = 0x4, scoped, tag = 'scoped memory for tpu_custom_call.1']
    #allocation17 [shape = 'u8[8192]{0}', space=vmem, size = 0x2000, scoped, tag = 'output window, operand 0']
    %18 = vsyncpa [#allocation7], 0
    %s19 = scalar_lea.sflag [#allocation7], 1
    %20 = vsyncpa %s19, 0
    %21 = vsyncpa [#allocation10], 0
    %s22 = scalar_lea.sflag [#allocation10], 1
    %23 = vsyncpa %s22, 0
    %24 = vsyncpa [#allocation13], 0
    %25 = vsyncpa [#allocation16], 0
    %26 = vsyncpa [#allocation8], 0
    %s27 = scalar_lea.sflag [#allocation8], 1
    %28 = vsyncpa %s27, 0
    loop: start=0, step=1, limit=4
    $region2: #{tpu_custom_call.1} parent=1 // loop_pre_header
      _
    $region3: #{tpu_custom_call.1} parent=1 // loop_header
      %s30 = sphi 0, %s34
      %p31 = scmp.ge.s32.totalorder %s30, 4
      %s37 = sphi 0, %s49
      %s38 = sphi 0, %s45
      %s39 = sphi 0, %s37
      %s40 = sphi 0, %s38
      %s41 = sphi 0, %s39
      %s42 = sphi 0, %s40
      %s54 = sphi 0, %s56
      %s57 = sphi 0, %s54
      %s58 = sphi 0, %s57
      %s74 = sphi 0, %s58
      %s80 = sphi 0, %s82
      %s83 = sphi 0, %s80
      %s84 = sphi 0, %s83
      %s100 = sphi 0, %s84
      %s106 = sphi 0, %s108
      %s109 = sphi 0, %s106
      %s110 = sphi 0, %s109
      %s126 = sphi 0, %s110
      %s132 = sphi 0, %s134
      %s135 = sphi 0, %s132
      %s136 = sphi 0, %s135
      %s152 = sphi 0, %s136
      %s158 = sphi 0, %s160
      %s161 = sphi 0, %s158
      %s162 = sphi 0, %s161
      %s178 = sphi 0, %s162
      %s182 = sphi 0, %s182
      %s184 = sphi 0, %s182
      %s185 = sphi 0, %s184
      %s199 = sphi 0, %s185
      %s203 = sphi 0, %s203
      %s205 = sphi 0, %s203
      %s206 = sphi 0, %s205
      %s220 = sphi 0, %s206
      %s224 = sphi 0, %s224
      %s226 = sphi 0, %s224
      %s227 = sphi 0, %s226
      %s241 = sphi 0, %s227
      %s245 = sphi 0, %s245
      %s247 = sphi 0, %s245
      %s248 = sphi 0, %s247
      %s262 = sphi 0, %s248
      %s266 = sphi 0, %s266
      %s268 = sphi 0, %s266
      %s269 = sphi 0, %s268
      %s283 = sphi 0, %s269
      %s287 = sphi 0, %s287
      %s289 = sphi 0, %s287
      %s290 = sphi 0, %s289
      %s304 = sphi 0, %s290
      %s308 = sphi 0, %s308
      %s310 = sphi 0, %s308
      %s311 = sphi 0, %s310
      %s325 = sphi 0, %s311
      %s329 = sphi 0, %s329
      %s331 = sphi 0, %s329
      %s332 = sphi 0, %s331
      %s346 = sphi 0, %s332
      %s354 = sphi 0, %s356
      %s357 = sphi 0, %s354
      %s358 = sphi 0, %s357
      %s374 = sphi 0, %s358
    $region4: #{tpu_custom_call.1} parent=1 // loop_header_branch
      %33 = sbr.rel (%p31) target = $region8
    $region5: #{tpu_custom_call.1} parent=1 // loop_body
      %s35 = ssub.s32 %s30, 1
      %s36 = ssub.s32 %s30, 2
      %s43 = sadd.s32 1, %s38
      %p44 = scmp.ge.s32.totalorder %s43, 1
      %s45 = scalar_select %p44, 0, %s43
      %s46 = sadd.s32 1, %s37
      %s47 = scalar_select %p44, %s46, %s37
      %p48 = scmp.ge.s32.totalorder %s47, 2
      %s49 = scalar_select %p48, 0, %s47
      %s50 = ssub.s32 %s37, %s49
      %s51 = ssub.s32 %s38, %s45
      %s52 = sor.u32 %s50, %s51
      %p53 = scmp.eq.s32.totalorder %s52, 0
      %s55 = sadd.s32 %s54, 1
      %s56 = scalar_select %p53, %s54, %s55
      %p59 = pneg %p53
      %p60 = scmp.eq.s32.totalorder %s30, 1
      %p61 = por %p59, %p60
      %p62 = scmp.ne.s32.totalorder %s54, %s57
      %p63 = scmp.eq.s32.totalorder %s30, 0
      %p64 = por %p62, %p63
      %p65 = scmp.ne.s32.totalorder %s54, %s57
      %p66 = scmp.eq.s32.totalorder %s35, 1
      %p67 = por %p65, %p66
      %p68 = scmp.ne.s32.totalorder %s57, %s58
      %p69 = scmp.eq.s32.totalorder %s35, 0
      %p70 = por %p68, %p69
      %p71 = scmp.ne.s32.totalorder %s57, %s58
      %p72 = scmp.eq.s32.totalorder %s36, 1
      %p73 = por %p71, %p72
      %p75 = scmp.ne.s32.totalorder %s58, %s74
      %p76 = scmp.eq.s32.totalorder %s36, 0
      %p77 = por %p75, %p76
      %s78 = ssub.s32 %s37, %s49
      %p79 = scmp.eq.s32.totalorder %s78, 0
      %s81 = sadd.s32 %s80, 1
      %s82 = scalar_select %p79, %s80, %s81
      %p85 = pneg %p79
      %p86 = scmp.eq.s32.totalorder %s30, 1
      %p87 = por %p85, %p86
      %p88 = scmp.ne.s32.totalorder %s80, %s83
      %p89 = scmp.eq.s32.totalorder %s30, 0
      %p90 = por %p88, %p89
      %p91 = scmp.ne.s32.totalorder %s80, %s83
      %p92 = scmp.eq.s32.totalorder %s35, 1
      %p93 = por %p91, %p92
      %p94 = scmp.ne.s32.totalorder %s83, %s84
      %p95 = scmp.eq.s32.totalorder %s35, 0
      %p96 = por %p94, %p95
      %p97 = scmp.ne.s32.totalorder %s83, %s84
      %p98 = scmp.eq.s32.totalorder %s36, 1
      %p99 = por %p97, %p98
      %p101 = scmp.ne.s32.totalorder %s84, %s100
      %p102 = scmp.eq.s32.totalorder %s36, 0
      %p103 = por %p101, %p102
      %s104 = ssub.s32 %s37, %s49
      %p105 = scmp.eq.s32.totalorder %s104, 0
      %s107 = sadd.s32 %s106, 1
      %s108 = scalar_select %p105, %s106, %s107
      %p111 = pneg %p105
      %p112 = scmp.eq.s32.totalorder %s30, 1
      %p113 = por %p111, %p112
      %p114 = scmp.ne.s32.totalorder %s106, %s109
      %p115 = scmp.eq.s32.totalorder %s30, 0
      %p116 = por %p114, %p115
      %p117 = scmp.ne.s32.totalorder %s106, %s109
      %p118 = scmp.eq.s32.totalorder %s35, 1
      %p119 = por %p117, %p118
      %p120 = scmp.ne.s32.totalorder %s109, %s110
      %p121 = scmp.eq.s32.totalorder %s35, 0
      %p122 = por %p120, %p121
      %p123 = scmp.ne.s32.totalorder %s109, %s110
      %p124 = scmp.eq.s32.totalorder %s36, 1
      %p125 = por %p123, %p124
      %p127 = scmp.ne.s32.totalorder %s110, %s126
      %p128 = scmp.eq.s32.totalorder %s36, 0
      %p129 = por %p127, %p128
      %s130 = ssub.s32 %s37, %s49
      %p131 = scmp.eq.s32.totalorder %s130, 0
      %s133 = sadd.s32 %s132, 1
      %s134 = scalar_select %p131, %s132, %s133
      %p137 = pneg %p131
      %p138 = scmp.eq.s32.totalorder %s30, 1
      %p139 = por %p137, %p138
      %p140 = scmp.ne.s32.totalorder %s132, %s135
      %p141 = scmp.eq.s32.totalorder %s30, 0
      %p142 = por %p140, %p141
      %p143 = scmp.ne.s32.totalorder %s132, %s135
      %p144 = scmp.eq.s32.totalorder %s35, 1
      %p145 = por %p143, %p144
      %p146 = scmp.ne.s32.totalorder %s135, %s136
      %p147 = scmp.eq.s32.totalorder %s35, 0
      %p148 = por %p146, %p147
      %p149 = scmp.ne.s32.totalorder %s135, %s136
      %p150 = scmp.eq.s32.totalorder %s36, 1
      %p151 = por %p149, %p150
      %p153 = scmp.ne.s32.totalorder %s136, %s152
      %p154 = scmp.eq.s32.totalorder %s36, 0
      %p155 = por %p153, %p154
      %s156 = ssub.s32 %s37, %s49
      %p157 = scmp.eq.s32.totalorder %s156, 0
      %s159 = sadd.s32 %s158, 1
      %s160 = scalar_select %p157, %s158, %s159
      %p163 = pneg %p157
      %p164 = scmp.eq.s32.totalorder %s30, 1
      %p165 = por %p163, %p164
      %p166 = scmp.ne.s32.totalorder %s158, %s161
      %p167 = scmp.eq.s32.totalorder %s30, 0
      %p168 = por %p166, %p167
      %p169 = scmp.ne.s32.totalorder %s158, %s161
      %p170 = scmp.eq.s32.totalorder %s35, 1
      %p171 = por %p169, %p170
      %p172 = scmp.ne.s32.totalorder %s161, %s162
      %p173 = scmp.eq.s32.totalorder %s35, 0
      %p174 = por %p172, %p173
      %p175 = scmp.ne.s32.totalorder %s161, %s162
      %p176 = scmp.eq.s32.totalorder %s36, 1
      %p177 = por %p175, %p176
      %p179 = scmp.ne.s32.totalorder %s162, %s178
      %p180 = scmp.eq.s32.totalorder %s36, 0
      %p181 = por %p179, %p180
      %s183 = sadd.s32 %s182, 1
      %p186 = scmp.eq.s32.totalorder %s30, 1
      %p187 = scmp.ne.s32.totalorder %s182, %s184
      %p188 = scmp.eq.s32.totalorder %s30, 0
      %p189 = por %p187, %p188
      %p190 = scmp.ne.s32.totalorder %s182, %s184
      %p191 = scmp.eq.s32.totalorder %s35, 1
      %p192 = por %p190, %p191
      %p193 = scmp.ne.s32.totalorder %s184, %s185
      %p194 = scmp.eq.s32.totalorder %s35, 0
      %p195 = por %p193, %p194
      %p196 = scmp.ne.s32.totalorder %s184, %s185
      %p197 = scmp.eq.s32.totalorder %s36, 1
      %p198 = por %p196, %p197
      %p200 = scmp.ne.s32.totalorder %s185, %s199
      %p201 = scmp.eq.s32.totalorder %s36, 0
      %p202 = por %p200, %p201
      %s204 = sadd.s32 %s203, 1
      %p207 = scmp.eq.s32.totalorder %s30, 1
      %p208 = scmp.ne.s32.totalorder %s203, %s205
      %p209 = scmp.eq.s32.totalorder %s30, 0
      %p210 = por %p208, %p209
      %p211 = scmp.ne.s32.totalorder %s203, %s205
      %p212 = scmp.eq.s32.totalorder %s35, 1
      %p213 = por %p211, %p212
      %p214 = scmp.ne.s32.totalorder %s205, %s206
      %p215 = scmp.eq.s32.totalorder %s35, 0
      %p216 = por %p214, %p215
      %p217 = scmp.ne.s32.totalorder %s205, %s206
      %p218 = scmp.eq.s32.totalorder %s36, 1
      %p219 = por %p217, %p218
      %p221 = scmp.ne.s32.totalorder %s206, %s220
      %p222 = scmp.eq.s32.totalorder %s36, 0
      %p223 = por %p221, %p222
      %s225 = sadd.s32 %s224, 1
      %p228 = scmp.eq.s32.totalorder %s30, 1
      %p229 = scmp.ne.s32.totalorder %s224, %s226
      %p230 = scmp.eq.s32.totalorder %s30, 0
      %p231 = por %p229, %p230
      %p232 = scmp.ne.s32.totalorder %s224, %s226
      %p233 = scmp.eq.s32.totalorder %s35, 1
      %p234 = por %p232, %p233
      %p235 = scmp.ne.s32.totalorder %s226, %s227
      %p236 = scmp.eq.s32.totalorder %s35, 0
      %p237 = por %p235, %p236
      %p238 = scmp.ne.s32.totalorder %s226, %s227
      %p239 = scmp.eq.s32.totalorder %s36, 1
      %p240 = por %p238, %p239
      %p242 = scmp.ne.s32.totalorder %s227, %s241
      %p243 = scmp.eq.s32.totalorder %s36, 0
      %p244 = por %p242, %p243
      %s246 = sadd.s32 %s245, 1
      %p249 = scmp.eq.s32.totalorder %s30, 1
      %p250 = scmp.ne.s32.totalorder %s245, %s247
      %p251 = scmp.eq.s32.totalorder %s30, 0
      %p252 = por %p250, %p251
      %p253 = scmp.ne.s32.totalorder %s245, %s247
      %p254 = scmp.eq.s32.totalorder %s35, 1
      %p255 = por %p253, %p254
      %p256 = scmp.ne.s32.totalorder %s247, %s248
      %p257 = scmp.eq.s32.totalorder %s35, 0
      %p258 = por %p256, %p257
      %p259 = scmp.ne.s32.totalorder %s247, %s248
      %p260 = scmp.eq.s32.totalorder %s36, 1
      %p261 = por %p259, %p260
      %p263 = scmp.ne.s32.totalorder %s248, %s262
      %p264 = scmp.eq.s32.totalorder %s36, 0
      %p265 = por %p263, %p264
      %s267 = sadd.s32 %s266, 1
      %p270 = scmp.eq.s32.totalorder %s30, 1
      %p271 = scmp.ne.s32.totalorder %s266, %s268
      %p272 = scmp.eq.s32.totalorder %s30, 0
      %p273 = por %p271, %p272
      %p274 = scmp.ne.s32.totalorder %s266, %s268
      %p275 = scmp.eq.s32.totalorder %s35, 1
      %p276 = por %p274, %p275
      %p277 = scmp.ne.s32.totalorder %s268, %s269
      %p278 = scmp.eq.s32.totalorder %s35, 0
      %p279 = por %p277, %p278
      %p280 = scmp.ne.s32.totalorder %s268, %s269
      %p281 = scmp.eq.s32.totalorder %s36, 1
      %p282 = por %p280, %p281
      %p284 = scmp.ne.s32.totalorder %s269, %s283
      %p285 = scmp.eq.s32.totalorder %s36, 0
      %p286 = por %p284, %p285
      %s288 = sadd.s32 %s287, 1
      %p291 = scmp.eq.s32.totalorder %s30, 1
      %p292 = scmp.ne.s32.totalorder %s287, %s289
      %p293 = scmp.eq.s32.totalorder %s30, 0
      %p294 = por %p292, %p293
      %p295 = scmp.ne.s32.totalorder %s287, %s289
      %p296 = scmp.eq.s32.totalorder %s35, 1
      %p297 = por %p295, %p296
      %p298 = scmp.ne.s32.totalorder %s289, %s290
      %p299 = scmp.eq.s32.totalorder %s35, 0
      %p300 = por %p298, %p299
      %p301 = scmp.ne.s32.totalorder %s289, %s290
      %p302 = scmp.eq.s32.totalorder %s36, 1
      %p303 = por %p301, %p302
      %p305 = scmp.ne.s32.totalorder %s290, %s304
      %p306 = scmp.eq.s32.totalorder %s36, 0
      %p307 = por %p305, %p306
      %s309 = sadd.s32 %s308, 1
      %p312 = scmp.eq.s32.totalorder %s30, 1
      %p313 = scmp.ne.s32.totalorder %s308, %s310
      %p314 = scmp.eq.s32.totalorder %s30, 0
      %p315 = por %p313, %p314
      %p316 = scmp.ne.s32.totalorder %s308, %s310
      %p317 = scmp.eq.s32.totalorder %s35, 1
      %p318 = por %p316, %p317
      %p319 = scmp.ne.s32.totalorder %s310, %s311
      %p320 = scmp.eq.s32.totalorder %s35, 0
      %p321 = por %p319, %p320
      %p322 = scmp.ne.s32.totalorder %s310, %s311
      %p323 = scmp.eq.s32.totalorder %s36, 1
      %p324 = por %p322, %p323
      %p326 = scmp.ne.s32.totalorder %s311, %s325
      %p327 = scmp.eq.s32.totalorder %s36, 0
      %p328 = por %p326, %p327
      %s330 = sadd.s32 %s329, 1
      %p333 = scmp.eq.s32.totalorder %s30, 1
      %p334 = scmp.ne.s32.totalorder %s329, %s331
      %p335 = scmp.eq.s32.totalorder %s30, 0
      %p336 = por %p334, %p335
      %p337 = scmp.ne.s32.totalorder %s329, %s331
      %p338 = scmp.eq.s32.totalorder %s35, 1
      %p339 = por %p337, %p338
      %p340 = scmp.ne.s32.totalorder %s331, %s332
      %p341 = scmp.eq.s32.totalorder %s35, 0
      %p342 = por %p340, %p341
      %p343 = scmp.ne.s32.totalorder %s331, %s332
      %p344 = scmp.eq.s32.totalorder %s36, 1
      %p345 = por %p343, %p344
      %p347 = scmp.ne.s32.totalorder %s332, %s346
      %p348 = scmp.eq.s32.totalorder %s36, 0
      %p349 = por %p347, %p348
      %s350 = ssub.s32 %s37, %s49
      %s351 = ssub.s32 %s38, %s45
      %s352 = sor.u32 %s350, %s351
      %p353 = scmp.eq.s32.totalorder %s352, 0
      %s355 = sadd.s32 %s354, 1
      %s356 = scalar_select %p353, %s354, %s355
      %p359 = pneg %p353
      %p360 = scmp.eq.s32.totalorder %s30, 1
      %p361 = por %p359, %p360
      %p362 = scmp.ne.s32.totalorder %s354, %s357
      %p363 = scmp.eq.s32.totalorder %s30, 0
      %p364 = por %p362, %p363
      %p365 = scmp.ne.s32.totalorder %s354, %s357
      %p366 = scmp.eq.s32.totalorder %s35, 1
      %p367 = por %p365, %p366
      %p368 = scmp.ne.s32.totalorder %s357, %s358
      %p369 = scmp.eq.s32.totalorder %s35, 0
      %p370 = por %p368, %p369
      %p371 = scmp.ne.s32.totalorder %s357, %s358
      %p372 = scmp.eq.s32.totalorder %s36, 1
      %p373 = por %p371, %p372
      %p375 = scmp.ne.s32.totalorder %s358, %s374
      %p376 = scmp.eq.s32.totalorder %s36, 0
      %p377 = por %p375, %p376
      %p378 = scmp.le.s32.totalorder 1, %s30
      %p379 = scmp.lt.s32.totalorder %s30, 3
      %p380 = pnand %p378, %p379
      %p381 = pneg %p380
      // Predicated region
      $region9: #{tpu_custom_call.1} parent=5 // pred_check
        _
      $region10: #{tpu_custom_call.1} parent=5 // pred_check_branch
        %383 = sbr.rel (%p380) target = $region12
      $region11: #{tpu_custom_call.1} parent=5 // pred_region
        %s384 = ssub.s32 %s30, 1
        // Predicated region
        $region13: #{tpu_custom_call.1} parent=11 // pred_check
          %p385 = pneg %p195
        $region14: #{tpu_custom_call.1} parent=11 // pred_check_branch
          %387 = sbr.rel (%p385) target = $region16
        $region15: #{tpu_custom_call.1} parent=11 // pred_region
          _
        $region16: #{tpu_custom_call.1} parent=11 // pred_fallthru
          _
        // Predicated region
        $region17: #{tpu_custom_call.1} parent=11 // pred_check
          %p388 = pneg %p216
        $region18: #{tpu_custom_call.1} parent=11 // pred_check_branch
          %390 = sbr.rel (%p388) target = $region20
        $region19: #{tpu_custom_call.1} parent=11 // pred_region
          _
        $region20: #{tpu_custom_call.1} parent=11 // pred_fallthru
          _
        // Predicated region
        $region21: #{tpu_custom_call.1} parent=11 // pred_check
          %p391 = pneg %p237
        $region22: #{tpu_custom_call.1} parent=11 // pred_check_branch
          %393 = sbr.rel (%p391) target = $region24
        $region23: #{tpu_custom_call.1} parent=11 // pred_region
          %s395 = ssub.s32 512, 512
          %396 = vsyncadd [#allocation13], %s395
          %s397 = sshll.u32 [#allocation12], 4
          %s398 = int_to_ptr.vmem [resolvable:$true] %s397
          %403 = dma.hbm_to_vmem [thread:$0]  %s7, 512, %s398, [#allocation13], 128, 128, 8
        $region24: #{tpu_custom_call.1} parent=11 // pred_fallthru
          _
        // Predicated region
        $region25: #{tpu_custom_call.1} parent=11 // pred_check
          %p404 = pneg %p258
        $region26: #{tpu_custom_call.1} parent=11 // pred_check_branch
          %406 = sbr.rel (%p404) target = $region28
        $region27: #{tpu_custom_call.1} parent=11 // pred_region
          _
        $region28: #{tpu_custom_call.1} parent=11 // pred_fallthru
          _
        // Predicated region
        $region29: #{tpu_custom_call.1} parent=11 // pred_check
          %p407 = pneg %p279
        $region30: #{tpu_custom_call.1} parent=11 // pred_check_branch
          %409 = sbr.rel (%p407) target = $region32
        $region31: #{tpu_custom_call.1} parent=11 // pred_region
          %s411 = ssub.s32 512, 512
          %412 = vsyncadd [#allocation13], %s411
          %s413 = sshll.u32 [#allocation14], 4
          %s414 = int_to_ptr.vmem [resolvable:$true] %s413
          %419 = dma.hbm_to_vmem [thread:$0]  %s9, 512, %s414, [#allocation13], 128, 128, 8
        $region32: #{tpu_custom_call.1} parent=11 // pred_fallthru
          _
        // Predicated region
        $region33: #{tpu_custom_call.1} parent=11 // pred_check
          %p420 = pneg %p300
        $region34: #{tpu_custom_call.1} parent=11 // pred_check_branch
          %422 = sbr.rel (%p420) target = $region36
        $region35: #{tpu_custom_call.1} parent=11 // pred_region
          _
        $region36: #{tpu_custom_call.1} parent=11 // pred_fallthru
          _
        // Predicated region
        $region37: #{tpu_custom_call.1} parent=11 // pred_check
          %p423 = pneg %p321
        $region38: #{tpu_custom_call.1} parent=11 // pred_check_branch
          %425 = sbr.rel (%p423) target = $region40
        $region39: #{tpu_custom_call.1} parent=11 // pred_region
          %s427 = ssub.s32 512, 512
          %428 = vsyncadd [#allocation16], %s427
          %s429 = sshll.u32 [#allocation15], 4
          %s430 = int_to_ptr.vmem [resolvable:$true] %s429
          %435 = dma.hbm_to_vmem [thread:$0]  %s11, 512, %s430, [#allocation16], 128, 128, 8
        $region40: #{tpu_custom_call.1} parent=11 // pred_fallthru
          _
        // Predicated region
        $region41: #{tpu_custom_call.1} parent=11 // pred_check
          %p436 = pneg %p342
        $region42: #{tpu_custom_call.1} parent=11 // pred_check_branch
          %438 = sbr.rel (%p436) target = $region44
        $region43: #{tpu_custom_call.1} parent=11 // pred_region
          _
        $region44: #{tpu_custom_call.1} parent=11 // pred_fallthru
          _
      $region12: #{tpu_custom_call.1} parent=5 // pred_fallthru
        _
      %p439 = scmp.lt.s32.totalorder %s30, 2
      // Predicated region
      $region45: #{tpu_custom_call.1} parent=5 // pred_check
        %p440 = pneg %p439
      $region46: #{tpu_custom_call.1} parent=5 // pred_check_branch
        %442 = sbr.rel (%p440) target = $region48
      $region47: #{tpu_custom_call.1} parent=5 // pred_region
        // Predicated region
        $region49: #{tpu_custom_call.1} parent=47 // pred_check
          %p443 = pneg %p64
        $region50: #{tpu_custom_call.1} parent=47 // pred_check_branch
          %445 = sbr.rel (%p443) target = $region52
        $region51: #{tpu_custom_call.1} parent=47 // pred_region
          %s446 = sand.u32 %s54, 1
          %s447 = scalar_lea.sflag [#allocation7], %s446
          %s448 = sand.u32 %s54, 1
          %s449 = smul.addr %s448, 8
          %s450 = scalar_lea.vmem [#allocation6], %s449
          %s452 = ssub.s32 128, 128
          %453 = vsyncadd %s447, %s452
          %s454 = sadd.s32 %s38, %s37
          %s455 = smul.addr %s454, 128
          %s456 = scalar_lea.hbm %s0, %s455
          %s458 = sshll.u32 %s450, 4
          %s459 = int_to_ptr.vmem [resolvable:$true] %s458
          %461 = dma.hbm_to_vmem [thread:$0]  %s456, 128, %s459, %s447
        $region52: #{tpu_custom_call.1} parent=47 // pred_fallthru
          _
        // Predicated region
        $region53: #{tpu_custom_call.1} parent=47 // pred_check
          %p462 = pneg %p90
        $region54: #{tpu_custom_call.1} parent=47 // pred_check_branch
          %464 = sbr.rel (%p462) target = $region56
        $region55: #{tpu_custom_call.1} parent=47 // pred_region
          %s465 = sand.u32 %s30, 1
          %s466 = scalar_lea.sflag [#allocation10], %s465
          %s467 = sand.u32 %s80, 1
          %s468 = smul.addr %s467, 8
          %s469 = scalar_lea.vmem [#allocation9], %s468
          %s471 = ssub.s32 128, 128
          %472 = vsyncadd %s466, %s471
          %s473 = smul.addr %s37, 128
          %s474 = scalar_lea.hbm %s1, %s473
          %s476 = sshll.u32 %s469, 4
          %s477 = int_to_ptr.vmem [resolvable:$true] %s476
          %479 = dma.hbm_to_vmem [thread:$0]  %s474, 128, %s477, %s466
        $region56: #{tpu_custom_call.1} parent=47 // pred_fallthru
          _
        // Predicated region
        $region57: #{tpu_custom_call.1} parent=47 // pred_check
          %p480 = pneg %p116
        $region58: #{tpu_custom_call.1} parent=47 // pred_check_branch
          %482 = sbr.rel (%p480) target = $region60
        $region59: #{tpu_custom_call.1} parent=47 // pred_region
          %s483 = sand.u32 %s30, 1
          %s484 = scalar_lea.sflag [#allocation10], %s483
          %s485 = sand.u32 %s106, 1
          %s486 = smul.addr %s485, 8
          %s487 = scalar_lea.vmem [#allocation11], %s486
          %s489 = ssub.s32 128, 128
          %490 = vsyncadd %s484, %s489
          %s491 = smul.addr %s37, 128
          %s492 = scalar_lea.hbm %s2, %s491
          %s494 = sshll.u32 %s487, 4
          %s495 = int_to_ptr.vmem [resolvable:$true] %s494
          %497 = dma.hbm_to_vmem [thread:$0]  %s492, 128, %s495, %s484
        $region60: #{tpu_custom_call.1} parent=47 // pred_fallthru
          _
        // Predicated region
        $region61: #{tpu_custom_call.1} parent=47 // pred_check
          %p498 = pneg %p142
        $region62: #{tpu_custom_call.1} parent=47 // pred_check_branch
          %500 = sbr.rel (%p498) target = $region64
        $region63: #{tpu_custom_call.1} parent=47 // pred_region
          %p501 = scmp.lt.s32.totalorder %s37, 1
          %s502 = scalar_select %p501, %s37, 1
          %s503 = smul.addr %s502, 8
          %s504 = scalar_lea.vmem %s3, %s503
        $region64: #{tpu_custom_call.1} parent=47 // pred_fallthru
          _
        // Predicated region
        $region65: #{tpu_custom_call.1} parent=47 // pred_check
          %p505 = pneg %p168
        $region66: #{tpu_custom_call.1} parent=47 // pred_check_branch
          %507 = sbr.rel (%p505) target = $region68
        $region67: #{tpu_custom_call.1} parent=47 // pred_region
          %p508 = scmp.lt.s32.totalorder %s37, 1
          %s509 = scalar_select %p508, %s37, 1
          %s510 = scalar_lea.vmem %s4, %s509
        $region68: #{tpu_custom_call.1} parent=47 // pred_fallthru
          _
      $region48: #{tpu_custom_call.1} parent=5 // pred_fallthru
        _
      %p511 = scmp.le.s32.totalorder 1, %s30
      %p512 = scmp.lt.s32.totalorder %s30, 3
      %p513 = pnand %p511, %p512
      %p514 = pneg %p513
      // Predicated region
      $region69: #{tpu_custom_call.1} parent=5 // pred_check
        _
      $region70: #{tpu_custom_call.1} parent=5 // pred_check_branch
        %516 = sbr.rel (%p513) target = $region72
      $region71: #{tpu_custom_call.1} parent=5 // pred_region
        %s517 = ssub.s32 %s30, 1
        %s518 = sand.u32 %s57, 1
        %s519 = scalar_lea.sflag [#allocation7], %s518
        %s520 = sand.u32 %s57, 1
        %s521 = smul.addr %s520, 8
        %s522 = scalar_lea.vmem [#allocation6], %s521
        // Predicated region
        $region73: #{tpu_custom_call.1} parent=71 // pred_check
          %p523 = pneg %p70
        $region74: #{tpu_custom_call.1} parent=71 // pred_check_branch
          %525 = sbr.rel (%p523) target = $region76
        $region75: #{tpu_custom_call.1} parent=71 // pred_region
          %526 = dma.done %s519, 128
        $region76: #{tpu_custom_call.1} parent=71 // pred_fallthru
          _
        %s527 = sand.u32 %s35, 1
        %s528 = scalar_lea.sflag [#allocation10], %s527
        %s529 = sand.u32 %s83, 1
        %s530 = smul.addr %s529, 8
        %s531 = scalar_lea.vmem [#allocation9], %s530
        // Predicated region
        $region77: #{tpu_custom_call.1} parent=71 // pred_check
          %p532 = pneg %p96
        $region78: #{tpu_custom_call.1} parent=71 // pred_check_branch
          %534 = sbr.rel (%p532) target = $region80
        $region79: #{tpu_custom_call.1} parent=71 // pred_region
          %535 = dma.done %s528, 128
        $region80: #{tpu_custom_call.1} parent=71 // pred_fallthru
          _
        %s536 = sand.u32 %s35, 1
        %s537 = scalar_lea.sflag [#allocation10], %s536
        %s538 = sand.u32 %s109, 1
        %s539 = smul.addr %s538, 8
        %s540 = scalar_lea.vmem [#allocation11], %s539
        // Predicated region
        $region81: #{tpu_custom_call.1} parent=71 // pred_check
          %p541 = pneg %p122
        $region82: #{tpu_custom_call.1} parent=71 // pred_check_branch
          %543 = sbr.rel (%p541) target = $region84
        $region83: #{tpu_custom_call.1} parent=71 // pred_region
          %544 = dma.done %s537, 128
        $region84: #{tpu_custom_call.1} parent=71 // pred_fallthru
          _
        // Predicated region
        $region85: #{tpu_custom_call.1} parent=71 // pred_check
          %p545 = pneg %p237
        $region86: #{tpu_custom_call.1} parent=71 // pred_check_branch
          %547 = sbr.rel (%p545) target = $region88
        $region87: #{tpu_custom_call.1} parent=71 // pred_region
          %548 = dma.done [#allocation13], 512
        $region88: #{tpu_custom_call.1} parent=71 // pred_fallthru
          _
        // Predicated region
        $region89: #{tpu_custom_call.1} parent=71 // pred_check
          %p549 = pneg %p279
        $region90: #{tpu_custom_call.1} parent=71 // pred_check_branch
          %551 = sbr.rel (%p549) target = $region92
        $region91: #{tpu_custom_call.1} parent=71 // pred_region
          %552 = dma.done [#allocation13], 512
        $region92: #{tpu_custom_call.1} parent=71 // pred_fallthru
          _
        // Predicated region
        $region93: #{tpu_custom_call.1} parent=71 // pred_check
          %p553 = pneg %p321
        $region94: #{tpu_custom_call.1} parent=71 // pred_check_branch
          %555 = sbr.rel (%p553) target = $region96
        $region95: #{tpu_custom_call.1} parent=71 // pred_region
          %556 = dma.done [#allocation16], 512
        $region96: #{tpu_custom_call.1} parent=71 // pred_fallthru
          _
        %s557 = sand.u32 %s57, 1
        %s558 = scalar_lea.sflag [#allocation7], %s557
        %s559 = sand.u32 %s57, 1
        %s560 = smul.addr %s559, 8
        %s561 = scalar_lea.vmem [#allocation6], %s560
        %p562 = pneg %p70
        %p563 = pneg %p67
        %s564 = sand.u32 %s35, 1
        %s565 = scalar_lea.sflag [#allocation10], %s564
        %s566 = sand.u32 %s83, 1
        %s567 = smul.addr %s566, 8
        %s568 = scalar_lea.vmem [#allocation9], %s567
        %p569 = pneg %p96
        %p570 = pneg %p93
        %s571 = sand.u32 %s35, 1
        %s572 = scalar_lea.sflag [#allocation10], %s571
        %s573 = sand.u32 %s109, 1
        %s574 = smul.addr %s573, 8
        %s575 = scalar_lea.vmem [#allocation11], %s574
        %p576 = pneg %p122
        %p577 = pneg %p119
        %p578 = scmp.lt.s32.totalorder %s39, 1
        %s579 = scalar_select %p578, %s39, 1
        %s580 = smul.addr %s579, 8
        %s581 = scalar_lea.vmem %s3, %s580
        %p582 = pneg %p148
        %p583 = pneg %p145
        %p584 = scmp.lt.s32.totalorder %s39, 1
        %s585 = scalar_select %p584, %s39, 1
        %s586 = scalar_lea.vmem %s4, %s585
        %p587 = pneg %p174
        %p588 = pneg %p171
        %p589 = pneg %p195
        %p590 = pneg %p192
        %p591 = pneg %p216
        %p592 = pneg %p213
        %p593 = pneg %p237
        %p594 = pneg %p234
        %p595 = pneg %p258
        %p596 = pneg %p255
        %p597 = pneg %p279
        %p598 = pneg %p276
        %p599 = pneg %p300
        %p600 = pneg %p297
        %p601 = pneg %p321
        %p602 = pneg %p318
        %p603 = pneg %p342
        %p604 = pneg %p339
        %p605 = pneg %p370
        %p606 = pneg %p367
        %s607 = sand.u32 %s357, 1
        %s608 = scalar_lea.sflag [#allocation8], %s607
        %s609 = sand.u32 %s357, 1
        %s610 = smul.addr %s609, 8
        %s611 = scalar_lea.vmem [#allocation17], %s610
        %p612 = scmp.lt.s32.totalorder %s39, 1
        %s613 = scalar_select %p612, %s39, 1
        %s614 = smul.addr %s613, 8
        %s615 = scalar_lea.vmem %s3, %s614
        %p616 = scmp.lt.s32.totalorder %s39, 1
        %s617 = scalar_select %p616, %s39, 1
        %s618 = scalar_lea.vmem %s4, %s617
        %p619 = scmp.eq.s32.totalorder %s40, 0
        // Predicated region
        $region97: #{tpu_custom_call.1} parent=71 // pred_check
          %p620 = pneg %p619
        $region98: #{tpu_custom_call.1} parent=71 // pred_check_branch
          %622 = sbr.rel (%p620) target = $region100
        $region99: #{tpu_custom_call.1} parent=71 // pred_region
          %v623 = vld [vmem:[%s531] sm:$0xff]
          %v624 = vld [vmem:[%s540] sm:$0xff]
          %v625 = vld [vmem:[%s615] sm:$0xff]
          %v626 = vld [vmem:[#allocation12] sm:$0xff]
          %v627 = vld [vmem:[#allocation12 + $0x8] sm:$0xff]
          %v628 = vld [vmem:[#allocation12 + $0x10] sm:$0xff]
          %v629 = vld [vmem:[#allocation12 + $0x18] sm:$0xff]
          %v630 = vld [vmem:[%s8] sm:$0x1]
          %v632 = vlaneseq
          %v633 = vshrl.u32 %v632, 7
          %v634 = vsub.s32 0, %v633
          %v635 = vrot.slane %v630, %v634
          %vm637 = vcmask 261120
          %v639 = vsel %vm637, %v623, 0
          %641 = vmatprep.subr.mxu0 0.0
          %642 = vmatpush1.msra.mxu0 %v626
          %643 = vmatprep.subr.mxu0 0.0
          %644 = vmatpush1.msra.mxu0 %v627
          %645 = vmatprep.subr.mxu0 0.0
          %646 = vmatpush1.msra.mxu0 %v628
          %647 = vmatprep.subr.mxu0 0.0
          %648 = vmatpush1.msra.mxu0 %v629
          %649 = vmatprep.subr.mxu0 0.0
          %650 = vmatpush1.msra.mxu0 0.0
          %651 = vmatprep.subr.mxu0 0.0
          %652 = vmatpush1.msra.mxu0 0.0
          %653 = vmatprep.subr.mxu0 0.0
          %654 = vmatpush1.msra.mxu0 0.0
          %655 = vmatprep.subr.mxu0 0.0
          %656 = vmatpush1.msra.mxu0 0.0
          %657 = vmatprep.subr.mxu0 0.0
          %658 = vmatpush1.msra.mxu0 0.0
          %659 = vmatprep.subr.mxu0 0.0
          %660 = vmatpush1.msra.mxu0 0.0
          %661 = vmatprep.subr.mxu0 0.0
          %662 = vmatpush1.msra.mxu0 0.0
          %663 = vmatprep.subr.mxu0 0.0
          %664 = vmatpush1.msra.mxu0 0.0
          %665 = vmatprep.subr.mxu0 0.0
          %666 = vmatpush1.msra.mxu0 0.0
          %667 = vmatprep.subr.mxu0 0.0
          %668 = vmatpush1.msra.mxu0 0.0
          %669 = vmatprep.subr.mxu0 0.0
          %670 = vmatpush1.msra.mxu0 0.0
          %671 = vmatprep.subr.mxu0 0.0
          %672 = vmatpush1.msra.mxu0 0.0
          %673 = vmatprep.subr.mxu0 0.0
          %674 = vmatpush1.msra.mxu0 0.0
          %675 = vmatprep.subr.mxu0 0.0
          %676 = vmatpush1.msra.mxu0 0.0
          %677 = vmatprep.subr.mxu0 0.0
          %678 = vmatpush1.msra.mxu0 0.0
          %679 = vmatprep.subr.mxu0 0.0
          %680 = vmatpush1.msra.mxu0 0.0
          %681 = vmatprep.subr.mxu0 0.0
          %682 = vmatpush1.msra.mxu0 0.0
          %683 = vmatprep.subr.mxu0 0.0
          %684 = vmatpush1.msra.mxu0 0.0
          %685 = vmatprep.subr.mxu0 0.0
          %686 = vmatpush1.msra.mxu0 0.0
          %687 = vmatprep.subr.mxu0 0.0
          %688 = vmatpush1.msra.mxu0 0.0
          %689 = vmatprep.subr.mxu0 0.0
          %690 = vmatpush1.msra.mxu0 0.0
          %691 = vmatprep.subr.mxu0 0.0
          %692 = vmatpush1.msra.mxu0 0.0
          %693 = vmatprep.subr.mxu0 0.0
          %694 = vmatpush1.msra.mxu0 0.0
          %695 = vmatprep.subr.mxu0 0.0
          %696 = vmatpush1.msra.mxu0 0.0
          %697 = vmatprep.subr.mxu0 0.0
          %698 = vmatpush1.msra.mxu0 0.0
          %699 = vmatprep.subr.mxu0 0.0
          %700 = vmatpush1.msra.mxu0 0.0
          %701 = vmatprep.subr.mxu0 0.0
          %702 = vmatpush1.msra.mxu0 0.0
          %703 = vmatprep.subr.mxu0 0.0
          %704 = vmatpush1.msra.mxu0 0.0
          %705 = vmatprep.mubr.f32.mxu0 0.0
          %706 = vmatmul.mubr.f32.gmra.mrb[0].mxu0 %v639
          %v707 = vpop.f32.mrb[0].mxu0
          %v708 = vadd.f32 %v635, %v707
          %v709 = vpop.f32.mrb[0].mxu0
          %710 = vdwg.mxu0
          %712 = vset.pattern.permute.xlu0 0
          %713 = vperm.xlu0 %712, %v625
          %v714 = vpop.permute.xlu0 %713
          %v716 = vmul.f32 %v708, %v714
          %v717 = vld [vmem:[#allocation14] sm:$0xff]
          %v718 = vld [vmem:[#allocation14 + $0x8] sm:$0xff]
          %v719 = vld [vmem:[#allocation14 + $0x10] sm:$0xff]
          %v720 = vld [vmem:[#allocation14 + $0x18] sm:$0xff]
          %v721 = vld [vmem:[%s10] sm:$0x1]
          %v723 = vlaneseq
          %v724 = vshrl.u32 %v723, 7
          %v725 = vsub.s32 0, %v724
          %v726 = vrot.slane %v721, %v725
          %v729 = vsel %vm637, %v624, 0
          %731 = vmatprep.subr.mxu0 0.0
          %732 = vmatpush1.msra.mxu0 %v717
          %733 = vmatprep.subr.mxu0 0.0
          %734 = vmatpush1.msra.mxu0 %v718
          %735 = vmatprep.subr.mxu0 0.0
          %736 = vmatpush1.msra.mxu0 %v719
          %737 = vmatprep.subr.mxu0 0.0
          %738 = vmatpush1.msra.mxu0 %v720
          %739 = vmatprep.subr.mxu0 0.0
          %740 = vmatpush1.msra.mxu0 0.0
          %741 = vmatprep.subr.mxu0 0.0
          %742 = vmatpush1.msra.mxu0 0.0
          %743 = vmatprep.subr.mxu0 0.0
          %744 = vmatpush1.msra.mxu0 0.0
          %745 = vmatprep.subr.mxu0 0.0
          %746 = vmatpush1.msra.mxu0 0.0
          %747 = vmatprep.subr.mxu0 0.0
          %748 = vmatpush1.msra.mxu0 0.0
          %749 = vmatprep.subr.mxu0 0.0
          %750 = vmatpush1.msra.mxu0 0.0
          %751 = vmatprep.subr.mxu0 0.0
          %752 = vmatpush1.msra.mxu0 0.0
          %753 = vmatprep.subr.mxu0 0.0
          %754 = vmatpush1.msra.mxu0 0.0
          %755 = vmatprep.subr.mxu0 0.0
          %756 = vmatpush1.msra.mxu0 0.0
          %757 = vmatprep.subr.mxu0 0.0
          %758 = vmatpush1.msra.mxu0 0.0
          %759 = vmatprep.subr.mxu0 0.0
          %760 = vmatpush1.msra.mxu0 0.0
          %761 = vmatprep.subr.mxu0 0.0
          %762 = vmatpush1.msra.mxu0 0.0
          %763 = vmatprep.subr.mxu0 0.0
          %764 = vmatpush1.msra.mxu0 0.0
          %765 = vmatprep.subr.mxu0 0.0
          %766 = vmatpush1.msra.mxu0 0.0
          %767 = vmatprep.subr.mxu0 0.0
          %768 = vmatpush1.msra.mxu0 0.0
          %769 = vmatprep.subr.mxu0 0.0
          %770 = vmatpush1.msra.mxu0 0.0
          %771 = vmatprep.subr.mxu0 0.0
          %772 = vmatpush1.msra.mxu0 0.0
          %773 = vmatprep.subr.mxu0 0.0
          %774 = vmatpush1.msra.mxu0 0.0
          %775 = vmatprep.subr.mxu0 0.0
          %776 = vmatpush1.msra.mxu0 0.0
          %777 = vmatprep.subr.mxu0 0.0
          %778 = vmatpush1.msra.mxu0 0.0
          %779 = vmatprep.subr.mxu0 0.0
          %780 = vmatpush1.msra.mxu0 0.0
          %781 = vmatprep.subr.mxu0 0.0
          %782 = vmatpush1.msra.mxu0 0.0
          %783 = vmatprep.subr.mxu0 0.0
          %784 = vmatpush1.msra.mxu0 0.0
          %785 = vmatprep.subr.mxu0 0.0
          %786 = vmatpush1.msra.mxu0 0.0
          %787 = vmatprep.subr.mxu0 0.0
          %788 = vmatpush1.msra.mxu0 0.0
          %789 = vmatprep.subr.mxu0 0.0
          %790 = vmatpush1.msra.mxu0 0.0
          %791 = vmatprep.subr.mxu0 0.0
          %792 = vmatpush1.msra.mxu0 0.0
          %793 = vmatprep.subr.mxu0 0.0
          %794 = vmatpush1.msra.mxu0 0.0
          %795 = vmatprep.mubr.f32.mxu0 0.0
          %796 = vmatmul.mubr.f32.gmra.mrb[0].mxu0 %v729
          %v797 = vpop.f32.mrb[0].mxu0
          %v798 = vadd.f32 %v726, %v797
          %v799 = vpop.f32.mrb[0].mxu0
          %800 = vdwg.mxu0
          %801 = vst.msk [vmem:[#allocation2] sm:$0xff] %vm637, 0.0
          %802 = vst.msk [vmem:[#allocation2 + $0x8] sm:$0xff] %vm637, 0.0
          %803 = vst.msk [vmem:[#allocation2 + $0x10] sm:$0xff] %vm637, 0.0
          %804 = vst.msk [vmem:[#allocation2 + $0x18] sm:$0xff] %vm637, 0.0
          %805 = vst.msk [vmem:[#allocation3] sm:$0xff] %vm637, 0.0
          %806 = vst.msk [vmem:[#allocation3 + $0x8] sm:$0xff] %vm637, 0.0
          %807 = vst.msk [vmem:[#allocation3 + $0x10] sm:$0xff] %vm637, 0.0
          %808 = vst.msk [vmem:[#allocation3 + $0x18] sm:$0xff] %vm637, 0.0
          %vm809 = vcmask 64512
          %810 = vst.msk [vmem:[#allocation2] sm:$0xff] %vm809, %v716
          %811 = vst.msk [vmem:[#allocation3] sm:$0xff] %vm809, %v798
          %vm812 = vcmask 130112
          %813 = vst.msk [vmem:[#allocation2 + $0x8] sm:$0xff] %vm812, %v716
          %814 = vst.msk [vmem:[#allocation3 + $0x8] sm:$0xff] %vm812, %v798
          %vm815 = vcmask 195712
          %816 = vst.msk [vmem:[#allocation2 + $0x10] sm:$0xff] %vm815, %v716
          %817 = vst.msk [vmem:[#allocation3 + $0x10] sm:$0xff] %vm815, %v798
          %vm818 = vcmask 261312
          %819 = vst.msk [vmem:[#allocation2 + $0x18] sm:$0xff] %vm818, %v716
          %820 = vst.msk [vmem:[#allocation3 + $0x18] sm:$0xff] %vm818, %v798
        $region100: #{tpu_custom_call.1} parent=71 // pred_fallthru
          _
        %v821 = vld [vmem:[%s522] sm:$0xff]
        %v822 = vld [vmem:[%s5] sm:$0xff]
        %v823 = vld [vmem:[%s5 + $0x8] sm:$0xff]
        %v824 = vld [vmem:[%s5 + $0x10] sm:$0xff]
        %v825 = vld [vmem:[%s5 + $0x18] sm:$0xff]
        %v826 = vld [vmem:[%s6] sm:$0x1]
        %v828 = vlaneseq
        %v829 = vshrl.u32 %v828, 7
        %v830 = vsub.s32 0, %v829
        %v831 = vrot.slane %v826, %v830
        %vm833 = vcmask 261120
        %v835 = vsel %vm833, %v821, 0
        %837 = vmatprep.subr.mxu0 0.0
        %838 = vmatpush1.msra.mxu0 %v822
        %839 = vmatprep.subr.mxu0 0.0
        %840 = vmatpush1.msra.mxu0 %v823
        %841 = vmatprep.subr.mxu0 0.0
        %842 = vmatpush1.msra.mxu0 %v824
        %843 = vmatprep.subr.mxu0 0.0
        %844 = vmatpush1.msra.mxu0 %v825
        %845 = vmatprep.subr.mxu0 0.0
        %846 = vmatpush1.msra.mxu0 0.0
        %847 = vmatprep.subr.mxu0 0.0
        %848 = vmatpush1.msra.mxu0 0.0
        %849 = vmatprep.subr.mxu0 0.0
        %850 = vmatpush1.msra.mxu0 0.0
        %851 = vmatprep.subr.mxu0 0.0
        %852 = vmatpush1.msra.mxu0 0.0
        %853 = vmatprep.subr.mxu0 0.0
        %854 = vmatpush1.msra.mxu0 0.0
        %855 = vmatprep.subr.mxu0 0.0
        %856 = vmatpush1.msra.mxu0 0.0
        %857 = vmatprep.subr.mxu0 0.0
        %858 = vmatpush1.msra.mxu0 0.0
        %859 = vmatprep.subr.mxu0 0.0
        %860 = vmatpush1.msra.mxu0 0.0
        %861 = vmatprep.subr.mxu0 0.0
        %862 = vmatpush1.msra.mxu0 0.0
        %863 = vmatprep.subr.mxu0 0.0
        %864 = vmatpush1.msra.mxu0 0.0
        %865 = vmatprep.subr.mxu0 0.0
        %866 = vmatpush1.msra.mxu0 0.0
        %867 = vmatprep.subr.mxu0 0.0
        %868 = vmatpush1.msra.mxu0 0.0
        %869 = vmatprep.subr.mxu0 0.0
        %870 = vmatpush1.msra.mxu0 0.0
        %871 = vmatprep.subr.mxu0 0.0
        %872 = vmatpush1.msra.mxu0 0.0
        %873 = vmatprep.subr.mxu0 0.0
        %874 = vmatpush1.msra.mxu0 0.0
        %875 = vmatprep.subr.mxu0 0.0
        %876 = vmatpush1.msra.mxu0 0.0
        %877 = vmatprep.subr.mxu0 0.0
        %878 = vmatpush1.msra.mxu0 0.0
        %879 = vmatprep.subr.mxu0 0.0
        %880 = vmatpush1.msra.mxu0 0.0
        %881 = vmatprep.subr.mxu0 0.0
        %882 = vmatpush1.msra.mxu0 0.0
        %883 = vmatprep.subr.mxu0 0.0
        %884 = vmatpush1.msra.mxu0 0.0
        %885 = vmatprep.subr.mxu0 0.0
        %886 = vmatpush1.msra.mxu0 0.0
        %887 = vmatprep.subr.mxu0 0.0
        %888 = vmatpush1.msra.mxu0 0.0
        %889 = vmatprep.subr.mxu0 0.0
        %890 = vmatpush1.msra.mxu0 0.0
        %891 = vmatprep.subr.mxu0 0.0
        %892 = vmatpush1.msra.mxu0 0.0
        %893 = vmatprep.subr.mxu0 0.0
        %894 = vmatpush1.msra.mxu0 0.0
        %895 = vmatprep.subr.mxu0 0.0
        %896 = vmatpush1.msra.mxu0 0.0
        %897 = vmatprep.subr.mxu0 0.0
        %898 = vmatpush1.msra.mxu0 0.0
        %899 = vmatprep.subr.mxu0 0.0
        %900 = vmatpush1.msra.mxu0 0.0
        %901 = vmatprep.mubr.f32.mxu0 0.0
        %902 = vmatmul.mubr.f32.gmra.mrb[0].mxu0 %v835
        %v903 = vpop.f32.mrb[0].mxu0
        %v904 = vadd.f32 %v831, %v903
        %v905 = vpop.f32.mrb[0].mxu0
        %906 = vdwg.mxu0
        %v907 = vld [vmem:[%s618] sm:$0x1]
        %v908 = vld [vmem:[#allocation2] sm:$0xff]
        %v909 = vld [vmem:[#allocation2 + $0x8] sm:$0xff]
        %v910 = vld [vmem:[#allocation2 + $0x10] sm:$0xff]
        %v911 = vld [vmem:[#allocation2 + $0x18] sm:$0xff]
        %v913 = vsel %vm833, %v904, 0
        %v916 = vsel %vm833, %v908, 0
        %v919 = vsel %vm833, %v909, 0
        %v922 = vsel %vm833, %v910, 0
        %v925 = vsel %vm833, %v911, 0
        %927 = vmatprep.subr.mxu0 0.0
        %928 = vmatpush1.xpose.msra.mxu0 %v916
        %929 = vmatprep.subr.mxu0 0.0
        %930 = vmatpush1.xpose.msra.mxu0 %v919
        %931 = vmatprep.subr.mxu0 0.0
        %932 = vmatpush1.xpose.msra.mxu0 %v922
        %933 = vmatprep.subr.mxu0 0.0
        %934 = vmatpush1.xpose.msra.mxu0 %v925
        %935 = vmatprep.subr.mxu0 0.0
        %936 = vmatpush1.xpose.msra.mxu0 0.0
        %937 = vmatprep.subr.mxu0 0.0
        %938 = vmatpush1.xpose.msra.mxu0 0.0
        %939 = vmatprep.subr.mxu0 0.0
        %940 = vmatpush1.xpose.msra.mxu0 0.0
        %941 = vmatprep.subr.mxu0 0.0
        %942 = vmatpush1.xpose.msra.mxu0 0.0
        %943 = vmatprep.subr.mxu0 0.0
        %944 = vmatpush1.xpose.msra.mxu0 0.0
        %945 = vmatprep.subr.mxu0 0.0
        %946 = vmatpush1.xpose.msra.mxu0 0.0
        %947 = vmatprep.subr.mxu0 0.0
        %948 = vmatpush1.xpose.msra.mxu0 0.0
        %949 = vmatprep.subr.mxu0 0.0
        %950 = vmatpush1.xpose.msra.mxu0 0.0
        %951 = vmatprep.subr.mxu0 0.0
        %952 = vmatpush1.xpose.msra.mxu0 0.0
        %953 = vmatprep.subr.mxu0 0.0
        %954 = vmatpush1.xpose.msra.mxu0 0.0
        %955 = vmatprep.subr.mxu0 0.0
        %956 = vmatpush1.xpose.msra.mxu0 0.0
        %957 = vmatprep.subr.mxu0 0.0
        %958 = vmatpush1.xpose.msra.mxu0 0.0
        %959 = vmatprep.subr.mxu0 0.0
        %960 = vmatpush1.xpose.msra.mxu0 0.0
        %961 = vmatprep.subr.mxu0 0.0
        %962 = vmatpush1.xpose.msra.mxu0 0.0
        %963 = vmatprep.subr.mxu0 0.0
        %964 = vmatpush1.xpose.msra.mxu0 0.0
        %965 = vmatprep.subr.mxu0 0.0
        %966 = vmatpush1.xpose.msra.mxu0 0.0
        %967 = vmatprep.subr.mxu0 0.0
        %968 = vmatpush1.xpose.msra.mxu0 0.0
        %969 = vmatprep.subr.mxu0 0.0
        %970 = vmatpush1.xpose.msra.mxu0 0.0
        %971 = vmatprep.subr.mxu0 0.0
        %972 = vmatpush1.xpose.msra.mxu0 0.0
        %973 = vmatprep.subr.mxu0 0.0
        %974 = vmatpush1.xpose.msra.mxu0 0.0
        %975 = vmatprep.subr.mxu0 0.0
        %976 = vmatpush1.xpose.msra.mxu0 0.0
        %977 = vmatprep.subr.mxu0 0.0
        %978 = vmatpush1.xpose.msra.mxu0 0.0
        %979 = vmatprep.subr.mxu0 0.0
        %980 = vmatpush1.xpose.msra.mxu0 0.0
        %981 = vmatprep.subr.mxu0 0.0
        %982 = vmatpush1.xpose.msra.mxu0 0.0
        %983 = vmatprep.subr.mxu0 0.0
        %984 = vmatpush1.xpose.msra.mxu0 0.0
        %985 = vmatprep.subr.mxu0 0.0
        %986 = vmatpush1.xpose.msra.mxu0 0.0
        %987 = vmatprep.subr.mxu0 0.0
        %988 = vmatpush1.xpose.msra.mxu0 0.0
        %989 = vmatprep.subr.mxu0 0.0
        %990 = vmatpush1.xpose.msra.mxu0 0.0
        %991 = vmatprep.mubr.f32.mxu0 0.0
        %992 = vmatmul.mubr.f32.gmra.mrb[0].mxu0 %v913
        %v993 = vpop.f32.mrb[0].mxu0
        %v994 = vadd.f32 0.0, %v993
        %v995 = vpop.f32.mrb[0].mxu0
        %996 = vdwg.mxu0
        %v998 = vlaneseq
        %v999 = vshrl.u32 %v998, 7
        %v1000 = vsub.s32 0, %v999
        %v1001 = vrot.slane %v907, %v1000
        %v1003 = vadd.f32 %v994, %v1001
        %vm1004 = vcmask 64512
        %v1005 = vsel %vm1004, %v1003, -inf
        %1006 = vmax.xlane.f32.xlu0 %v1005
        %v1007 = vpop.xlane.xlu0 %1006
        %v1008 = vsub.f32 %v1003, %v1007
        %v1009 = vmul.f32 %v1008, 1.442695
        %v1010 = vpow.pop %v1009
        %v1011 = vsel %vm1004, %v1010, 0.0
        %1012 = vadd.xlane.f32.xlu0 %v1011
        %v1013 = vpop.xlane.xlu0 %1012
        %v1014 = vrcp.pop %v1013
        %v1015 = vmul.f32 1.0, %v1014
        %1016 = vst.msk [vmem:[#allocation4] sm:$0xff] %vm1004, %v1010
        %1017 = vrot.lane.b32.xlu0 %v1001, 8
        %v1018 = vpop.permute.xlu0 %1017
        %v1020 = vadd.f32 %v994, %v1018
        %vm1021 = vcmask 130112
        %v1022 = vsel %vm1021, %v1020, -inf
        %1023 = vmax.xlane.f32.xlu0 %v1022
        %v1024 = vpop.xlane.xlu0 %1023
        %v1025 = vsub.f32 %v1020, %v1024
        %v1026 = vmul.f32 %v1025, 1.442695
        %v1027 = vpow.pop %v1026
        %1029 = vrot.lane.b32.xlu0 %v1027, 120
        %v1030 = vpop.permute.xlu0 %1029
        %v1032 = vsel %vm1004, %v1030, 0.0
        %1033 = vadd.xlane.f32.xlu0 %v1032
        %v1034 = vpop.xlane.xlu0 %1033
        %v1035 = vrcp.pop %v1034
        %v1036 = vmul.f32 1.0, %v1035
        %1037 = vst.msk [vmem:[#allocation4] sm:$0xff] %vm1021, %v1027
        %1038 = vrot.lane.b32.xlu0 %v1001, 16
        %v1039 = vpop.permute.xlu0 %1038
        %v1041 = vadd.f32 %v994, %v1039
        %vm1042 = vcmask 195712
        %v1043 = vsel %vm1042, %v1041, -inf
        %1044 = vmax.xlane.f32.xlu0 %v1043
        %v1045 = vpop.xlane.xlu0 %1044
        %v1046 = vsub.f32 %v1041, %v1045
        %v1047 = vmul.f32 %v1046, 1.442695
        %v1048 = vpow.pop %v1047
        %1050 = vrot.lane.b32.xlu0 %v1048, 112
        %v1051 = vpop.permute.xlu0 %1050
        %v1053 = vsel %vm1004, %v1051, 0.0
        %1054 = vadd.xlane.f32.xlu0 %v1053
        %v1055 = vpop.xlane.xlu0 %1054
        %v1056 = vrcp.pop %v1055
        %v1057 = vmul.f32 1.0, %v1056
        %1058 = vst.msk [vmem:[#allocation4] sm:$0xff] %vm1042, %v1048
        %1059 = vrot.lane.b32.xlu0 %v1001, 24
        %v1060 = vpop.permute.xlu0 %1059
        %v1062 = vadd.f32 %v994, %v1060
        %vm1063 = vcmask 261312
        %v1064 = vsel %vm1063, %v1062, -inf
        %1065 = vmax.xlane.f32.xlu0 %v1064
        %v1066 = vpop.xlane.xlu0 %1065
        %v1067 = vsub.f32 %v1062, %v1066
        %v1068 = vmul.f32 %v1067, 1.442695
        %v1069 = vpow.pop %v1068
        %1071 = vrot.lane.b32.xlu0 %v1069, 104
        %v1072 = vpop.permute.xlu0 %1071
        %v1074 = vsel %vm1004, %v1072, 0.0
        %1075 = vadd.xlane.f32.xlu0 %v1074
        %v1076 = vpop.xlane.xlu0 %1075
        %v1077 = vrcp.pop %v1076
        %v1078 = vmul.f32 1.0, %v1077
        %1079 = vst.msk [vmem:[#allocation4] sm:$0xff] %vm1063, %v1069
        %v1080 = vld [vmem:[#allocation4] sm:$0xff]
        %v1081 = vld [vmem:[#allocation3] sm:$0xff]
        %v1082 = vld [vmem:[#allocation3 + $0x8] sm:$0xff]
        %v1083 = vld [vmem:[#allocation3 + $0x10] sm:$0xff]
        %v1084 = vld [vmem:[#allocation3 + $0x18] sm:$0xff]
        %v1086 = vsel %vm833, %v1080, 0
        %1088 = vmatprep.subr.mxu0 0.0
        %1089 = vmatpush1.msra.mxu0 %v1081
        %1090 = vmatprep.subr.mxu0 0.0
        %1091 = vmatpush1.msra.mxu0 %v1082
        %1092 = vmatprep.subr.mxu0 0.0
        %1093 = vmatpush1.msra.mxu0 %v1083
        %1094 = vmatprep.subr.mxu0 0.0
        %1095 = vmatpush1.msra.mxu0 %v1084
        %1096 = vmatprep.subr.mxu0 0.0
        %1097 = vmatpush1.msra.mxu0 0.0
        %1098 = vmatprep.subr.mxu0 0.0
        %1099 = vmatpush1.msra.mxu0 0.0
        %1100 = vmatprep.subr.mxu0 0.0
        %1101 = vmatpush1.msra.mxu0 0.0
        %1102 = vmatprep.subr.mxu0 0.0
        %1103 = vmatpush1.msra.mxu0 0.0
        %1104 = vmatprep.subr.mxu0 0.0
        %1105 = vmatpush1.msra.mxu0 0.0
        %1106 = vmatprep.subr.mxu0 0.0
        %1107 = vmatpush1.msra.mxu0 0.0
        %1108 = vmatprep.subr.mxu0 0.0
        %1109 = vmatpush1.msra.mxu0 0.0
        %1110 = vmatprep.subr.mxu0 0.0
        %1111 = vmatpush1.msra.mxu0 0.0
        %1112 = vmatprep.subr.mxu0 0.0
        %1113 = vmatpush1.msra.mxu0 0.0
        %1114 = vmatprep.subr.mxu0 0.0
        %1115 = vmatpush1.msra.mxu0 0.0
        %1116 = vmatprep.subr.mxu0 0.0
        %1117 = vmatpush1.msra.mxu0 0.0
        %1118 = vmatprep.subr.mxu0 0.0
        %1119 = vmatpush1.msra.mxu0 0.0
        %1120 = vmatprep.subr.mxu0 0.0
        %1121 = vmatpush1.msra.mxu0 0.0
        %1122 = vmatprep.subr.mxu0 0.0
        %1123 = vmatpush1.msra.mxu0 0.0
        %1124 = vmatprep.subr.mxu0 0.0
        %1125 = vmatpush1.msra.mxu0 0.0
        %1126 = vmatprep.subr.mxu0 0.0
        %1127 = vmatpush1.msra.mxu0 0.0
        %1128 = vmatprep.subr.mxu0 0.0
        %1129 = vmatpush1.msra.mxu0 0.0
        %1130 = vmatprep.subr.mxu0 0.0
        %1131 = vmatpush1.msra.mxu0 0.0
        %1132 = vmatprep.subr.mxu0 0.0
        %1133 = vmatpush1.msra.mxu0 0.0
        %1134 = vmatprep.subr.mxu0 0.0
        %1135 = vmatpush1.msra.mxu0 0.0
        %1136 = vmatprep.subr.mxu0 0.0
        %1137 = vmatpush1.msra.mxu0 0.0
        %1138 = vmatprep.subr.mxu0 0.0
        %1139 = vmatpush1.msra.mxu0 0.0
        %1140 = vmatprep.subr.mxu0 0.0
        %1141 = vmatpush1.msra.mxu0 0.0
        %1142 = vmatprep.subr.mxu0 0.0
        %1143 = vmatpush1.msra.mxu0 0.0
        %1144 = vmatprep.subr.mxu0 0.0
        %1145 = vmatpush1.msra.mxu0 0.0
        %1146 = vmatprep.subr.mxu0 0.0
        %1147 = vmatpush1.msra.mxu0 0.0
        %1148 = vmatprep.subr.mxu0 0.0
        %1149 = vmatpush1.msra.mxu0 0.0
        %1150 = vmatprep.subr.mxu0 0.0
        %1151 = vmatpush1.msra.mxu0 0.0
        %1152 = vmatprep.mubr.f32.mxu0 0.0
        %1153 = vmatmul.mubr.f32.gmra.mrb[0].mxu0 %v1086
        %v1154 = vpop.f32.mrb[0].mxu0
        %v1155 = vadd.f32 0.0, %v1154
        %v1156 = vpop.f32.mrb[0].mxu0
        %1157 = vdwg.mxu0
        %v1158 = vmul.f32 %v1155, %v1015
        %1159 = vst.msk [vmem:[#allocation5] sm:$0xff] %vm1004, %v1158
        %v1160 = vmul.f32 %v1155, %v1036
        %1161 = vst.msk [vmem:[#allocation5] sm:$0xff] %vm1021, %v1160
        %v1162 = vmul.f32 %v1155, %v1057
        %1163 = vst.msk [vmem:[#allocation5] sm:$0xff] %vm1042, %v1162
        %v1164 = vmul.f32 %v1155, %v1078
        %1165 = vst.msk [vmem:[#allocation5] sm:$0xff] %vm1063, %v1164
        %v1166 = vld [vmem:[#allocation5] sm:$0xff]
        %v1167 = vld [vmem:[#allocation15] sm:$0xff]
        %v1168 = vld [vmem:[#allocation15 + $0x8] sm:$0xff]
        %v1169 = vld [vmem:[#allocation15 + $0x10] sm:$0xff]
        %v1170 = vld [vmem:[#allocation15 + $0x18] sm:$0xff]
        %v1171 = vld [vmem:[%s12] sm:$0x1]
        %v1173 = vlaneseq
        %v1174 = vshrl.u32 %v1173, 7
        %v1175 = vsub.s32 0, %v1174
        %v1176 = vrot.slane %v1171, %v1175
        %v1179 = vsel %vm833, %v1166, 0
        %1181 = vmatprep.subr.mxu0 0.0
        %1182 = vmatpush1.msra.mxu0 %v1167
        %1183 = vmatprep.subr.mxu0 0.0
        %1184 = vmatpush1.msra.mxu0 %v1168
        %1185 = vmatprep.subr.mxu0 0.0
        %1186 = vmatpush1.msra.mxu0 %v1169
        %1187 = vmatprep.subr.mxu0 0.0
        %1188 = vmatpush1.msra.mxu0 %v1170
        %1189 = vmatprep.subr.mxu0 0.0
        %1190 = vmatpush1.msra.mxu0 0.0
        %1191 = vmatprep.subr.mxu0 0.0
        %1192 = vmatpush1.msra.mxu0 0.0
        %1193 = vmatprep.subr.mxu0 0.0
        %1194 = vmatpush1.msra.mxu0 0.0
        %1195 = vmatprep.subr.mxu0 0.0
        %1196 = vmatpush1.msra.mxu0 0.0
        %1197 = vmatprep.subr.mxu0 0.0
        %1198 = vmatpush1.msra.mxu0 0.0
        %1199 = vmatprep.subr.mxu0 0.0
        %1200 = vmatpush1.msra.mxu0 0.0
        %1201 = vmatprep.subr.mxu0 0.0
        %1202 = vmatpush1.msra.mxu0 0.0
        %1203 = vmatprep.subr.mxu0 0.0
        %1204 = vmatpush1.msra.mxu0 0.0
        %1205 = vmatprep.subr.mxu0 0.0
        %1206 = vmatpush1.msra.mxu0 0.0
        %1207 = vmatprep.subr.mxu0 0.0
        %1208 = vmatpush1.msra.mxu0 0.0
        %1209 = vmatprep.subr.mxu0 0.0
        %1210 = vmatpush1.msra.mxu0 0.0
        %1211 = vmatprep.subr.mxu0 0.0
        %1212 = vmatpush1.msra.mxu0 0.0
        %1213 = vmatprep.subr.mxu0 0.0
        %1214 = vmatpush1.msra.mxu0 0.0
        %1215 = vmatprep.subr.mxu0 0.0
        %1216 = vmatpush1.msra.mxu0 0.0
        %1217 = vmatprep.subr.mxu0 0.0
        %1218 = vmatpush1.msra.mxu0 0.0
        %1219 = vmatprep.subr.mxu0 0.0
        %1220 = vmatpush1.msra.mxu0 0.0
        %1221 = vmatprep.subr.mxu0 0.0
        %1222 = vmatpush1.msra.mxu0 0.0
        %1223 = vmatprep.subr.mxu0 0.0
        %1224 = vmatpush1.msra.mxu0 0.0
        %1225 = vmatprep.subr.mxu0 0.0
        %1226 = vmatpush1.msra.mxu0 0.0
        %1227 = vmatprep.subr.mxu0 0.0
        %1228 = vmatpush1.msra.mxu0 0.0
        %1229 = vmatprep.subr.mxu0 0.0
        %1230 = vmatpush1.msra.mxu0 0.0
        %1231 = vmatprep.subr.mxu0 0.0
        %1232 = vmatpush1.msra.mxu0 0.0
        %1233 = vmatprep.subr.mxu0 0.0
        %1234 = vmatpush1.msra.mxu0 0.0
        %1235 = vmatprep.subr.mxu0 0.0
        %1236 = vmatpush1.msra.mxu0 0.0
        %1237 = vmatprep.subr.mxu0 0.0
        %1238 = vmatpush1.msra.mxu0 0.0
        %1239 = vmatprep.subr.mxu0 0.0
        %1240 = vmatpush1.msra.mxu0 0.0
        %1241 = vmatprep.subr.mxu0 0.0
        %1242 = vmatpush1.msra.mxu0 0.0
        %1243 = vmatprep.subr.mxu0 0.0
        %1244 = vmatpush1.msra.mxu0 0.0
        %1245 = vmatprep.mubr.f32.mxu0 0.0
        %1246 = vmatmul.mubr.f32.gmra.mrb[0].mxu0 %v1179
        %v1247 = vpop.f32.mrb[0].mxu0
        %v1248 = vadd.f32 %v1176, %v1247
        %v1249 = vpop.f32.mrb[0].mxu0
        %1250 = vdwg.mxu0
        %1251 = vst.msk [vmem:[%s611] sm:$0xff] %vm833, %v1248
        %s1252 = sand.u32 %s357, 1
        %s1253 = scalar_lea.sflag [#allocation8], %s1252
        %s1254 = sand.u32 %s357, 1
        %s1255 = smul.addr %s1254, 8
        %s1256 = scalar_lea.vmem [#allocation17], %s1255
        // Predicated region
        $region101: #{tpu_custom_call.1} parent=71 // pred_check
          %p1257 = pneg %p367
        $region102: #{tpu_custom_call.1} parent=71 // pred_check_branch
          %1259 = sbr.rel (%p1257) target = $region104
        $region103: #{tpu_custom_call.1} parent=71 // pred_region
          %s1261 = ssub.s32 128, 128
          %1262 = vsyncadd %s1253, %s1261
          %s1263 = sadd.s32 %s40, %s39
          %s1264 = smul.addr %s1263, 128
          %s1265 = scalar_lea.hbm %s13, %s1264
          %s1267 = sshll.u32 %s1256, 4
          %s1268 = int_to_ptr.vmem [resolvable:$true] %s1267
          %1270 = dma.vmem_to_hbm [thread:$0]  %s1268, 128, %s1265, %s1253
        $region104: #{tpu_custom_call.1} parent=71 // pred_fallthru
          _
      $region72: #{tpu_custom_call.1} parent=5 // pred_fallthru
        _
      %p1271 = scmp.le.s32.totalorder 2, %s30
      // Predicated region
      $region105: #{tpu_custom_call.1} parent=5 // pred_check
        %p1272 = pneg %p1271
      $region106: #{tpu_custom_call.1} parent=5 // pred_check_branch
        %1274 = sbr.rel (%p1272) target = $region108
      $region107: #{tpu_custom_call.1} parent=5 // pred_region
        %s1275 = ssub.s32 %s30, 2
        // Predicated region
        $region109: #{tpu_custom_call.1} parent=107 // pred_check
          %p1276 = pneg %p373
        $region110: #{tpu_custom_call.1} parent=107 // pred_check_branch
          %1278 = sbr.rel (%p1276) target = $region112
        $region111: #{tpu_custom_call.1} parent=107 // pred_region
          %s1279 = sand.u32 %s358, 1
          %s1280 = scalar_lea.sflag [#allocation8], %s1279
          %s1281 = sand.u32 %s358, 1
          %s1282 = smul.addr %s1281, 8
          %s1283 = scalar_lea.vmem [#allocation17], %s1282
          %1284 = dma.done %s1280, 128
        $region112: #{tpu_custom_call.1} parent=107 // pred_fallthru
          _
      $region108: #{tpu_custom_call.1} parent=5 // pred_fallthru
        _
    $region6: #{tpu_custom_call.1} parent=1 // loop_footer
      %s34 = sadd.s32 1, %s30
    $region7: #{tpu_custom_call.1} parent=1 // loop_footer_branch
      %29 = sbr.rel target = $region3
    $region8: #{tpu_custom_call.1} parent=1 // loop_exit
      _
    %1285 = vsyncpa [#allocation7], 1
    %s1286 = scalar_lea.sflag [#allocation7], 1
    %1287 = vsyncpa %s1286, 1
    %1288 = vsyncpa [#allocation10], 1
    %s1289 = scalar_lea.sflag [#allocation10], 1
    %1290 = vsyncpa %s1289, 1
    %1291 = vsyncpa [#allocation13], 1
    %1292 = vsyncpa [#allocation16], 1
    %1293 = vsyncpa [#allocation8], 1
    %s1294 = scalar_lea.sflag [#allocation8], 1
    %1295 = vsyncpa %s1294, 1

// kernel: tpu_custom_call.1
$region0: #{tpu_custom_call.1}
  #allocation0 [shape = 'u32[]', space=smem, size = 0x4, offset = 0x4, fixed_abs, tag = 'smem constant byte address 0x4 - core index']
  #allocation1 [shape = 'u32[144,128]{1,0:T(1,128)}', space=vmem, size = 0x12000, scoped, tag = 'internal scratch']
  #allocation2 [shape = 'f32[1,32,32]{2,1,0:T(8,128)}', space=vmem, size = 0x4000, scoped, tag = 'scratch operand']
  #allocation3 [shape = 'f32[1,32,32]{2,1,0:T(8,128)}', space=vmem, size = 0x4000, scoped, tag = 'scratch operand']
  #allocation4 [shape = 'f32[8,32]{1,0:T(8,128)}', space=vmem, size = 0x1000, scoped, tag = 'scratch operand']
  #allocation5 [shape = 'f32[8,32]{1,0:T(8,128)}', space=vmem, size = 0x1000, scoped, tag = 'scratch operand']
  %s0 = inlined_call_operand.hbm [shape: f32[2,8,32], index: 0, kind: input, shape index: {}]
  %s1 = inlined_call_operand.hbm [shape: f32[2,8,32], index: 1, kind: input, shape index: {}]
  %s2 = inlined_call_operand.hbm [shape: f32[2,8,32], index: 2, kind: input, shape index: {}]
  %s3 = inlined_call_operand.vmem [shape: f32[2,8,1], index: 3, kind: input, shape index: {}]
  %s4 = inlined_call_operand.vmem [shape: f32[2,1,8], index: 4, kind: input, shape index: {}]
  %s5 = inlined_call_operand.vmem [shape: f32[32,32], index: 5, kind: input, shape index: {}]
  %s6 = inlined_call_operand.vmem [shape: f32[1,32], index: 6, kind: input, shape index: {}]
  %s7 = inlined_call_operand.hbm [shape: f32[32,32], index: 7, kind: input, shape index: {}]
  %s8 = inlined_call_operand.vmem [shape: f32[1,32], index: 8, kind: input, shape index: {}]
  %s9 = inlined_call_operand.hbm [shape: f32[32,32], index: 9, kind: input, shape index: {}]
  %s10 = inlined_call_operand.vmem [shape: f32[1,32], index: 10, kind: input, shape index: {}]
  %s11 = inlined_call_operand.hbm [shape: f32[32,32], index: 11, kind: input, shape index: {}]
  %s12 = inlined_call_operand.vmem [shape: f32[1,32], index: 12, kind: input, shape index: {}]
  %s13 = inlined_call_operand.hbm [shape: f32[2,8,32], index: 13, kind: output, shape index: {}]
  %s14 = sld [smem:[#allocation0]]
  $region113: #{tpu_custom_call.1} parent=0
    _
  %s16 = ssub.s32 1, %s14
  %s17 = scalar_select 0, %s16, %s14
  $region1: #{tpu_custom_call.1} parent=0
    #allocation6 [shape = 'u8[8192]{0}', space=vmem, size = 0x2000, scoped, tag = 'input window, operand 0']
    #allocation7 [shape = 's32[2]{0}', space=sflag, size = 0x8, scoped, tag = 'scoped memory for tpu_custom_call.1']
    #allocation8 [shape = 's32[2]{0}', space=sflag, size = 0x8, scoped, tag = 'scoped memory for tpu_custom_call.1']
    #allocation9 [shape = 'u8[8192]{0}', space=vmem, size = 0x2000, scoped, tag = 'input window, operand 1']
    #allocation10 [shape = 's32[2]{0}', space=sflag, size = 0x8, scoped, tag = 'scoped memory for tpu_custom_call.1']
    #allocation11 [shape = 'u8[8192]{0}', space=vmem, size = 0x2000, scoped, tag = 'input window, operand 2']
    #allocation12 [shape = 'u8[16384]{0}', space=vmem, size = 0x4000, scoped, tag = 'input window, operand 7, single buffered']
    #allocation13 [shape = 's32[1]{0}', space=sflag, size = 0x4, scoped, tag = 'scoped memory for tpu_custom_call.1']
    #allocation14 [shape = 'u8[16384]{0}', space=vmem, size = 0x4000, scoped, tag = 'input window, operand 9, single buffered']
    #allocation15 [shape = 'u8[16384]{0}', space=vmem, size = 0x4000, scoped, tag = 'input window, operand 11, single buffered']
    #allocation16 [shape = 's32[1]{0}', space=sflag, size = 0x4, scoped, tag = 'scoped memory for tpu_custom_call.1']
    #allocation17 [shape = 'u8[8192]{0}', space=vmem, size = 0x2000, scoped, tag = 'output window, operand 0']
    %18 = vsyncpa [#allocation7], 0
    %s19 = scalar_lea.sflag [#allocation7], 1
    %20 = vsyncpa %s19, 0
    %21 = vsyncpa [#allocation10], 0
    %s22 = scalar_lea.sflag [#allocation10], 1
    %23 = vsyncpa %s22, 0
    %24 = vsyncpa [#allocation13], 0
    %25 = vsyncpa [#allocation16], 0
    %26 = vsyncpa [#allocation8], 0
    %s27 = scalar_lea.sflag [#allocation8], 1
    %28 = vsyncpa %s27, 0
    loop: start=0, step=1, limit=4
    $region2: #{tpu_custom_call.1} parent=1 // loop_pre_header
      _
    $region3: #{tpu_custom_call.1} parent=1 // loop_header
      %s30 = sphi 0, %s34
      %p31 = scmp.ge.s32.totalorder %s30, 4
      %s37 = sphi 0, %s49
      %s38 = sphi 0, %s45
      %s39 = sphi 0, %s37
      %s40 = sphi 0, %s38
      %s41 = sphi 0, %s39
      %s42 = sphi 0, %s40
      %s54 = sphi 0, %s56
      %s57 = sphi 0, %s54
      %s58 = sphi 0, %s57
      %s74 = sphi 0, %s58
      %s80 = sphi 0, %s82
      %s83 = sphi 0, %s80
      %s84 = sphi 0, %s83
      %s100 = sphi 0, %s84
      %s106 = sphi 0, %s108
      %s109 = sphi 0, %s106
      %s110 = sphi 0, %s109
      %s126 = sphi 0, %s110
      %s132 = sphi 0, %s134
      %s135 = sphi 0, %s132
      %s136 = sphi 0, %s135
      %s152 = sphi 0, %s136
      %s158 = sphi 0, %s160
      %s161 = sphi 0, %s158
      %s162 = sphi 0, %s161
      %s178 = sphi 0, %s162
      %s182 = sphi 0, %s182
      %s184 = sphi 0, %s182
      %s185 = sphi 0, %s184
      %s199 = sphi 0, %s185
      %s203 = sphi 0, %s203
      %s205 = sphi 0, %s203
      %s206 = sphi 0, %s205
      %s220 = sphi 0, %s206
      %s224 = sphi 0, %s224
      %s226 = sphi 0, %s224
      %s227 = sphi 0, %s226
      %s241 = sphi 0, %s227
      %s245 = sphi 0, %s245
      %s247 = sphi 0, %s245
      %s248 = sphi 0, %s247
      %s262 = sphi 0, %s248
      %s266 = sphi 0, %s266
      %s268 = sphi 0, %s266
      %s269 = sphi 0, %s268
      %s283 = sphi 0, %s269
      %s287 = sphi 0, %s287
      %s289 = sphi 0, %s287
      %s290 = sphi 0, %s289
      %s304 = sphi 0, %s290
      %s308 = sphi 0, %s308
      %s310 = sphi 0, %s308
      %s311 = sphi 0, %s310
      %s325 = sphi 0, %s311
      %s329 = sphi 0, %s329
      %s331 = sphi 0, %s329
      %s332 = sphi 0, %s331
      %s346 = sphi 0, %s332
      %s354 = sphi 0, %s356
      %s357 = sphi 0, %s354
      %s358 = sphi 0, %s357
      %s374 = sphi 0, %s358
    $region4: #{tpu_custom_call.1} parent=1 // loop_header_branch
      %33 = sbr.rel (%p31) target = $region8
    $region5: #{tpu_custom_call.1} parent=1 // loop_body
      %s35 = ssub.s32 %s30, 1
      %s36 = ssub.s32 %s30, 2
      %s43 = sadd.s32 1, %s38
      %p44 = scmp.ge.s32.totalorder %s43, 1
      %s45 = scalar_select %p44, 0, %s43
      %s46 = sadd.s32 1, %s37
      %s47 = scalar_select %p44, %s46, %s37
      %p48 = scmp.ge.s32.totalorder %s47, 2
      %s49 = scalar_select %p48, 0, %s47
      %s50 = ssub.s32 %s37, %s49
      %s51 = ssub.s32 %s38, %s45
      %s52 = sor.u32 %s50, %s51
      %p53 = scmp.eq.s32.totalorder %s52, 0
      %s55 = sadd.s32 %s54, 1
      %s56 = scalar_select %p53, %s54, %s55
      %p59 = pneg %p53
      %p60 = scmp.eq.s32.totalorder %s30, 1
      %p61 = por %p59, %p60
      %p62 = scmp.ne.s32.totalorder %s54, %s57
      %p63 = scmp.eq.s32.totalorder %s30, 0
      %p64 = por %p62, %p63
      %p65 = scmp.ne.s32.totalorder %s54, %s57
      %p66 = scmp.eq.s32.totalorder %s35, 1
      %p67 = por %p65, %p66
      %p68 = scmp.ne.s32.totalorder %s57, %s58
      %p69 = scmp.eq.s32.totalorder %s35, 0
      %p70 = por %p68, %p69
      %p71 = scmp.ne.s32.totalorder %s57, %s58
      %p72 = scmp.eq.s32.totalorder %s36, 1
      %p73 = por %p71, %p72
      %p75 = scmp.ne.s32.totalorder %s58, %s74
      %p76 = scmp.eq.s32.totalorder %s36, 0
      %p77 = por %p75, %p76
      %s78 = ssub.s32 %s37, %s49
      %p79 = scmp.eq.s32.totalorder %s78, 0
      %s81 = sadd.s32 %s80, 1
      %s82 = scalar_select %p79, %s80, %s81
      %p85 = pneg %p79
      %p86 = scmp.eq.s32.totalorder %s30, 1
      %p87 = por %p85, %p86
      %p88 = scmp.ne.s32.totalorder %s80, %s83
      %p89 = scmp.eq.s32.totalorder %s30, 0
      %p90 = por %p88, %p89
      %p91 = scmp.ne.s32.totalorder %s80, %s83
      %p92 = scmp.eq.s32.totalorder %s35, 1
      %p93 = por %p91, %p92
      %p94 = scmp.ne.s32.totalorder %s83, %s84
      %p95 = scmp.eq.s32.totalorder %s35, 0
      %p96 = por %p94, %p95
      %p97 = scmp.ne.s32.totalorder %s83, %s84
      %p98 = scmp.eq.s32.totalorder %s36, 1
      %p99 = por %p97, %p98
      %p101 = scmp.ne.s32.totalorder %s84, %s100
      %p102 = scmp.eq.s32.totalorder %s36, 0
      %p103 = por %p101, %p102
      %s104 = ssub.s32 %s37, %s49
      %p105 = scmp.eq.s32.totalorder %s104, 0
      %s107 = sadd.s32 %s106, 1
      %s108 = scalar_select %p105, %s106, %s107
      %p111 = pneg %p105
      %p112 = scmp.eq.s32.totalorder %s30, 1
      %p113 = por %p111, %p112
      %p114 = scmp.ne.s32.totalorder %s106, %s109
      %p115 = scmp.eq.s32.totalorder %s30, 0
      %p116 = por %p114, %p115
      %p117 = scmp.ne.s32.totalorder %s106, %s109
      %p118 = scmp.eq.s32.totalorder %s35, 1
      %p119 = por %p117, %p118
      %p120 = scmp.ne.s32.totalorder %s109, %s110
      %p121 = scmp.eq.s32.totalorder %s35, 0
      %p122 = por %p120, %p121
      %p123 = scmp.ne.s32.totalorder %s109, %s110
      %p124 = scmp.eq.s32.totalorder %s36, 1
      %p125 = por %p123, %p124
      %p127 = scmp.ne.s32.totalorder %s110, %s126
      %p128 = scmp.eq.s32.totalorder %s36, 0
      %p129 = por %p127, %p128
      %s130 = ssub.s32 %s37, %s49
      %p131 = scmp.eq.s32.totalorder %s130, 0
      %s133 = sadd.s32 %s132, 1
      %s134 = scalar_select %p131, %s132, %s133
      %p137 = pneg %p131
      %p138 = scmp.eq.s32.totalorder %s30, 1
      %p139 = por %p137, %p138
      %p140 = scmp.ne.s32.totalorder %s132, %s135
      %p141 = scmp.eq.s32.totalorder %s30, 0
      %p142 = por %p140, %p141
      %p143 = scmp.ne.s32.totalorder %s132, %s135
      %p144 = scmp.eq.s32.totalorder %s35, 1
      %p145 = por %p143, %p144
      %p146 = scmp.ne.s32.totalorder %s135, %s136
      %p147 = scmp.eq.s32.totalorder %s35, 0
      %p148 = por %p146, %p147
      %p149 = scmp.ne.s32.totalorder %s135, %s136
      %p150 = scmp.eq.s32.totalorder %s36, 1
      %p151 = por %p149, %p150
      %p153 = scmp.ne.s32.totalorder %s136, %s152
      %p154 = scmp.eq.s32.totalorder %s36, 0
      %p155 = por %p153, %p154
      %s156 = ssub.s32 %s37, %s49
      %p157 = scmp.eq.s32.totalorder %s156, 0
      %s159 = sadd.s32 %s158, 1
      %s160 = scalar_select %p157, %s158, %s159
      %p163 = pneg %p157
      %p164 = scmp.eq.s32.totalorder %s30, 1
      %p165 = por %p163, %p164
      %p166 = scmp.ne.s32.totalorder %s158, %s161
      %p167 = scmp.eq.s32.totalorder %s30, 0
      %p168 = por %p166, %p167
      %p169 = scmp.ne.s32.totalorder %s158, %s161
      %p170 = scmp.eq.s32.totalorder %s35, 1
      %p171 = por %p169, %p170
      %p172 = scmp.ne.s32.totalorder %s161, %s162
      %p173 = scmp.eq.s32.totalorder %s35, 0
      %p174 = por %p172, %p173
      %p175 = scmp.ne.s32.totalorder %s161, %s162
      %p176 = scmp.eq.s32.totalorder %s36, 1
      %p177 = por %p175, %p176
      %p179 = scmp.ne.s32.totalorder %s162, %s178
      %p180 = scmp.eq.s32.totalorder %s36, 0
      %p181 = por %p179, %p180
      %s183 = sadd.s32 %s182, 1
      %p186 = scmp.eq.s32.totalorder %s30, 1
      %p187 = scmp.ne.s32.totalorder %s182, %s184
      %p188 = scmp.eq.s32.totalorder %s30, 0
      %p189 = por %p187, %p188
      %p190 = scmp.ne.s32.totalorder %s182, %s184
      %p191 = scmp.eq.s32.totalorder %s35, 1
      %p192 = por %p190, %p191
      %p193 = scmp.ne.s32.totalorder %s184, %s185
      %p194 = scmp.eq.s32.totalorder %s35, 0
      %p195 = por %p193, %p194
      %p196 = scmp.ne.s32.totalorder %s184, %s185
      %p197 = scmp.eq.s32.totalorder %s36, 1
      %p198 = por %p196, %p197
      %p200 = scmp.ne.s32.totalorder %s185, %s199
      %p201 = scmp.eq.s32.totalorder %s36, 0
      %p202 = por %p200, %p201
      %s204 = sadd.s32 %s203, 1
      %p207 = scmp.eq.s32.totalorder %s30, 1
      %p208 = scmp.ne.s32.totalorder %s203, %s205
      %p209 = scmp.eq.s32.totalorder %s30, 0
      %p210 = por %p208, %p209
      %p211 = scmp.ne.s32.totalorder %s203, %s205
      %p212 = scmp.eq.s32.totalorder %s35, 1
      %p213 = por %p211, %p212
      %p214 = scmp.ne.s32.totalorder %s205, %s206
      %p215 = scmp.eq.s32.totalorder %s35, 0
      %p216 = por %p214, %p215
      %p217 = scmp.ne.s32.totalorder %s205, %s206
      %p218 = scmp.eq.s32.totalorder %s36, 1
      %p219 = por %p217, %p218
      %p221 = scmp.ne.s32.totalorder %s206, %s220
      %p222 = scmp.eq.s32.totalorder %s36, 0
      %p223 = por %p221, %p222
      %s225 = sadd.s32 %s224, 1
      %p228 = scmp.eq.s32.totalorder %s30, 1
      %p229 = scmp.ne.s32.totalorder %s224, %s226
      %p230 = scmp.eq.s32.totalorder %s30, 0
      %p231 = por %p229, %p230
      %p232 = scmp.ne.s32.totalorder %s224, %s226
      %p233 = scmp.eq.s32.totalorder %s35, 1
      %p234 = por %p232, %p233
      %p235 = scmp.ne.s32.totalorder %s226, %s227
      %p236 = scmp.eq.s32.totalorder %s35, 0
      %p237 = por %p235, %p236
      %p238 = scmp.ne.s32.totalorder %s226, %s227
      %p239 = scmp.eq.s32.totalorder %s36, 1
      %p240 = por %p238, %p239
      %p242 = scmp.ne.s32.totalorder %s227, %s241
      %p243 = scmp.eq.s32.totalorder %s36, 0
      %p244 = por %p242, %p243
      %s246 = sadd.s32 %s245, 1
      %p249 = scmp.eq.s32.totalorder %s30, 1
      %p250 = scmp.ne.s32.totalorder %s245, %s247
      %p251 = scmp.eq.s32.totalorder %s30, 0
      %p252 = por %p250, %p251
      %p253 = scmp.ne.s32.totalorder %s245, %s247
      %p254 = scmp.eq.s32.totalorder %s35, 1
      %p255 = por %p253, %p254
      %p256 = scmp.ne.s32.totalorder %s247, %s248
      %p257 = scmp.eq.s32.totalorder %s35, 0
      %p258 = por %p256, %p257
      %p259 = scmp.ne.s32.totalorder %s247, %s248
      %p260 = scmp.eq.s32.totalorder %s36, 1
      %p261 = por %p259, %p260
      %p263 = scmp.ne.s32.totalorder %s248, %s262
      %p264 = scmp.eq.s32.totalorder %s36, 0
      %p265 = por %p263, %p264
      %s267 = sadd.s32 %s266, 1
      %p270 = scmp.eq.s32.totalorder %s30, 1
      %p271 = scmp.ne.s32.totalorder %s266, %s268
      %p272 = scmp.eq.s32.totalorder %s30, 0
      %p273 = por %p271, %p272
      %p274 = scmp.ne.s32.totalorder %s266, %s268
      %p275 = scmp.eq.s32.totalorder %s35, 1
      %p276 = por %p274, %p275
      %p277 = scmp.ne.s32.totalorder %s268, %s269
      %p278 = scmp.eq.s32.totalorder %s35, 0
      %p279 = por %p277, %p278
      %p280 = scmp.ne.s32.totalorder %s268, %s269
      %p281 = scmp.eq.s32.totalorder %s36, 1
      %p282 = por %p280, %p281
      %p284 = scmp.ne.s32.totalorder %s269, %s283
      %p285 = scmp.eq.s32.totalorder %s36, 0
      %p286 = por %p284, %p285
      %s288 = sadd.s32 %s287, 1
      %p291 = scmp.eq.s32.totalorder %s30, 1
      %p292 = scmp.ne.s32.totalorder %s287, %s289
      %p293 = scmp.eq.s32.totalorder %s30, 0
      %p294 = por %p292, %p293
      %p295 = scmp.ne.s32.totalorder %s287, %s289
      %p296 = scmp.eq.s32.totalorder %s35, 1
      %p297 = por %p295, %p296
      %p298 = scmp.ne.s32.totalorder %s289, %s290
      %p299 = scmp.eq.s32.totalorder %s35, 0
      %p300 = por %p298, %p299
      %p301 = scmp.ne.s32.totalorder %s289, %s290
      %p302 = scmp.eq.s32.totalorder %s36, 1
      %p303 = por %p301, %p302
      %p305 = scmp.ne.s32.totalorder %s290, %s304
      %p306 = scmp.eq.s32.totalorder %s36, 0
      %p307 = por %p305, %p306
      %s309 = sadd.s32 %s308, 1
      %p312 = scmp.eq.s32.totalorder %s30, 1
      %p313 = scmp.ne.s32.totalorder %s308, %s310
      %p314 = scmp.eq.s32.totalorder %s30, 0
      %p315 = por %p313, %p314
      %p316 = scmp.ne.s32.totalorder %s308, %s310
      %p317 = scmp.eq.s32.totalorder %s35, 1
      %p318 = por %p316, %p317
      %p319 = scmp.ne.s32.totalorder %s310, %s311
      %p320 = scmp.eq.s32.totalorder %s35, 0
      %p321 = por %p319, %p320
      %p322 = scmp.ne.s32.totalorder %s310, %s311
      %p323 = scmp.eq.s32.totalorder %s36, 1
      %p324 = por %p322, %p323
      %p326 = scmp.ne.s32.totalorder %s311, %s325
      %p327 = scmp.eq.s32.totalorder %s36, 0
      %p328 = por %p326, %p327
      %s330 = sadd.s32 %s329, 1
      %p333 = scmp.eq.s32.totalorder %s30, 1
      %p334 = scmp.ne.s32.totalorder %s329, %s331
      %p335 = scmp.eq.s32.totalorder %s30, 0
      %p336 = por %p334, %p335
      %p337 = scmp.ne.s32.totalorder %s329, %s331
      %p338 = scmp.eq.s32.totalorder %s35, 1
      %p339 = por %p337, %p338
      %p340 = scmp.ne.s32.totalorder %s331, %s332
      %p341 = scmp.eq.s32.totalorder %s35, 0
      %p342 = por %p340, %p341
      %p343 = scmp.ne.s32.totalorder %s331, %s332
      %p344 = scmp.eq.s32.totalorder %s36, 1
      %p345 = por %p343, %p344
      %p347 = scmp.ne.s32.totalorder %s332, %s346
      %p348 = scmp.eq.s32.totalorder %s36, 0
      %p349 = por %p347, %p348
      %s350 = ssub.s32 %s37, %s49
      %s351 = ssub.s32 %s38, %s45
      %s352 = sor.u32 %s350, %s351
      %p353 = scmp.eq.s32.totalorder %s352, 0
      %s355 = sadd.s32 %s354, 1
      %s356 = scalar_select %p353, %s354, %s355
      %p359 = pneg %p353
      %p360 = scmp.eq.s32.totalorder %s30, 1
      %p361 = por %p359, %p360
      %p362 = scmp.ne.s32.totalorder %s354, %s357
      %p363 = scmp.eq.s32.totalorder %s30, 0
      %p364 = por %p362, %p363
      %p365 = scmp.ne.s32.totalorder %s354, %s357
      %p366 = scmp.eq.s32.totalorder %s35, 1
      %p367 = por %p365, %p366
      %p368 = scmp.ne.s32.totalorder %s357, %s358
      %p369 = scmp.eq.s32.totalorder %s35, 0
      %p370 = por %p368, %p369
      %p371 = scmp.ne.s32.totalorder %s357, %s358
      %p372 = scmp.eq.s32.totalorder %s36, 1
      %p373 = por %p371, %p372
      %p375 = scmp.ne.s32.totalorder %s358, %s374
      %p376 = scmp.eq.s32.totalorder %s36, 0
      %p377 = por %p375, %p376
      %p378 = scmp.le.s32.totalorder 1, %s30
      %p379 = scmp.lt.s32.totalorder %s30, 3
      %p380 = pnand %p378, %p379
      %p381 = pneg %p380
      // Predicated region
      $region9: #{tpu_custom_call.1} parent=5 // pred_check
        _
      $region10: #{tpu_custom_call.1} parent=5 // pred_check_branch
        %383 = sbr.rel (%p380) target = $region12
      $region11: #{tpu_custom_call.1} parent=5 // pred_region
        %s384 = ssub.s32 %s30, 1
        // Predicated region
        $region13: #{tpu_custom_call.1} parent=11 // pred_check
          %p385 = pneg %p195
        $region14: #{tpu_custom_call.1} parent=11 // pred_check_branch
          %387 = sbr.rel (%p385) target = $region16
        $region15: #{tpu_custom_call.1} parent=11 // pred_region
          _
        $region16: #{tpu_custom_call.1} parent=11 // pred_fallthru
          _
        // Predicated region
        $region17: #{tpu_custom_call.1} parent=11 // pred_check
          %p388 = pneg %p216
        $region18: #{tpu_custom_call.1} parent=11 // pred_check_branch
          %390 = sbr.rel (%p388) target = $region20
        $region19: #{tpu_custom_call.1} parent=11 // pred_region
          _
        $region20: #{tpu_custom_call.1} parent=11 // pred_fallthru
          _
        // Predicated region
        $region21: #{tpu_custom_call.1} parent=11 // pred_check
          %p391 = pneg %p237
        $region22: #{tpu_custom_call.1} parent=11 // pred_check_branch
          %393 = sbr.rel (%p391) target = $region24
        $region23: #{tpu_custom_call.1} parent=11 // pred_region
          %s395 = ssub.s32 512, 512
          %396 = vsyncadd [#allocation13], %s395
          %s397 = sshll.u32 [#allocation12], 4
          %s398 = int_to_ptr.vmem [resolvable:$true] %s397
          %403 = dma.hbm_to_vmem [thread:$0]  %s7, 512, %s398, [#allocation13], 128, 128, 8
        $region24: #{tpu_custom_call.1} parent=11 // pred_fallthru
          _
        // Predicated region
        $region25: #{tpu_custom_call.1} parent=11 // pred_check
          %p404 = pneg %p258
        $region26: #{tpu_custom_call.1} parent=11 // pred_check_branch
          %406 = sbr.rel (%p404) target = $region28
        $region27: #{tpu_custom_call.1} parent=11 // pred_region
          _
        $region28: #{tpu_custom_call.1} parent=11 // pred_fallthru
          _
        // Predicated region
        $region29: #{tpu_custom_call.1} parent=11 // pred_check
          %p407 = pneg %p279
        $region30: #{tpu_custom_call.1} parent=11 // pred_check_branch
          %409 = sbr.rel (%p407) target = $region32
        $region31: #{tpu_custom_call.1} parent=11 // pred_region
          %s411 = ssub.s32 512, 512
          %412 = vsyncadd [#allocation13], %s411
          %s413 = sshll.u32 [#allocation14], 4
          %s414 = int_to_ptr.vmem [resolvable:$true] %s413
          %419 = dma.hbm_to_vmem [thread:$0]  %s9, 512, %s414, [#allocation13], 128, 128, 8
        $region32: #{tpu_custom_call.1} parent=11 // pred_fallthru
          _
        // Predicated region
        $region33: #{tpu_custom_call.1} parent=11 // pred_check
          %p420 = pneg %p300
        $region34: #{tpu_custom_call.1} parent=11 // pred_check_branch
          %422 = sbr.rel (%p420) target = $region36
        $region35: #{tpu_custom_call.1} parent=11 // pred_region
          _
        $region36: #{tpu_custom_call.1} parent=11 // pred_fallthru
          _
        // Predicated region
        $region37: #{tpu_custom_call.1} parent=11 // pred_check
          %p423 = pneg %p321
        $region38: #{tpu_custom_call.1} parent=11 // pred_check_branch
          %425 = sbr.rel (%p423) target = $region40
        $region39: #{tpu_custom_call.1} parent=11 // pred_region
          %s427 = ssub.s32 512, 512
          %428 = vsyncadd [#allocation16], %s427
          %s429 = sshll.u32 [#allocation15], 4
          %s430 = int_to_ptr.vmem [resolvable:$true] %s429
          %435 = dma.hbm_to_vmem [thread:$0]  %s11, 512, %s430, [#allocation16], 128, 128, 8
        $region40: #{tpu_custom_call.1} parent=11 // pred_fallthru
          _
        // Predicated region
        $region41: #{tpu_custom_call.1} parent=11 // pred_check
          %p436 = pneg %p342
        $region42: #{tpu_custom_call.1} parent=11 // pred_check_branch
          %438 = sbr.rel (%p436) target = $region44
        $region43: #{tpu_custom_call.1} parent=11 // pred_region
          _
        $region44: #{tpu_custom_call.1} parent=11 // pred_fallthru
          _
      $region12: #{tpu_custom_call.1} parent=5 // pred_fallthru
        _
      %p439 = scmp.lt.s32.totalorder %s30, 2
      // Predicated region
      $region45: #{tpu_custom_call.1} parent=5 // pred_check
        %p440 = pneg %p439
      $region46: #{tpu_custom_call.1} parent=5 // pred_check_branch
        %442 = sbr.rel (%p440) target = $region48
      $region47: #{tpu_custom_call.1} parent=5 // pred_region
        // Predicated region
        $region49: #{tpu_custom_call.1} parent=47 // pred_check
          %p443 = pneg %p64
        $region50: #{tpu_custom_call.1} parent=47 // pred_check_branch
          %445 = sbr.rel (%p443) target = $region52
        $region51: #{tpu_custom_call.1} parent=47 // pred_region
          %s446 = sand.u32 %s54, 1
          %s447 = scalar_lea.sflag [#allocation7], %s446
          %s448 = sand.u32 %s54, 1
          %s449 = smul.addr %s448, 8
          %s450 = scalar_lea.vmem [#allocation6], %s449
          %s452 = ssub.s32 128, 128
          %453 = vsyncadd %s447, %s452
          %s454 = sadd.s32 %s38, %s37
          %s455 = smul.addr %s454, 128
          %s456 = scalar_lea.hbm %s0, %s455
          %s458 = sshll.u32 %s450, 4
          %s459 = int_to_ptr.vmem [resolvable:$true] %s458
          %461 = dma.hbm_to_vmem [thread:$0]  %s456, 128, %s459, %s447
        $region52: #{tpu_custom_call.1} parent=47 // pred_fallthru
          _
        // Predicated region
        $region53: #{tpu_custom_call.1} parent=47 // pred_check
          %p462 = pneg %p90
        $region54: #{tpu_custom_call.1} parent=47 // pred_check_branch
          %464 = sbr.rel (%p462) target = $region56
        $region55: #{tpu_custom_call.1} parent=47 // pred_region
          %s465 = sand.u32 %s30, 1
          %s466 = scalar_lea.sflag [#allocation10], %s465
          %s467 = sand.u32 %s80, 1
          %s468 = smul.addr %s467, 8
          %s469 = scalar_lea.vmem [#allocation9], %s468
          %s471 = ssub.s32 128, 128
          %472 = vsyncadd %s466, %s471
          %s473 = smul.addr %s37, 128
          %s474 = scalar_lea.hbm %s1, %s473
          %s476 = sshll.u32 %s469, 4
          %s477 = int_to_ptr.vmem [resolvable:$true] %s476
          %479 = dma.hbm_to_vmem [thread:$0]  %s474, 128, %s477, %s466
        $region56: #{tpu_custom_call.1} parent=47 // pred_fallthru
          _
        // Predicated region
        $region57: #{tpu_custom_call.1} parent=47 // pred_check
          %p480 = pneg %p116
        $region58: #{tpu_custom_call.1} parent=47 // pred_check_branch
          %482 = sbr.rel (%p480) target = $region60
        $region59: #{tpu_custom_call.1} parent=47 // pred_region
          %s483 = sand.u32 %s30, 1
          %s484 = scalar_lea.sflag [#allocation10], %s483
          %s485 = sand.u32 %s106, 1
          %s486 = smul.addr %s485, 8
          %s487 = scalar_lea.vmem [#allocation11], %s486
          %s489 = ssub.s32 128, 128
          %490 = vsyncadd %s484, %s489
          %s491 = smul.addr %s37, 128
          %s492 = scalar_lea.hbm %s2, %s491
          %s494 = sshll.u32 %s487, 4
          %s495 = int_to_ptr.vmem [resolvable:$true] %s494
          %497 = dma.hbm_to_vmem [thread:$0]  %s492, 128, %s495, %s484
        $region60: #{tpu_custom_call.1} parent=47 // pred_fallthru
          _
        // Predicated region
        $region61: #{tpu_custom_call.1} parent=47 // pred_check
          %p498 = pneg %p142
        $region62: #{tpu_custom_call.1} parent=47 // pred_check_branch
          %500 = sbr.rel (%p498) target = $region64
        $region63: #{tpu_custom_call.1} parent=47 // pred_region
          %p501 = scmp.lt.s32.totalorder %s37, 1
          %s502 = scalar_select %p501, %s37, 1
          %s503 = smul.addr %s502, 8
          %s504 = scalar_lea.vmem %s3, %s503
        $region64: #{tpu_custom_call.1} parent=47 // pred_fallthru
          _
        // Predicated region
        $region65: #{tpu_custom_call.1} parent=47 // pred_check
          %p505 = pneg %p168
        $region66: #{tpu_custom_call.1} parent=47 // pred_check_branch
          %507 = sbr.rel (%p505) target = $region68
        $region67: #{tpu_custom_call.1} parent=47 // pred_region
          %p508 = scmp.lt.s32.totalorder %s37, 1
          %s509 = scalar_select %p508, %s37, 1
          %s510 = scalar_lea.vmem %s4, %s509
        $region68: #{tpu_custom_call.1} parent=47 // pred_fallthru
          _
      $region48: #{tpu_custom_call.1} parent=5 // pred_fallthru
        _
      %p511 = scmp.le.s32.totalorder 1, %s30
      %p512 = scmp.lt.s32.totalorder %s30, 3
      %p513 = pnand %p511, %p512
      %p514 = pneg %p513
      // Predicated region
      $region69: #{tpu_custom_call.1} parent=5 // pred_check
        _
      $region70: #{tpu_custom_call.1} parent=5 // pred_check_branch
        %516 = sbr.rel (%p513) target = $region72
      $region71: #{tpu_custom_call.1} parent=5 // pred_region
        %s517 = ssub.s32 %s30, 1
        %s518 = sand.u32 %s57, 1
        %s519 = scalar_lea.sflag [#allocation7], %s518
        %s520 = sand.u32 %s57, 1
        %s521 = smul.addr %s520, 8
        %s522 = scalar_lea.vmem [#allocation6], %s521
        // Predicated region
        $region73: #{tpu_custom_call.1} parent=71 // pred_check
          %p523 = pneg %p70
        $region74: #{tpu_custom_call.1} parent=71 // pred_check_branch
          %525 = sbr.rel (%p523) target = $region76
        $region75: #{tpu_custom_call.1} parent=71 // pred_region
          %526 = dma.done %s519, 128
        $region76: #{tpu_custom_call.1} parent=71 // pred_fallthru
          _
        %s527 = sand.u32 %s35, 1
        %s528 = scalar_lea.sflag [#allocation10], %s527
        %s529 = sand.u32 %s83, 1
        %s530 = smul.addr %s529, 8
        %s531 = scalar_lea.vmem [#allocation9], %s530
        // Predicated region
        $region77: #{tpu_custom_call.1} parent=71 // pred_check
          %p532 = pneg %p96
        $region78: #{tpu_custom_call.1} parent=71 // pred_check_branch
          %534 = sbr.rel (%p532) target = $region80
        $region79: #{tpu_custom_call.1} parent=71 // pred_region
          %535 = dma.done %s528, 128
        $region80: #{tpu_custom_call.1} parent=71 // pred_fallthru
          _
        %s536 = sand.u32 %s35, 1
        %s537 = scalar_lea.sflag [#allocation10], %s536
        %s538 = sand.u32 %s109, 1
        %s539 = smul.addr %s538, 8
        %s540 = scalar_lea.vmem [#allocation11], %s539
        // Predicated region
        $region81: #{tpu_custom_call.1} parent=71 // pred_check
          %p541 = pneg %p122
        $region82: #{tpu_custom_call.1} parent=71 // pred_check_branch
          %543 = sbr.rel (%p541) target = $region84
        $region83: #{tpu_custom_call.1} parent=71 // pred_region
          %544 = dma.done %s537, 128
        $region84: #{tpu_custom_call.1} parent=71 // pred_fallthru
          _
        // Predicated region
        $region85: #{tpu_custom_call.1} parent=71 // pred_check
          %p545 = pneg %p237
        $region86: #{tpu_custom_call.1} parent=71 // pred_check_branch
          %547 = sbr.rel (%p545) target = $region88
        $region87: #{tpu_custom_call.1} parent=71 // pred_region
          %548 = dma.done [#allocation13], 512
        $region88: #{tpu_custom_call.1} parent=71 // pred_fallthru
          _
        // Predicated region
        $region89: #{tpu_custom_call.1} parent=71 // pred_check
          %p549 = pneg %p279
        $region90: #{tpu_custom_call.1} parent=71 // pred_check_branch
          %551 = sbr.rel (%p549) target = $region92
        $region91: #{tpu_custom_call.1} parent=71 // pred_region
          %552 = dma.done [#allocation13], 512
        $region92: #{tpu_custom_call.1} parent=71 // pred_fallthru
          _
        // Predicated region
        $region93: #{tpu_custom_call.1} parent=71 // pred_check
          %p553 = pneg %p321
        $region94: #{tpu_custom_call.1} parent=71 // pred_check_branch
          %555 = sbr.rel (%p553) target = $region96
        $region95: #{tpu_custom_call.1} parent=71 // pred_region
          %556 = dma.done [#allocation16], 512
        $region96: #{tpu_custom_call.1} parent=71 // pred_fallthru
          _
        %s557 = sand.u32 %s57, 1
        %s558 = scalar_lea.sflag [#allocation7], %s557
        %s559 = sand.u32 %s57, 1
        %s560 = smul.addr %s559, 8
        %s561 = scalar_lea.vmem [#allocation6], %s560
        %p562 = pneg %p70
        %p563 = pneg %p67
        %s564 = sand.u32 %s35, 1
        %s565 = scalar_lea.sflag [#allocation10], %s564
        %s566 = sand.u32 %s83, 1
        %s567 = smul.addr %s566, 8
        %s568 = scalar_lea.vmem [#allocation9], %s567
        %p569 = pneg %p96
        %p570 = pneg %p93
        %s571 = sand.u32 %s35, 1
        %s572 = scalar_lea.sflag [#allocation10], %s571
        %s573 = sand.u32 %s109, 1
        %s574 = smul.addr %s573, 8
        %s575 = scalar_lea.vmem [#allocation11], %s574
        %p576 = pneg %p122
        %p577 = pneg %p119
        %p578 = scmp.lt.s32.totalorder %s39, 1
        %s579 = scalar_select %p578, %s39, 1
        %s580 = smul.addr %s579, 8
        %s581 = scalar_lea.vmem %s3, %s580
        %p582 = pneg %p148
        %p583 = pneg %p145
        %p584 = scmp.lt.s32.totalorder %s39, 1
        %s585 = scalar_select %p584, %s39, 1
        %s586 = scalar_lea.vmem %s4, %s585
        %p587 = pneg %p174
        %p588 = pneg %p171
        %p589 = pneg %p195
        %p590 = pneg %p192
        %p591 = pneg %p216
        %p592 = pneg %p213
        %p593 = pneg %p237
        %p594 = pneg %p234
        %p595 = pneg %p258
        %p596 = pneg %p255
        %p597 = pneg %p279
        %p598 = pneg %p276
        %p599 = pneg %p300
        %p600 = pneg %p297
        %p601 = pneg %p321
        %p602 = pneg %p318
        %p603 = pneg %p342
        %p604 = pneg %p339
        %p605 = pneg %p370
        %p606 = pneg %p367
        %s607 = sand.u32 %s357, 1
        %s608 = scalar_lea.sflag [#allocation8], %s607
        %s609 = sand.u32 %s357, 1
        %s610 = smul.addr %s609, 8
        %s611 = scalar_lea.vmem [#allocation17], %s610
        %p612 = scmp.lt.s32.totalorder %s39, 1
        %s613 = scalar_select %p612, %s39, 1
        %s614 = smul.addr %s613, 8
        %s615 = scalar_lea.vmem %s3, %s614
        %p616 = scmp.lt.s32.totalorder %s39, 1
        %s617 = scalar_select %p616, %s39, 1
        %s618 = scalar_lea.vmem %s4, %s617
        %p619 = scmp.eq.s32.totalorder %s40, 0
        // Predicated region
        $region97: #{tpu_custom_call.1} parent=71 // pred_check
          %p620 = pneg %p619
        $region98: #{tpu_custom_call.1} parent=71 // pred_check_branch
          %622 = sbr.rel (%p620) target = $region100
        $region99: #{tpu_custom_call.1} parent=71 // pred_region
          %v623 = vld [vmem:[%s531] sm:$0xff]
          %v624 = vld [vmem:[%s540] sm:$0xff]
          %v625 = vld [vmem:[%s615] sm:$0xff]
          %v626 = vld [vmem:[#allocation12] sm:$0xff]
          %v627 = vld [vmem:[#allocation12 + $0x8] sm:$0xff]
          %v628 = vld [vmem:[#allocation12 + $0x10] sm:$0xff]
          %v629 = vld [vmem:[#allocation12 + $0x18] sm:$0xff]
          %v630 = vld [vmem:[%s8] sm:$0x1]
          %v632 = vlaneseq
          %v633 = vshrl.u32 %v632, 7
          %v634 = vsub.s32 0, %v633
          %v635 = vrot.slane %v630, %v634
          %vm637 = vcmask 261120
          %v639 = vsel %vm637, %v623, 0
          %641 = vmatprep.subr.mxu0 0.0
          %642 = vmatpush1.msra.mxu0 %v626
          %643 = vmatprep.subr.mxu0 0.0
          %644 = vmatpush1.msra.mxu0 %v627
          %645 = vmatprep.subr.mxu0 0.0
          %646 = vmatpush1.msra.mxu0 %v628
          %647 = vmatprep.subr.mxu0 0.0
          %648 = vmatpush1.msra.mxu0 %v629
          %649 = vmatprep.subr.mxu0 0.0
          %650 = vmatpush1.msra.mxu0 0.0
          %651 = vmatprep.subr.mxu0 0.0
          %652 = vmatpush1.msra.mxu0 0.0
          %653 = vmatprep.subr.mxu0 0.0
          %654 = vmatpush1.msra.mxu0 0.0
          %655 = vmatprep.subr.mxu0 0.0
          %656 = vmatpush1.msra.mxu0 0.0
          %657 = vmatprep.subr.mxu0 0.0
          %658 = vmatpush1.msra.mxu0 0.0
          %659 = vmatprep.subr.mxu0 0.0
          %660 = vmatpush1.msra.mxu0 0.0
          %661 = vmatprep.subr.mxu0 0.0
          %662 = vmatpush1.msra.mxu0 0.0
          %663 = vmatprep.subr.mxu0 0.0
          %664 = vmatpush1.msra.mxu0 0.0
          %665 = vmatprep.subr.mxu0 0.0
          %666 = vmatpush1.msra.mxu0 0.0
          %667 = vmatprep.subr.mxu0 0.0
          %668 = vmatpush1.msra.mxu0 0.0
          %669 = vmatprep.subr.mxu0 0.0
          %670 = vmatpush1.msra.mxu0 0.0
          %671 = vmatprep.subr.mxu0 0.0
          %672 = vmatpush1.msra.mxu0 0.0
          %673 = vmatprep.subr.mxu0 0.0
          %674 = vmatpush1.msra.mxu0 0.0
          %675 = vmatprep.subr.mxu0 0.0
          %676 = vmatpush1.msra.mxu0 0.0
          %677 = vmatprep.subr.mxu0 0.0
          %678 = vmatpush1.msra.mxu0 0.0
          %679 = vmatprep.subr.mxu0 0.0
          %680 = vmatpush1.msra.mxu0 0.0
          %681 = vmatprep.subr.mxu0 0.0
          %682 = vmatpush1.msra.mxu0 0.0
          %683 = vmatprep.subr.mxu0 0.0
          %684 = vmatpush1.msra.mxu0 0.0
          %685 = vmatprep.subr.mxu0 0.0
          %686 = vmatpush1.msra.mxu0 0.0
          %687 = vmatprep.subr.mxu0 0.0
          %688 = vmatpush1.msra.mxu0 0.0
          %689 = vmatprep.subr.mxu0 0.0
          %690 = vmatpush1.msra.mxu0 0.0
          %691 = vmatprep.subr.mxu0 0.0
          %692 = vmatpush1.msra.mxu0 0.0
          %693 = vmatprep.subr.mxu0 0.0
          %694 = vmatpush1.msra.mxu0 0.0
          %695 = vmatprep.subr.mxu0 0.0
          %696 = vmatpush1.msra.mxu0 0.0
          %697 = vmatprep.subr.mxu0 0.0
          %698 = vmatpush1.msra.mxu0 0.0
          %699 = vmatprep.subr.mxu0 0.0
          %700 = vmatpush1.msra.mxu0 0.0
          %701 = vmatprep.subr.mxu0 0.0
          %702 = vmatpush1.msra.mxu0 0.0
          %703 = vmatprep.subr.mxu0 0.0
          %704 = vmatpush1.msra.mxu0 0.0
          %705 = vmatprep.mubr.f32.mxu0 0.0
          %706 = vmatmul.mubr.f32.gmra.mrb[0].mxu0 %v639
          %v707 = vpop.f32.mrb[0].mxu0
          %v708 = vadd.f32 %v635, %v707
          %v709 = vpop.f32.mrb[0].mxu0
          %710 = vdwg.mxu0
          %712 = vset.pattern.permute.xlu0 0
          %713 = vperm.xlu0 %712, %v625
          %v714 = vpop.permute.xlu0 %713
          %v716 = vmul.f32 %v708, %v714
          %v717 = vld [vmem:[#allocation14] sm:$0xff]
          %v718 = vld [vmem:[#allocation14 + $0x8] sm:$0xff]
          %v719 = vld [vmem:[#allocation14 + $0x10] sm:$0xff]
          %v720 = vld [vmem:[#allocation14 + $0x18] sm:$0xff]
          %v721 = vld [vmem:[%s10] sm:$0x1]
          %v723 = vlaneseq
          %v724 = vshrl.u32 %v723, 7
          %v725 = vsub.s32 0, %v724
          %v726 = vrot.slane %v721, %v725
          %v729 = vsel %vm637, %v624, 0
          %731 = vmatprep.subr.mxu0 0.0
          %732 = vmatpush1.msra.mxu0 %v717
          %733 = vmatprep.subr.mxu0 0.0
          %734 = vmatpush1.msra.mxu0 %v718
          %735 = vmatprep.subr.mxu0 0.0
          %736 = vmatpush1.msra.mxu0 %v719
          %737 = vmatprep.subr.mxu0 0.0
          %738 = vmatpush1.msra.mxu0 %v720
          %739 = vmatprep.subr.mxu0 0.0
          %740 = vmatpush1.msra.mxu0 0.0
          %741 = vmatprep.subr.mxu0 0.0
          %742 = vmatpush1.msra.mxu0 0.0
          %743 = vmatprep.subr.mxu0 0.0
          %744 = vmatpush1.msra.mxu0 0.0
          %745 = vmatprep.subr.mxu0 0.0
          %746 = vmatpush1.msra.mxu0 0.0
          %747 = vmatprep.subr.mxu0 0.0
          %748 = vmatpush1.msra.mxu0 0.0
          %749 = vmatprep.subr.mxu0 0.0
          %750 = vmatpush1.msra.mxu0 0.0
          %751 = vmatprep.subr.mxu0 0.0
          %752 = vmatpush1.msra.mxu0 0.0
          %753 = vmatprep.subr.mxu0 0.0
          %754 = vmatpush1.msra.mxu0 0.0
          %755 = vmatprep.subr.mxu0 0.0
          %756 = vmatpush1.msra.mxu0 0.0
          %757 = vmatprep.subr.mxu0 0.0
          %758 = vmatpush1.msra.mxu0 0.0
          %759 = vmatprep.subr.mxu0 0.0
          %760 = vmatpush1.msra.mxu0 0.0
          %761 = vmatprep.subr.mxu0 0.0
          %762 = vmatpush1.msra.mxu0 0.0
          %763 = vmatprep.subr.mxu0 0.0
          %764 = vmatpush1.msra.mxu0 0.0
          %765 = vmatprep.subr.mxu0 0.0
          %766 = vmatpush1.msra.mxu0 0.0
          %767 = vmatprep.subr.mxu0 0.0
          %768 = vmatpush1.msra.mxu0 0.0
          %769 = vmatprep.subr.mxu0 0.0
          %770 = vmatpush1.msra.mxu0 0.0
          %771 = vmatprep.subr.mxu0 0.0
          %772 = vmatpush1.msra.mxu0 0.0
          %773 = vmatprep.subr.mxu0 0.0
          %774 = vmatpush1.msra.mxu0 0.0
          %775 = vmatprep.subr.mxu0 0.0
          %776 = vmatpush1.msra.mxu0 0.0
          %777 = vmatprep.subr.mxu0 0.0
          %778 = vmatpush1.msra.mxu0 0.0
          %779 = vmatprep.subr.mxu0 0.0
          %780 = vmatpush1.msra.mxu0 0.0
          %781 = vmatprep.subr.mxu0 0.0
          %782 = vmatpush1.msra.mxu0 0.0
          %783 = vmatprep.subr.mxu0 0.0
          %784 = vmatpush1.msra.mxu0 0.0
          %785 = vmatprep.subr.mxu0 0.0
          %786 = vmatpush1.msra.mxu0 0.0
          %787 = vmatprep.subr.mxu0 0.0
          %788 = vmatpush1.msra.mxu0 0.0
          %789 = vmatprep.subr.mxu0 0.0
          %790 = vmatpush1.msra.mxu0 0.0
          %791 = vmatprep.subr.mxu0 0.0
          %792 = vmatpush1.msra.mxu0 0.0
          %793 = vmatprep.subr.mxu0 0.0
          %794 = vmatpush1.msra.mxu0 0.0
          %795 = vmatprep.mubr.f32.mxu0 0.0
          %796 = vmatmul.mubr.f32.gmra.mrb[0].mxu0 %v729
          %v797 = vpop.f32.mrb[0].mxu0
          %v798 = vadd.f32 %v726, %v797
          %v799 = vpop.f32.mrb[0].mxu0
          %800 = vdwg.mxu0
          %801 = vst.msk [vmem:[#allocation2] sm:$0xff] %vm637, 0.0
          %802 = vst.msk [vmem:[#allocation2 + $0x8] sm:$0xff] %vm637, 0.0
          %803 = vst.msk [vmem:[#allocation2 + $0x10] sm:$0xff] %vm637, 0.0
          %804 = vst.msk [vmem:[#allocation2 + $0x18] sm:$0xff] %vm637, 0.0
          %805 = vst.msk [vmem:[#allocation3] sm:$0xff] %vm637, 0.0
          %806 = vst.msk [vmem:[#allocation3 + $0x8] sm:$0xff] %vm637, 0.0
          %807 = vst.msk [vmem:[#allocation3 + $0x10] sm:$0xff] %vm637, 0.0
          %808 = vst.msk [vmem:[#allocation3 + $0x18] sm:$0xff] %vm637, 0.0
          %vm809 = vcmask 64512
          %810 = vst.msk [vmem:[#allocation2] sm:$0xff] %vm809, %v716
          %811 = vst.msk [vmem:[#allocation3] sm:$0xff] %vm809, %v798
          %vm812 = vcmask 130112
          %813 = vst.msk [vmem:[#allocation2 + $0x8] sm:$0xff] %vm812, %v716
          %814 = vst.msk [vmem:[#allocation3 + $0x8] sm:$0xff] %vm812, %v798
          %vm815 = vcmask 195712
          %816 = vst.msk [vmem:[#allocation2 + $0x10] sm:$0xff] %vm815, %v716
          %817 = vst.msk [vmem:[#allocation3 + $0x10] sm:$0xff] %vm815, %v798
          %vm818 = vcmask 261312
          %819 = vst.msk [vmem:[#allocation2 + $0x18] sm:$0xff] %vm818, %v716
          %820 = vst.msk [vmem:[#allocation3 + $0x18] sm:$0xff] %vm818, %v798
        $region100: #{tpu_custom_call.1} parent=71 // pred_fallthru
          _
        %v821 = vld [vmem:[%s522] sm:$0xff]
        %v822 = vld [vmem:[%s5] sm:$0xff]
        %v823 = vld [vmem:[%s5 + $0x8] sm:$0xff]
        %v824 = vld [vmem:[%s5 + $0x10] sm:$0xff]
        %v825 = vld [vmem:[%s5 + $0x18] sm:$0xff]
        %v826 = vld [vmem:[%s6] sm:$0x1]
        %v828 = vlaneseq
        %v829 = vshrl.u32 %v828, 7
        %v830 = vsub.s32 0, %v829
        %v831 = vrot.slane %v826, %v830
        %vm833 = vcmask 261120
        %v835 = vsel %vm833, %v821, 0
        %837 = vmatprep.subr.mxu0 0.0
        %838 = vmatpush1.msra.mxu0 %v822
        %839 = vmatprep.subr.mxu0 0.0
        %840 = vmatpush1.msra.mxu0 %v823
        %841 = vmatprep.subr.mxu0 0.0
        %842 = vmatpush1.msra.mxu0 %v824
        %843 = vmatprep.subr.mxu0 0.0
        %844 = vmatpush1.msra.mxu0 %v825
        %845 = vmatprep.subr.mxu0 0.0
        %846 = vmatpush1.msra.mxu0 0.0
        %847 = vmatprep.subr.mxu0 0.0
        %848 = vmatpush1.msra.mxu0 0.0
        %849 = vmatprep.subr.mxu0 0.0
        %850 = vmatpush1.msra.mxu0 0.0
        %851 = vmatprep.subr.mxu0 0.0
        %852 = vmatpush1.msra.mxu0 0.0
        %853 = vmatprep.subr.mxu0 0.0
        %854 = vmatpush1.msra.mxu0 0.0
        %855 = vmatprep.subr.mxu0 0.0
        %856 = vmatpush1.msra.mxu0 0.0
        %857 = vmatprep.subr.mxu0 0.0
        %858 = vmatpush1.msra.mxu0 0.0
        %859 = vmatprep.subr.mxu0 0.0
        %860 = vmatpush1.msra.mxu0 0.0
        %861 = vmatprep.subr.mxu0 0.0
        %862 = vmatpush1.msra.mxu0 0.0
        %863 = vmatprep.subr.mxu0 0.0
        %864 = vmatpush1.msra.mxu0 0.0
        %865 = vmatprep.subr.mxu0 0.0
        %866 = vmatpush1.msra.mxu0 0.0
        %867 = vmatprep.subr.mxu0 0.0
        %868 = vmatpush1.msra.mxu0 0.0
        %869 = vmatprep.subr.mxu0 0.0
        %870 = vmatpush1.msra.mxu0 0.0
        %871 = vmatprep.subr.mxu0 0.0
        %872 = vmatpush1.msra.mxu0 0.0
        %873 = vmatprep.subr.mxu0 0.0
        %874 = vmatpush1.msra.mxu0 0.0
        %875 = vmatprep.subr.mxu0 0.0
        %876 = vmatpush1.msra.mxu0 0.0
        %877 = vmatprep.subr.mxu0 0.0
        %878 = vmatpush1.msra.mxu0 0.0
        %879 = vmatprep.subr.mxu0 0.0
        %880 = vmatpush1.msra.mxu0 0.0
        %881 = vmatprep.subr.mxu0 0.0
        %882 = vmatpush1.msra.mxu0 0.0
        %883 = vmatprep.subr.mxu0 0.0
        %884 = vmatpush1.msra.mxu0 0.0
        %885 = vmatprep.subr.mxu0 0.0
        %886 = vmatpush1.msra.mxu0 0.0
        %887 = vmatprep.subr.mxu0 0.0
        %888 = vmatpush1.msra.mxu0 0.0
        %889 = vmatprep.subr.mxu0 0.0
        %890 = vmatpush1.msra.mxu0 0.0
        %891 = vmatprep.subr.mxu0 0.0
        %892 = vmatpush1.msra.mxu0 0.0
        %893 = vmatprep.subr.mxu0 0.0
        %894 = vmatpush1.msra.mxu0 0.0
        %895 = vmatprep.subr.mxu0 0.0
        %896 = vmatpush1.msra.mxu0 0.0
        %897 = vmatprep.subr.mxu0 0.0
        %898 = vmatpush1.msra.mxu0 0.0
        %899 = vmatprep.subr.mxu0 0.0
        %900 = vmatpush1.msra.mxu0 0.0
        %901 = vmatprep.mubr.f32.mxu0 0.0
        %902 = vmatmul.mubr.f32.gmra.mrb[0].mxu0 %v835
        %v903 = vpop.f32.mrb[0].mxu0
        %v904 = vadd.f32 %v831, %v903
        %v905 = vpop.f32.mrb[0].mxu0
        %906 = vdwg.mxu0
        %v907 = vld [vmem:[%s618] sm:$0x1]
        %v908 = vld [vmem:[#allocation2] sm:$0xff]
        %v909 = vld [vmem:[#allocation2 + $0x8] sm:$0xff]
        %v910 = vld [vmem:[#allocation2 + $0x10] sm:$0xff]
        %v911 = vld [vmem:[#allocation2 + $0x18] sm:$0xff]
        %v913 = vsel %vm833, %v904, 0
        %v916 = vsel %vm833, %v908, 0
        %v919 = vsel %vm833, %v909, 0
        %v922 = vsel %vm833, %v910, 0
        %v925 = vsel %vm833, %v911, 0
        %927 = vmatprep.subr.mxu0 0.0
        %928 = vmatpush1.xpose.msra.mxu0 %v916
        %929 = vmatprep.subr.mxu0 0.0
        %930 = vmatpush1.xpose.msra.mxu0 %v919
        %931 = vmatprep.subr.mxu0 0.0
        %932 = vmatpush1.xpose.msra.mxu0 %v922
        %933 = vmatprep.subr.mxu0 0.0
        %934 = vmatpush1.xpose.msra.mxu0 %v925
        %935 = vmatprep.subr.mxu0 0.0
        %936 = vmatpush1.xpose.msra.mxu0 0.0
        %937 = vmatprep.subr.mxu0 0.0
        %938 = vmatpush1.xpose.msra.mxu0 0.0
        %939 = vmatprep.subr.mxu0 0.0
        %940 = vmatpush1.xpose.msra.mxu0 0.0
        %941 = vmatprep.subr.mxu0 0.0
        %942 = vmatpush1.xpose.msra.mxu0 0.0
        %943 = vmatprep.subr.mxu0 0.0
        %944 = vmatpush1.xpose.msra.mxu0 0.0
        %945 = vmatprep.subr.mxu0 0.0
        %946 = vmatpush1.xpose.msra.mxu0 0.0
        %947 = vmatprep.subr.mxu0 0.0
        %948 = vmatpush1.xpose.msra.mxu0 0.0
        %949 = vmatprep.subr.mxu0 0.0
        %950 = vmatpush1.xpose.msra.mxu0 0.0
        %951 = vmatprep.subr.mxu0 0.0
        %952 = vmatpush1.xpose.msra.mxu0 0.0
        %953 = vmatprep.subr.mxu0 0.0
        %954 = vmatpush1.xpose.msra.mxu0 0.0
        %955 = vmatprep.subr.mxu0 0.0
        %956 = vmatpush1.xpose.msra.mxu0 0.0
        %957 = vmatprep.subr.mxu0 0.0
        %958 = vmatpush1.xpose.msra.mxu0 0.0
        %959 = vmatprep.subr.mxu0 0.0
        %960 = vmatpush1.xpose.msra.mxu0 0.0
        %961 = vmatprep.subr.mxu0 0.0
        %962 = vmatpush1.xpose.msra.mxu0 0.0
        %963 = vmatprep.subr.mxu0 0.0
        %964 = vmatpush1.xpose.msra.mxu0 0.0
        %965 = vmatprep.subr.mxu0 0.0
        %966 = vmatpush1.xpose.msra.mxu0 0.0
        %967 = vmatprep.subr.mxu0 0.0
        %968 = vmatpush1.xpose.msra.mxu0 0.0
        %969 = vmatprep.subr.mxu0 0.0
        %970 = vmatpush1.xpose.msra.mxu0 0.0
        %971 = vmatprep.subr.mxu0 0.0
        %972 = vmatpush1.xpose.msra.mxu0 0.0
        %973 = vmatprep.subr.mxu0 0.0
        %974 = vmatpush1.xpose.msra.mxu0 0.0
        %975 = vmatprep.subr.mxu0 0.0
        %976 = vmatpush1.xpose.msra.mxu0 0.0
        %977 = vmatprep.subr.mxu0 0.0
        %978 = vmatpush1.xpose.msra.mxu0 0.0
        %979 = vmatprep.subr.mxu0 0.0
        %980 = vmatpush1.xpose.msra.mxu0 0.0
        %981 = vmatprep.subr.mxu0 0.0
        %982 = vmatpush1.xpose.msra.mxu0 0.0
        %983 = vmatprep.subr.mxu0 0.0
        %984 = vmatpush1.xpose.msra.mxu0 0.0
        %985 = vmatprep.subr.mxu0 0.0
        %986 = vmatpush1.xpose.msra.mxu0 0.0
        %987 = vmatprep.subr.mxu0 0.0
        %988 = vmatpush1.xpose.msra.mxu0 0.0
        %989 = vmatprep.subr.mxu0 0.0
        %990 = vmatpush1.xpose.msra.mxu0 0.0
        %991 = vmatprep.mubr.f32.mxu0 0.0
        %992 = vmatmul.mubr.f32.gmra.mrb[0].mxu0 %v913
        %v993 = vpop.f32.mrb[0].mxu0
        %v994 = vadd.f32 0.0, %v993
        %v995 = vpop.f32.mrb[0].mxu0
        %996 = vdwg.mxu0
        %v998 = vlaneseq
        %v999 = vshrl.u32 %v998, 7
        %v1000 = vsub.s32 0, %v999
        %v1001 = vrot.slane %v907, %v1000
        %v1003 = vadd.f32 %v994, %v1001
        %vm1004 = vcmask 64512
        %v1005 = vsel %vm1004, %v1003, -inf
        %1006 = vmax.xlane.f32.xlu0 %v1005
        %v1007 = vpop.xlane.xlu0 %1006
        %v1008 = vsub.f32 %v1003, %v1007
        %v1009 = vmul.f32 %v1008, 1.442695
        %v1010 = vpow.pop %v1009
        %v1011 = vsel %vm1004, %v1010, 0.0
        %1012 = vadd.xlane.f32.xlu0 %v1011
        %v1013 = vpop.xlane.xlu0 %1012
        %v1014 = vrcp.pop %v1013
        %v1015 = vmul.f32 1.0, %v1014
        %1016 = vst.msk [vmem:[#allocation4] sm:$0xff] %vm1004, %v1010
        %1017 = vrot.lane.b32.xlu0 %v1001, 8
        %v1018 = vpop.permute.xlu0 %1017
        %v1020 = vadd.f32 %v994, %v1018
        %vm1021 = vcmask 130112
        %v1022 = vsel %vm1021, %v1020, -inf
        %1023 = vmax.xlane.f32.xlu0 %v1022
        %v1024 = vpop.xlane.xlu0 %1023
        %v1025 = vsub.f32 %v1020, %v1024
        %v1026 = vmul.f32 %v1025, 1.442695
        %v1027 = vpow.pop %v1026
        %1029 = vrot.lane.b32.xlu0 %v1027, 120
        %v1030 = vpop.permute.xlu0 %1029
        %v1032 = vsel %vm1004, %v1030, 0.0
        %1033 = vadd.xlane.f32.xlu0 %v1032
        %v1034 = vpop.xlane.xlu0 %1033
        %v1035 = vrcp.pop %v1034
        %v1036 = vmul.f32 1.0, %v1035
        %1037 = vst.msk [vmem:[#allocation4] sm:$0xff] %vm1021, %v1027
        %1038 = vrot.lane.b32.xlu0 %v1001, 16
        %v1039 = vpop.permute.xlu0 %1038
        %v1041 = vadd.f32 %v994, %v1039
        %vm1042 = vcmask 195712
        %v1043 = vsel %vm1042, %v1041, -inf
        %1044 = vmax.xlane.f32.xlu0 %v1043
        %v1045 = vpop.xlane.xlu0 %1044
        %v1046 = vsub.f32 %v1041, %v1045
        %v1047 = vmul.f32 %v1046, 1.442695
        %v1048 = vpow.pop %v1047
        %1050 = vrot.lane.b32.xlu0 %v1048, 112
        %v1051 = vpop.permute.xlu0 %1050
        %v1053 = vsel %vm1004, %v1051, 0.0
        %1054 = vadd.xlane.f32.xlu0 %v1053
        %v1055 = vpop.xlane.xlu0 %1054
        %v1056 = vrcp.pop %v1055
        %v1057 = vmul.f32 1.0, %v1056
        %1058 = vst.msk [vmem:[#allocation4] sm:$0xff] %vm1042, %v1048
        %1059 = vrot.lane.b32.xlu0 %v1001, 24
        %v1060 = vpop.permute.xlu0 %1059
        %v1062 = vadd.f32 %v994, %v1060
        %vm1063 = vcmask 261312
        %v1064 = vsel %vm1063, %v1062, -inf
        %1065 = vmax.xlane.f32.xlu0 %v1064
        %v1066 = vpop.xlane.xlu0 %1065
        %v1067 = vsub.f32 %v1062, %v1066
        %v1068 = vmul.f32 %v1067, 1.442695
        %v1069 = vpow.pop %v1068
        %1071 = vrot.lane.b32.xlu0 %v1069, 104
        %v1072 = vpop.permute.xlu0 %1071
        %v1074 = vsel %vm1004, %v1072, 0.0
        %1075 = vadd.xlane.f32.xlu0 %v1074
        %v1076 = vpop.xlane.xlu0 %1075
        %v1077 = vrcp.pop %v1076
        %v1078 = vmul.f32 1.0, %v1077
        %1079 = vst.msk [vmem:[#allocation4] sm:$0xff] %vm1063, %v1069
        %v1080 = vld [vmem:[#allocation4] sm:$0xff]
        %v1081 = vld [vmem:[#allocation3] sm:$0xff]
        %v1082 = vld [vmem:[#allocation3 + $0x8] sm:$0xff]
        %v1083 = vld [vmem:[#allocation3 + $0x10] sm:$0xff]
        %v1084 = vld [vmem:[#allocation3 + $0x18] sm:$0xff]
        %v1086 = vsel %vm833, %v1080, 0
        %1088 = vmatprep.subr.mxu0 0.0
        %1089 = vmatpush1.msra.mxu0 %v1081
        %1090 = vmatprep.subr.mxu0 0.0
        %1091 = vmatpush1.msra.mxu0 %v1082
        %1092 = vmatprep.subr.mxu0 0.0
        %1093 = vmatpush1.msra.mxu0 %v1083
        %1094 = vmatprep.subr.mxu0 0.0
        %1095 = vmatpush1.msra.mxu0 %v1084
        %1096 = vmatprep.subr.mxu0 0.0
        %1097 = vmatpush1.msra.mxu0 0.0
        %1098 = vmatprep.subr.mxu0 0.0
        %1099 = vmatpush1.msra.mxu0 0.0
        %1100 = vmatprep.subr.mxu0 0.0
        %1101 = vmatpush1.msra.mxu0 0.0
        %1102 = vmatprep.subr.mxu0 0.0
        %1103 = vmatpush1.msra.mxu0 0.0
        %1104 = vmatprep.subr.mxu0 0.0
        %1105 = vmatpush1.msra.mxu0 0.0
        %1106 = vmatprep.subr.mxu0 0.0
        %1107 = vmatpush1.msra.mxu0 0.0
        %1108 = vmatprep.subr.mxu0 0.0
        %1109 = vmatpush1.msra.mxu0 0.0
        %1110 = vmatprep.subr.mxu0 0.0
        %1111 = vmatpush1.msra.mxu0 0.0
        %1112 = vmatprep.subr.mxu0 0.0
        %1113 = vmatpush1.msra.mxu0 0.0
        %1114 = vmatprep.subr.mxu0 0.0
        %1115 = vmatpush1.msra.mxu0 0.0
        %1116 = vmatprep.subr.mxu0 0.0
        %1117 = vmatpush1.msra.mxu0 0.0
        %1118 = vmatprep.subr.mxu0 0.0
        %1119 = vmatpush1.msra.mxu0 0.0
        %1120 = vmatprep.subr.mxu0 0.0
        %1121 = vmatpush1.msra.mxu0 0.0
        %1122 = vmatprep.subr.mxu0 0.0
        %1123 = vmatpush1.msra.mxu0 0.0
        %1124 = vmatprep.subr.mxu0 0.0
        %1125 = vmatpush1.msra.mxu0 0.0
        %1126 = vmatprep.subr.mxu0 0.0
        %1127 = vmatpush1.msra.mxu0 0.0
        %1128 = vmatprep.subr.mxu0 0.0
        %1129 = vmatpush1.msra.mxu0 0.0
        %1130 = vmatprep.subr.mxu0 0.0
        %1131 = vmatpush1.msra.mxu0 0.0
        %1132 = vmatprep.subr.mxu0 0.0
        %1133 = vmatpush1.msra.mxu0 0.0
        %1134 = vmatprep.subr.mxu0 0.0
        %1135 = vmatpush1.msra.mxu0 0.0
        %1136 = vmatprep.subr.mxu0 0.0
        %1137 = vmatpush1.msra.mxu0 0.0
        %1138 = vmatprep.subr.mxu0 0.0
        %1139 = vmatpush1.msra.mxu0 0.0
        %1140 = vmatprep.subr.mxu0 0.0
        %1141 = vmatpush1.msra.mxu0 0.0
        %1142 = vmatprep.subr.mxu0 0.0
        %1143 = vmatpush1.msra.mxu0 0.0
        %1144 = vmatprep.subr.mxu0 0.0
        %1145 = vmatpush1.msra.mxu0 0.0
        %1146 = vmatprep.subr.mxu0 0.0
        %1147 = vmatpush1.msra.mxu0 0.0
        %1148 = vmatprep.subr.mxu0 0.0
        %1149 = vmatpush1.msra.mxu0 0.0
        %1150 = vmatprep.subr.mxu0 0.0
        %1151 = vmatpush1.msra.mxu0 0.0
        %1152 = vmatprep.mubr.f32.mxu0 0.0
        %1153 = vmatmul.mubr.f32.gmra.mrb[0].mxu0 %v1086
        %v1154 = vpop.f32.mrb[0].mxu0
        %v1155 = vadd.f32 0.0, %v1154
        %v1156 = vpop.f32.mrb[0].mxu0
        %1157 = vdwg.mxu0
        %v1158 = vmul.f32 %v1155, %v1015
        %1159 = vst.msk [vmem:[#allocation5] sm:$0xff] %vm1004, %v1158
        %v1160 = vmul.f32 %v1155, %v1036
        %1161 = vst.msk [vmem:[#allocation5] sm:$0xff] %vm1021, %v1160
        %v1162 = vmul.f32 %v1155, %v1057
        %1163 = vst.msk [vmem:[#allocation5] sm:$0xff] %vm1042, %v1162
        %v1164 = vmul.f32 %v1155, %v1078
        %1165 = vst.msk [vmem:[#allocation5] sm:$0xff] %vm1063, %v1164
        %v1166 = vld [vmem:[#allocation5] sm:$0xff]
        %v1167 = vld [vmem:[#allocation15] sm:$0xff]
        %v1168 = vld [vmem:[#allocation15 + $0x8] sm:$0xff]
        %v1169 = vld [vmem:[#allocation15 + $0x10] sm:$0xff]
        %v1170 = vld [vmem:[#allocation15 + $0x18] sm:$0xff]
        %v1171 = vld [vmem:[%s12] sm:$0x1]
        %v1173 = vlaneseq
        %v1174 = vshrl.u32 %v1173, 7
        %v1175 = vsub.s32 0, %v1174
        %v1176 = vrot.slane %v1171, %v1175
        %v1179 = vsel %vm833, %v1166, 0
        %1181 = vmatprep.subr.mxu0 0.0
        %1182 = vmatpush1.msra.mxu0 %v1167
        %1183 = vmatprep.subr.mxu0 0.0
        %1184 = vmatpush1.msra.mxu0 %v1168
        %1185 = vmatprep.subr.mxu0 0.0
        %1186 = vmatpush1.msra.mxu0 %v1169
        %1187 = vmatprep.subr.mxu0 0.0
        %1188 = vmatpush1.msra.mxu0 %v1170
        %1189 = vmatprep.subr.mxu0 0.0
        %1190 = vmatpush1.msra.mxu0 0.0
        %1191 = vmatprep.subr.mxu0 0.0
        %1192 = vmatpush1.msra.mxu0 0.0
        %1193 = vmatprep.subr.mxu0 0.0
        %1194 = vmatpush1.msra.mxu0 0.0
        %1195 = vmatprep.subr.mxu0 0.0
        %1196 = vmatpush1.msra.mxu0 0.0
        %1197 = vmatprep.subr.mxu0 0.0
        %1198 = vmatpush1.msra.mxu0 0.0
        %1199 = vmatprep.subr.mxu0 0.0
        %1200 = vmatpush1.msra.mxu0 0.0
        %1201 = vmatprep.subr.mxu0 0.0
        %1202 = vmatpush1.msra.mxu0 0.0
        %1203 = vmatprep.subr.mxu0 0.0
        %1204 = vmatpush1.msra.mxu0 0.0
        %1205 = vmatprep.subr.mxu0 0.0
        %1206 = vmatpush1.msra.mxu0 0.0
        %1207 = vmatprep.subr.mxu0 0.0
        %1208 = vmatpush1.msra.mxu0 0.0
        %1209 = vmatprep.subr.mxu0 0.0
        %1210 = vmatpush1.msra.mxu0 0.0
        %1211 = vmatprep.subr.mxu0 0.0
        %1212 = vmatpush1.msra.mxu0 0.0
        %1213 = vmatprep.subr.mxu0 0.0
        %1214 = vmatpush1.msra.mxu0 0.0
        %1215 = vmatprep.subr.mxu0 0.0
        %1216 = vmatpush1.msra.mxu0 0.0
        %1217 = vmatprep.subr.mxu0 0.0
        %1218 = vmatpush1.msra.mxu0 0.0
        %1219 = vmatprep.subr.mxu0 0.0
        %1220 = vmatpush1.msra.mxu0 0.0
        %1221 = vmatprep.subr.mxu0 0.0
        %1222 = vmatpush1.msra.mxu0 0.0
        %1223 = vmatprep.subr.mxu0 0.0
        %1224 = vmatpush1.msra.mxu0 0.0
        %1225 = vmatprep.subr.mxu0 0.0
        %1226 = vmatpush1.msra.mxu0 0.0
        %1227 = vmatprep.subr.mxu0 0.0
        %1228 = vmatpush1.msra.mxu0 0.0
        %1229 = vmatprep.subr.mxu0 0.0
        %1230 = vmatpush1.msra.mxu0 0.0
        %1231 = vmatprep.subr.mxu0 0.0
        %1232 = vmatpush1.msra.mxu0 0.0
        %1233 = vmatprep.subr.mxu0 0.0
        %1234 = vmatpush1.msra.mxu0 0.0
        %1235 = vmatprep.subr.mxu0 0.0
        %1236 = vmatpush1.msra.mxu0 0.0
        %1237 = vmatprep.subr.mxu0 0.0
        %1238 = vmatpush1.msra.mxu0 0.0
        %1239 = vmatprep.subr.mxu0 0.0
        %1240 = vmatpush1.msra.mxu0 0.0
        %1241 = vmatprep.subr.mxu0 0.0
        %1242 = vmatpush1.msra.mxu0 0.0
        %1243 = vmatprep.subr.mxu0 0.0
        %1244 = vmatpush1.msra.mxu0 0.0
        %1245 = vmatprep.mubr.f32.mxu0 0.0
        %1246 = vmatmul.mubr.f32.gmra.mrb[0].mxu0 %v1179
        %v1247 = vpop.f32.mrb[0].mxu0
        %v1248 = vadd.f32 %v1176, %v1247
        %v1249 = vpop.f32.mrb[0].mxu0
        %1250 = vdwg.mxu0
        %1251 = vst.msk [vmem:[%s611] sm:$0xff] %vm833, %v1248
        %s1252 = sand.u32 %s357, 1
        %s1253 = scalar_lea.sflag [#allocation8], %s1252
        %s1254 = sand.u32 %s357, 1
        %s1255 = smul.addr %s1254, 8
        %s1256 = scalar_lea.vmem [#allocation17], %s1255
        // Predicated region
        $region101: #{tpu_custom_call.1} parent=71 // pred_check
          %p1257 = pneg %p367
        $region102: #{tpu_custom_call.1} parent=71 // pred_check_branch
          %1259 = sbr.rel (%p1257) target = $region104
        $region103: #{tpu_custom_call.1} parent=71 // pred_region
          %s1261 = ssub.s32 128, 128
          %1262 = vsyncadd %s1253, %s1261
          %s1263 = sadd.s32 %s40, %s39
          %s1264 = smul.addr %s1263, 128
          %s1265 = scalar_lea.hbm %s13, %s1264
          %s1267 = sshll.u32 %s1256, 4
          %s1268 = int_to_ptr.vmem [resolvable:$true] %s1267
          %1270 = dma.vmem_to_hbm [thread:$0]  %s1268, 128, %s1265, %s1253
        $region104: #{tpu_custom_call.1} parent=71 // pred_fallthru
          _
      $region72: #{tpu_custom_call.1} parent=5 // pred_fallthru
        _
      %p1271 = scmp.le.s32.totalorder 2, %s30
      // Predicated region
      $region105: #{tpu_custom_call.1} parent=5 // pred_check
        %p1272 = pneg %p1271
      $region106: #{tpu_custom_call.1} parent=5 // pred_check_branch
        %1274 = sbr.rel (%p1272) target = $region108
      $region107: #{tpu_custom_call.1} parent=5 // pred_region
        %s1275 = ssub.s32 %s30, 2
        // Predicated region
        $region109: #{tpu_custom_call.1} parent=107 // pred_check
          %p1276 = pneg %p373
        $region110: #{tpu_custom_call.1} parent=107 // pred_check_branch
          %1278 = sbr.rel (%p1276) target = $region112
        $region111: #{tpu_custom_call.1} parent=107 // pred_region
          %s1279 = sand.u32 %s358, 1
          %s1280 = scalar_lea.sflag [#allocation8], %s1279
          %s1281 = sand.u32 %s358, 1
          %s1282 = smul.addr %s1281, 8
          %s1283 = scalar_lea.vmem [#allocation17], %s1282
          %1284 = dma.done %s1280, 128
        $region112: #{tpu_custom_call.1} parent=107 // pred_fallthru
          _
      $region108: #{tpu_custom_call.1} parent=5 // pred_fallthru
        _
    $region6: #{tpu_custom_call.1} parent=1 // loop_footer
      %s34 = sadd.s32 1, %s30
    $region7: #{tpu_custom_call.1} parent=1 // loop_footer_branch
      %29 = sbr.rel target = $region3
    $region8: #{tpu_custom_call.1} parent=1 // loop_exit
      _
    %1285 = vsyncpa [#allocation7], 1
    %s1286 = scalar_lea.sflag [#allocation7], 1
    %1287 = vsyncpa %s1286, 1
    %1288 = vsyncpa [#allocation10], 1
    %s1289 = scalar_lea.sflag [#allocation10], 1
    %1290 = vsyncpa %s1289, 1
    %1291 = vsyncpa [#allocation13], 1
    %1292 = vsyncpa [#allocation16], 1
    %1293 = vsyncpa [#allocation8], 1
    %s1294 = scalar_lea.sflag [#allocation8], 1
    %1295 = vsyncpa %s1294, 1

</llo_original>
